<compile_context>
chip_gen: v7x
topology: tpu7x:2x2x1
jax: 0.10.0
libtpu: 0.0.40
codegen_flags: <defaults>
</compile_context>

<pallas_src>
import functools

import jax
import jax.numpy as jnp
from jax import lax
from jax.experimental import pallas as pl
from jax.experimental.pallas import tpu as pltpu

NEG_SLOPE = 0.2      # HEATConv default negative_slope
BN_EPS = 1e-5        # torch.nn.BatchNorm1d default eps
DENOM_FLOOR = 1e-20  # softmax-denominator guard (zero in-degree -> root only)
LAYER_NREFS = 11     # refs per HEATConv layer passed to the fused kernel

_COMPILER_PARAMS = pltpu.CompilerParams(
    dimension_semantics=("arbitrary",),
)


def _spec(shape):
    """Full-array BlockSpec for a trivial grid=(1,) launch."""
    return pl.BlockSpec(shape, lambda i: (0,) * len(shape))


def _lrelu(v):
    return jnp.where(v > 0, v, NEG_SLOPE * v)


# ----------------------------------------------------------------------------
# Fused kernel: llm_proj + all HEATConv layers (+ BatchNorm + ReLU).
# ----------------------------------------------------------------------------
def deep_heat_kernel(*refs, heads, layer_out_ch):
    f32, bf16 = jnp.float32, jnp.bfloat16
    num_layers = len(layer_out_ch)

    x_ref, ea_ref, s_ref, t_ref, pw_ref, pb_ref = refs[:6]
    o_ref = refs[-1]
    lrefs = refs[6:-1]
    assert len(lrefs) == LAYER_NREFS * num_layers

    # One-hot gather/scatter operands: loaded once, VMEM-resident all layers.
    s = s_ref[...]                                   # [E, N] bf16 (source)
    t = t_ref[...]                                   # [E, N] bf16 (target)

    # Shared llm_proj: weights used once, applied to nodes and edge attrs.
    pw, pb = pw_ref[...], pb_ref[...]
    x = jnp.dot(x_ref[...], pw, preferred_element_type=f32) + pb    # [N, P]
    ea = jnp.dot(ea_ref[...], pw, preferred_element_type=f32) + pb  # [E, P]

    for li in range(num_layers):
        (w_het, b_het, ete_r, w_ea, wa_i, w_src, w_att_e, wl_a, b_l,
         bn_scale, bn_shift) = lrefs[li * LAYER_NREFS:(li + 1) * LAYER_NREFS]
        out_ch = layer_out_ch[li]
        last = li == num_layers - 1

        # 1) HeteroLinear (all node types == 0 -> single linear).
        xc = jnp.dot(x, w_het[...], preferred_element_type=f32) + b_het[...]    # [N, C]

        # 2) Node-level projections hoisted ahead of the gather:
        #      p_i      = xc @ att_i              (target attention term)
        #      src_proj = xc @ [att_j | lin_x]    (source attn + message terms)
        p_i = jnp.dot(xc, wa_i[...], preferred_element_type=f32)                # [N, H]
        src_proj = jnp.dot(xc, w_src[...], preferred_element_type=f32)          # [N, H+C]

        # 3) Edge gathers via one-hot matmuls (bf16 MXU path, f32 accumulation).
        p_i_e = jnp.dot(t, p_i.astype(bf16), preferred_element_type=f32)        # [E, H]
        g_src = jnp.dot(s, src_proj.astype(bf16), preferred_element_type=f32)   # [E, H+C]
        p_j_e = g_src[:, :heads]                                                # [E, H]
        m_x_e = g_src[:, heads:]                                                # [E, C]

        # 4) Edge-type / edge-attr embeddings (+ leaky ReLU).
        ete = _lrelu(ete_r[...])                                                # [E, T]
        eae = _lrelu(jnp.dot(ea, w_ea[...], preferred_element_type=f32))        # [E, A]

        # 5) Attention logits: leaky_relu( att([x_i | x_j | ete | eae]) ).
        edge_feat = jnp.concatenate([ete, eae], axis=1)                         # [E, T+A]
        logits = _lrelu(
            p_i_e + p_j_e
            + jnp.dot(edge_feat, w_att_e[...], preferred_element_type=f32))     # [E, H]

        # 6) Segment softmax deferred to node level: one T^T scatter each for
        #    numerator / denominator, then a per-node divide (EUP reciprocal).
        ex = jnp.exp(logits - jnp.max(logits, axis=0, keepdims=True))           # [E, H]

        msg = (m_x_e
               + jnp.dot(eae, wl_a[...], preferred_element_type=f32)
               + b_l[...])                                                      # [E, C]
        weighted = jnp.concatenate(
            [msg * ex[:, h:h + 1] for h in range(heads)], axis=1)               # [E, H*C]

        dn = (((0,), (0,)), ((), ()))  # contract over E directly on T (no TT array)
        denom_n = lax.dot_general(t, ex.astype(bf16), dn,
                                  preferred_element_type=f32)                   # [N, H]
        num_n = lax.dot_general(t, weighted.astype(bf16), dn,
                                preferred_element_type=f32)                     # [N, H*C]
        inv = pl.reciprocal(jnp.maximum(denom_n, DENOM_FLOOR), approx=True)     # [N, H]

        # 7) Per-head normalize + root term, one lane-dense [N, H*C] block
        #    (optionally followed by folded BatchNorm + ReLU).
        out = jnp.concatenate(
            [num_n[:, h * out_ch:(h + 1) * out_ch] * inv[:, h:h + 1] + xc
             for h in range(heads)], axis=1)                                    # [N, H*C]

        if not last:
            out = jnp.maximum(out * bn_scale[...] + bn_shift[...], 0.0)
        x = out
        # dropout: identity in inference mode

    o_ref[...] = x


# ----------------------------------------------------------------------------
# Full DeepHEATNet forward (host glue: one-hots, embedding lookup, reshape).
# ----------------------------------------------------------------------------
def deep_heat_net_forward(x, edge_index, edge_type, edge_attr, params, cfg):
    n = x.shape[0]
    heads = cfg["heads"]
    src, dst = edge_index[0], edge_index[1]  # PyG: x_j = x[src], aggregate at dst

    # One-hots in bf16 (exactly representable) -> bf16-native MXU gathers.
    s_onehot = jax.nn.one_hot(src, n, dtype=jnp.bfloat16)   # [E, N]
    t_onehot = jax.nn.one_hot(dst, n, dtype=jnp.bfloat16)   # [E, N]

    num_layers = len(params["convs"])
    layer_out_ch = []
    layer_refs = []
    for i, cp in enumerate(params["convs"]):
        last = i == num_layers - 1
        out_ch = cfg["out_channels"] if last else cfg["hidden_channels"]
        layer_out_ch.append(out_ch)
        # Fuse att_j|lin_x (source-node proj) and att_t|att_a (edge-feat proj).
        w_src = jnp.concatenate([cp["wa_j"], cp["wl_x"]], axis=1)    # [C, H+C]
        w_att_e = jnp.concatenate([cp["wa_t"], cp["wa_a"]], axis=0)  # [T+A, H]
        # Edge-type embedding row lookup is host-side glue (pure indexing).
        ete_raw = cp["emb"][edge_type]                               # [E, T]
        if last:  # no BN/ReLU after the last conv (refs unused in-kernel)
            bn_scale = jnp.zeros((1, heads * out_ch), jnp.float32)
            bn_shift = jnp.zeros((1, heads * out_ch), jnp.float32)
        else:
            bn = params["bns"][i]
            inv_std = 1.0 / jnp.sqrt(bn["var"] + BN_EPS)
            bn_scale = (bn["gamma"] * inv_std)[None, :]
            bn_shift = (bn["beta"] - bn["mean"] * bn["gamma"] * inv_std)[None, :]
        layer_refs += [cp["w_het"], cp["b_het"], ete_raw, cp["w_ea"],
                       cp["wa_i"], w_src, w_att_e, cp["wl_a"], cp["b_l"],
                       bn_scale, bn_shift]

    ins = (x, edge_attr, s_onehot, t_onehot,
           params["proj_w"], params["proj_b"], *layer_refs)
    out_w = heads * layer_out_ch[-1]
    kernel = functools.partial(deep_heat_kernel, heads=heads,
                               layer_out_ch=tuple(layer_out_ch))
    out = pl.pallas_call(
        kernel,
        out_shape=jax.ShapeDtypeStruct((n, out_w), jnp.float32),
        grid=(1,),
        in_specs=[_spec(a.shape) for a in ins],
        out_specs=_spec((n, out_w)),
        compiler_params=_COMPILER_PARAMS,
    )(*ins)
    return out.reshape(-1, heads, cfg["out_channels"])


# ----------------------------------------------------------------------------
# Deterministic parameter initialization (shapes follow the module __init__).
# ----------------------------------------------------------------------------
def init_params(key, cfg):
    keys = iter(jax.random.split(key, 256))

    def nxt(shape, scale=0.1):
        return scale * jax.random.normal(next(keys), shape, dtype=jnp.float32)

    heads = cfg["heads"]
    hid = cfg["hidden_channels"]
    out_c = cfg["out_channels"]
    tdim = cfg["edge_type_emb_dim"]
    adim = cfg["edge_attr_emb_dim"]
    edim = cfg["edge_dim"]  # = proj_channels (edge_attr is llm_proj-ed first)

    net = {
        "proj_w": nxt((cfg["in_channels"], cfg["proj_channels"])),
        "proj_b": nxt((1, cfg["proj_channels"])),
        "convs": [],
        "bns": [],
    }

    fin = cfg["proj_channels"]
    for i in range(cfg["num_layers"]):
        last = i == cfg["num_layers"] - 1
        c = out_c if last else hid
        net["convs"].append({
            "w_het": nxt((fin, c)),
            "b_het": nxt((1, c)),
            "emb":   nxt((cfg["num_edge_types"], tdim)),
            "w_ea":  nxt((edim, adim)),
            "wa_i":  nxt((c, heads)),
            "wa_j":  nxt((c, heads)),
            "wa_t":  nxt((tdim, heads)),
            "wa_a":  nxt((adim, heads)),
            "wl_x":  nxt((c, c)),
            "wl_a":  nxt((adim, c)),
            "b_l":   nxt((1, c)),
        })
        fin = c * heads

    for _ in range(cfg["num_layers"] - 1):
        f = heads * hid
        net["bns"].append({
            "gamma": 1.0 + nxt((f,)),
            "beta":  nxt((f,)),
            "mean":  nxt((f,)),
            "var":   1.0 + jnp.abs(nxt((f,))),
        })
    return net


if __name__ == "__main__":
    cfg = dict(
        in_channels=32, proj_channels=16, hidden_channels=8, out_channels=8,
        num_node_types=3, num_edge_types=4, edge_type_emb_dim=8,
        edge_dim=16, edge_attr_emb_dim=8, heads=4, num_layers=3, dropout=0.1,
    )
    N, E = 16, 32

    key = jax.random.PRNGKey(0)
    k_x, k_ea, k_src, k_dst, k_et, k_p = jax.random.split(key, 6)

    x = jax.random.normal(k_x, (N, cfg["in_channels"]), jnp.float32)
    edge_attr = jax.random.normal(k_ea, (E, cfg["in_channels"]), jnp.float32)
    edge_index = jnp.stack([
        jax.random.randint(k_src, (E,), 0, N),
        jax.random.randint(k_dst, (E,), 0, N),
    ])
    edge_type = jax.random.randint(k_et, (E,), 0, cfg["num_edge_types"])

    params = init_params(k_p, cfg)

    out = deep_heat_net_forward(x, edge_index, edge_type, edge_attr, params, cfg)
    out = jax.block_until_ready(out)
    assert out.shape == (N, cfg["heads"], cfg["out_channels"])
    assert bool(jnp.all(jnp.isfinite(out)))
    print("KERNEL_OK")
</pallas_src>

<mosaic_0001>
module attributes {stable_mosaic.version = 11 : i64} {
  func.func @deep_heat_kernel(%arg0: i32, %arg1: memref<16x32xf32, #tpu.memory_space<vmem>>, %arg2: memref<32x32xf32, #tpu.memory_space<vmem>>, %arg3: memref<32x16xbf16, #tpu.memory_space<vmem>>, %arg4: memref<32x16xbf16, #tpu.memory_space<vmem>>, %arg5: memref<32x16xf32, #tpu.memory_space<vmem>>, %arg6: memref<1x16xf32, #tpu.memory_space<vmem>>, %arg7: memref<16x8xf32, #tpu.memory_space<vmem>>, %arg8: memref<1x8xf32, #tpu.memory_space<vmem>>, %arg9: memref<32x8xf32, #tpu.memory_space<vmem>>, %arg10: memref<16x8xf32, #tpu.memory_space<vmem>>, %arg11: memref<8x4xf32, #tpu.memory_space<vmem>>, %arg12: memref<8x12xf32, #tpu.memory_space<vmem>>, %arg13: memref<16x4xf32, #tpu.memory_space<vmem>>, %arg14: memref<8x8xf32, #tpu.memory_space<vmem>>, %arg15: memref<1x8xf32, #tpu.memory_space<vmem>>, %arg16: memref<1x32xf32, #tpu.memory_space<vmem>>, %arg17: memref<1x32xf32, #tpu.memory_space<vmem>>, %arg18: memref<32x8xf32, #tpu.memory_space<vmem>>, %arg19: memref<1x8xf32, #tpu.memory_space<vmem>>, %arg20: memref<32x8xf32, #tpu.memory_space<vmem>>, %arg21: memref<16x8xf32, #tpu.memory_space<vmem>>, %arg22: memref<8x4xf32, #tpu.memory_space<vmem>>, %arg23: memref<8x12xf32, #tpu.memory_space<vmem>>, %arg24: memref<16x4xf32, #tpu.memory_space<vmem>>, %arg25: memref<8x8xf32, #tpu.memory_space<vmem>>, %arg26: memref<1x8xf32, #tpu.memory_space<vmem>>, %arg27: memref<1x32xf32, #tpu.memory_space<vmem>>, %arg28: memref<1x32xf32, #tpu.memory_space<vmem>>, %arg29: memref<32x8xf32, #tpu.memory_space<vmem>>, %arg30: memref<1x8xf32, #tpu.memory_space<vmem>>, %arg31: memref<32x8xf32, #tpu.memory_space<vmem>>, %arg32: memref<16x8xf32, #tpu.memory_space<vmem>>, %arg33: memref<8x4xf32, #tpu.memory_space<vmem>>, %arg34: memref<8x12xf32, #tpu.memory_space<vmem>>, %arg35: memref<16x4xf32, #tpu.memory_space<vmem>>, %arg36: memref<8x8xf32, #tpu.memory_space<vmem>>, %arg37: memref<1x8xf32, #tpu.memory_space<vmem>>, %arg38: memref<1x32xf32, #tpu.memory_space<vmem>>, %arg39: memref<1x32xf32, #tpu.memory_space<vmem>>, %arg40: memref<16x32xf32, #tpu.memory_space<vmem>>) attributes {dimension_semantics = [#tpu.dimension_semantics<arbitrary>], iteration_bounds = array<i64: 1>, scalar_prefetch = 0 : i64, scratch_operands = 0 : i64, tpu.core_type = #tpu.core_type<tc>, window_params = [{pipeline_mode = #tpu.pipeline_mode<synchronous>, transform_indices = @transform_0, window_bounds = array<i64: 16, 32>}, {pipeline_mode = #tpu.pipeline_mode<synchronous>, transform_indices = @transform_1, window_bounds = array<i64: 32, 32>}, {pipeline_mode = #tpu.pipeline_mode<synchronous>, transform_indices = @transform_2, window_bounds = array<i64: 32, 16>}, {pipeline_mode = #tpu.pipeline_mode<synchronous>, transform_indices = @transform_3, window_bounds = array<i64: 32, 16>}, {pipeline_mode = #tpu.pipeline_mode<synchronous>, transform_indices = @transform_4, window_bounds = array<i64: 32, 16>}, {pipeline_mode = #tpu.pipeline_mode<synchronous>, transform_indices = @transform_5, window_bounds = array<i64: 1, 16>}, {pipeline_mode = #tpu.pipeline_mode<synchronous>, transform_indices = @transform_6, window_bounds = array<i64: 16, 8>}, {pipeline_mode = #tpu.pipeline_mode<synchronous>, transform_indices = @transform_7, window_bounds = array<i64: 1, 8>}, {pipeline_mode = #tpu.pipeline_mode<synchronous>, transform_indices = @transform_8, window_bounds = array<i64: 32, 8>}, {pipeline_mode = #tpu.pipeline_mode<synchronous>, transform_indices = @transform_9, window_bounds = array<i64: 16, 8>}, {pipeline_mode = #tpu.pipeline_mode<synchronous>, transform_indices = @transform_10, window_bounds = array<i64: 8, 4>}, {pipeline_mode = #tpu.pipeline_mode<synchronous>, transform_indices = @transform_11, window_bounds = array<i64: 8, 12>}, {pipeline_mode = #tpu.pipeline_mode<synchronous>, transform_indices = @transform_12, window_bounds = array<i64: 16, 4>}, {pipeline_mode = #tpu.pipeline_mode<synchronous>, transform_indices = @transform_13, window_bounds = array<i64: 8, 8>}, {pipeline_mode = #tpu.pipeline_mode<synchronous>, transform_indices = @transform_14, window_bounds = array<i64: 1, 8>}, {pipeline_mode = #tpu.pipeline_mode<synchronous>, transform_indices = @transform_15, window_bounds = array<i64: 1, 32>}, {pipeline_mode = #tpu.pipeline_mode<synchronous>, transform_indices = @transform_16, window_bounds = array<i64: 1, 32>}, {pipeline_mode = #tpu.pipeline_mode<synchronous>, transform_indices = @transform_17, window_bounds = array<i64: 32, 8>}, {pipeline_mode = #tpu.pipeline_mode<synchronous>, transform_indices = @transform_18, window_bounds = array<i64: 1, 8>}, {pipeline_mode = #tpu.pipeline_mode<synchronous>, transform_indices = @transform_19, window_bounds = array<i64: 32, 8>}, {pipeline_mode = #tpu.pipeline_mode<synchronous>, transform_indices = @transform_20, window_bounds = array<i64: 16, 8>}, {pipeline_mode = #tpu.pipeline_mode<synchronous>, transform_indices = @transform_21, window_bounds = array<i64: 8, 4>}, {pipeline_mode = #tpu.pipeline_mode<synchronous>, transform_indices = @transform_22, window_bounds = array<i64: 8, 12>}, {pipeline_mode = #tpu.pipeline_mode<synchronous>, transform_indices = @transform_23, window_bounds = array<i64: 16, 4>}, {pipeline_mode = #tpu.pipeline_mode<synchronous>, transform_indices = @transform_24, window_bounds = array<i64: 8, 8>}, {pipeline_mode = #tpu.pipeline_mode<synchronous>, transform_indices = @transform_25, window_bounds = array<i64: 1, 8>}, {pipeline_mode = #tpu.pipeline_mode<synchronous>, transform_indices = @transform_26, window_bounds = array<i64: 1, 32>}, {pipeline_mode = #tpu.pipeline_mode<synchronous>, transform_indices = @transform_27, window_bounds = array<i64: 1, 32>}, {pipeline_mode = #tpu.pipeline_mode<synchronous>, transform_indices = @transform_28, window_bounds = array<i64: 32, 8>}, {pipeline_mode = #tpu.pipeline_mode<synchronous>, transform_indices = @transform_29, window_bounds = array<i64: 1, 8>}, {pipeline_mode = #tpu.pipeline_mode<synchronous>, transform_indices = @transform_30, window_bounds = array<i64: 32, 8>}, {pipeline_mode = #tpu.pipeline_mode<synchronous>, transform_indices = @transform_31, window_bounds = array<i64: 16, 8>}, {pipeline_mode = #tpu.pipeline_mode<synchronous>, transform_indices = @transform_32, window_bounds = array<i64: 8, 4>}, {pipeline_mode = #tpu.pipeline_mode<synchronous>, transform_indices = @transform_33, window_bounds = array<i64: 8, 12>}, {pipeline_mode = #tpu.pipeline_mode<synchronous>, transform_indices = @transform_34, window_bounds = array<i64: 16, 4>}, {pipeline_mode = #tpu.pipeline_mode<synchronous>, transform_indices = @transform_35, window_bounds = array<i64: 8, 8>}, {pipeline_mode = #tpu.pipeline_mode<synchronous>, transform_indices = @transform_36, window_bounds = array<i64: 1, 8>}, {pipeline_mode = #tpu.pipeline_mode<synchronous>, transform_indices = @transform_37, window_bounds = array<i64: 1, 32>}, {pipeline_mode = #tpu.pipeline_mode<synchronous>, transform_indices = @transform_38, window_bounds = array<i64: 1, 32>}, {pipeline_mode = #tpu.pipeline_mode<synchronous>, transform_indices = @transform_39, window_bounds = array<i64: 16, 32>}]} {
    %c0 = arith.constant 0 : index
    %c0_0 = arith.constant 0 : index
    %0 = vector.load %arg3[%c0, %c0_0] : memref<32x16xbf16, #tpu.memory_space<vmem>>, vector<32x16xbf16>
    %c0_1 = arith.constant 0 : index
    %c0_2 = arith.constant 0 : index
    %1 = vector.load %arg4[%c0_1, %c0_2] : memref<32x16xbf16, #tpu.memory_space<vmem>>, vector<32x16xbf16>
    %c0_3 = arith.constant 0 : index
    %c0_4 = arith.constant 0 : index
    %2 = vector.load %arg5[%c0_3, %c0_4] : memref<32x16xf32, #tpu.memory_space<vmem>>, vector<32x16xf32>
    %c0_5 = arith.constant 0 : index
    %c0_6 = arith.constant 0 : index
    %3 = vector.load %arg6[%c0_5, %c0_6] : memref<1x16xf32, #tpu.memory_space<vmem>>, vector<1x16xf32>
    %c0_7 = arith.constant 0 : index
    %c0_8 = arith.constant 0 : index
    %4 = vector.load %arg1[%c0_7, %c0_8] : memref<16x32xf32, #tpu.memory_space<vmem>>, vector<16x32xf32>
    %cst = arith.constant dense<0.000000e+00> : vector<16x16xf32>
    %5 = tpu.matmul %4, %2, %cst {dimension_numbers = #tpu.dot_dimension_numbers<[1], [0], [0], [1], [0, 0, 1, 1], [], []>} : vector<16x32xf32>, vector<32x16xf32>, vector<16x16xf32> -> vector<16x16xf32>
    %6 = vector.broadcast %3 : vector<1x16xf32> to vector<16x16xf32>
    %7 = arith.addf %5, %6 : vector<16x16xf32>
    %c0_9 = arith.constant 0 : index
    %c0_10 = arith.constant 0 : index
    %8 = vector.load %arg2[%c0_9, %c0_10] : memref<32x32xf32, #tpu.memory_space<vmem>>, vector<32x32xf32>
    %cst_11 = arith.constant dense<0.000000e+00> : vector<32x16xf32>
    %9 = tpu.matmul %8, %2, %cst_11 {dimension_numbers = #tpu.dot_dimension_numbers<[1], [0], [0], [1], [0, 0, 1, 1], [], []>} : vector<32x32xf32>, vector<32x16xf32>, vector<32x16xf32> -> vector<32x16xf32>
    %10 = vector.broadcast %3 : vector<1x16xf32> to vector<32x16xf32>
    %11 = arith.addf %9, %10 : vector<32x16xf32>
    %c0_12 = arith.constant 0 : index
    %c0_13 = arith.constant 0 : index
    %12 = vector.load %arg7[%c0_12, %c0_13] : memref<16x8xf32, #tpu.memory_space<vmem>>, vector<16x8xf32>
    %cst_14 = arith.constant dense<0.000000e+00> : vector<16x8xf32>
    %13 = tpu.matmul %7, %12, %cst_14 {dimension_numbers = #tpu.dot_dimension_numbers<[1], [0], [0], [1], [0, 0, 1, 1], [], []>} : vector<16x16xf32>, vector<16x8xf32>, vector<16x8xf32> -> vector<16x8xf32>
    %c0_15 = arith.constant 0 : index
    %c0_16 = arith.constant 0 : index
    %14 = vector.load %arg8[%c0_15, %c0_16] : memref<1x8xf32, #tpu.memory_space<vmem>>, vector<1x8xf32>
    %15 = vector.broadcast %14 : vector<1x8xf32> to vector<16x8xf32>
    %16 = arith.addf %13, %15 : vector<16x8xf32>
    %c0_17 = arith.constant 0 : index
    %c0_18 = arith.constant 0 : index
    %17 = vector.load %arg11[%c0_17, %c0_18] : memref<8x4xf32, #tpu.memory_space<vmem>>, vector<8x4xf32>
    %cst_19 = arith.constant dense<0.000000e+00> : vector<16x4xf32>
    %18 = tpu.matmul %16, %17, %cst_19 {dimension_numbers = #tpu.dot_dimension_numbers<[1], [0], [0], [1], [0, 0, 1, 1], [], []>} : vector<16x8xf32>, vector<8x4xf32>, vector<16x4xf32> -> vector<16x4xf32>
    %c0_20 = arith.constant 0 : index
    %c0_21 = arith.constant 0 : index
    %19 = vector.load %arg12[%c0_20, %c0_21] : memref<8x12xf32, #tpu.memory_space<vmem>>, vector<8x12xf32>
    %cst_22 = arith.constant dense<0.000000e+00> : vector<16x12xf32>
    %20 = tpu.matmul %16, %19, %cst_22 {dimension_numbers = #tpu.dot_dimension_numbers<[1], [0], [0], [1], [0, 0, 1, 1], [], []>} : vector<16x8xf32>, vector<8x12xf32>, vector<16x12xf32> -> vector<16x12xf32>
    %21 = arith.truncf %18 : vector<16x4xf32> to vector<16x4xbf16>
    %cst_23 = arith.constant dense<0.000000e+00> : vector<32x4xf32>
    %22 = tpu.matmul %1, %21, %cst_23 {dimension_numbers = #tpu.dot_dimension_numbers<[1], [0], [0], [1], [0, 0, 1, 1], [], []>} : vector<32x16xbf16>, vector<16x4xbf16>, vector<32x4xf32> -> vector<32x4xf32>
    %23 = arith.truncf %20 : vector<16x12xf32> to vector<16x12xbf16>
    %cst_24 = arith.constant dense<0.000000e+00> : vector<32x12xf32>
    %24 = tpu.matmul %0, %23, %cst_24 {dimension_numbers = #tpu.dot_dimension_numbers<[1], [0], [0], [1], [0, 0, 1, 1], [], []>} : vector<32x16xbf16>, vector<16x12xbf16>, vector<32x12xf32> -> vector<32x12xf32>
    %25 = vector.extract_strided_slice %24 {offsets = [0, 0], sizes = [32, 4], strides = [1, 1]} : vector<32x12xf32> to vector<32x4xf32>
    %26 = vector.extract_strided_slice %24 {offsets = [0, 4], sizes = [32, 8], strides = [1, 1]} : vector<32x12xf32> to vector<32x8xf32>
    %c0_25 = arith.constant 0 : index
    %c0_26 = arith.constant 0 : index
    %27 = vector.load %arg9[%c0_25, %c0_26] : memref<32x8xf32, #tpu.memory_space<vmem>>, vector<32x8xf32>
    %cst_27 = arith.constant 0.000000e+00 : f32
    %28 = vector.broadcast %cst_27 : f32 to vector<32x8xf32>
    %29 = arith.cmpf ogt, %27, %28 : vector<32x8xf32>
    %cst_28 = arith.constant 2.000000e-01 : f32
    %30 = vector.broadcast %cst_28 : f32 to vector<32x8xf32>
    %31 = arith.mulf %30, %27 : vector<32x8xf32>
    %32 = arith.select %29, %27, %31 : vector<32x8xi1>, vector<32x8xf32>
    %c0_29 = arith.constant 0 : index
    %c0_30 = arith.constant 0 : index
    %33 = vector.load %arg10[%c0_29, %c0_30] : memref<16x8xf32, #tpu.memory_space<vmem>>, vector<16x8xf32>
    %cst_31 = arith.constant dense<0.000000e+00> : vector<32x8xf32>
    %34 = tpu.matmul %11, %33, %cst_31 {dimension_numbers = #tpu.dot_dimension_numbers<[1], [0], [0], [1], [0, 0, 1, 1], [], []>} : vector<32x16xf32>, vector<16x8xf32>, vector<32x8xf32> -> vector<32x8xf32>
    %cst_32 = arith.constant 0.000000e+00 : f32
    %35 = vector.broadcast %cst_32 : f32 to vector<32x8xf32>
    %36 = arith.cmpf ogt, %34, %35 : vector<32x8xf32>
    %cst_33 = arith.constant 2.000000e-01 : f32
    %37 = vector.broadcast %cst_33 : f32 to vector<32x8xf32>
    %38 = arith.mulf %37, %34 : vector<32x8xf32>
    %39 = arith.select %36, %34, %38 : vector<32x8xi1>, vector<32x8xf32>
    %40 = tpu.concatenate %32, %39 in 1 : vector<32x8xf32>, vector<32x8xf32> -> vector<32x16xf32>
    %41 = arith.addf %22, %25 : vector<32x4xf32>
    %c0_34 = arith.constant 0 : index
    %c0_35 = arith.constant 0 : index
    %42 = vector.load %arg13[%c0_34, %c0_35] : memref<16x4xf32, #tpu.memory_space<vmem>>, vector<16x4xf32>
    %cst_36 = arith.constant dense<0.000000e+00> : vector<32x4xf32>
    %43 = tpu.matmul %40, %42, %cst_36 {dimension_numbers = #tpu.dot_dimension_numbers<[1], [0], [0], [1], [0, 0, 1, 1], [], []>} : vector<32x16xf32>, vector<16x4xf32>, vector<32x4xf32> -> vector<32x4xf32>
    %44 = arith.addf %41, %43 : vector<32x4xf32>
    %cst_37 = arith.constant 0.000000e+00 : f32
    %45 = vector.broadcast %cst_37 : f32 to vector<32x4xf32>
    %46 = arith.cmpf ogt, %44, %45 : vector<32x4xf32>
    %cst_38 = arith.constant 2.000000e-01 : f32
    %47 = vector.broadcast %cst_38 : f32 to vector<32x4xf32>
    %48 = arith.mulf %47, %44 : vector<32x4xf32>
    %49 = arith.select %46, %44, %48 : vector<32x4xi1>, vector<32x4xf32>
    %cst_39 = arith.constant dense<0xFF800000> : vector<4xf32>
    %50 = vector.multi_reduction <maximumf>, %49, %cst_39 [0] : vector<32x4xf32> to vector<4xf32>
    %51 = vector.shape_cast %50 : vector<4xf32> to vector<1x4xf32>
    %52 = vector.broadcast %51 : vector<1x4xf32> to vector<32x4xf32>
    %53 = arith.subf %49, %52 : vector<32x4xf32>
    %54 = math.exp %53 : vector<32x4xf32>
    %c0_40 = arith.constant 0 : index
    %c0_41 = arith.constant 0 : index
    %55 = vector.load %arg14[%c0_40, %c0_41] : memref<8x8xf32, #tpu.memory_space<vmem>>, vector<8x8xf32>
    %cst_42 = arith.constant dense<0.000000e+00> : vector<32x8xf32>
    %56 = tpu.matmul %39, %55, %cst_42 {dimension_numbers = #tpu.dot_dimension_numbers<[1], [0], [0], [1], [0, 0, 1, 1], [], []>} : vector<32x8xf32>, vector<8x8xf32>, vector<32x8xf32> -> vector<32x8xf32>
    %57 = arith.addf %26, %56 : vector<32x8xf32>
    %c0_43 = arith.constant 0 : index
    %c0_44 = arith.constant 0 : index
    %58 = vector.load %arg15[%c0_43, %c0_44] : memref<1x8xf32, #tpu.memory_space<vmem>>, vector<1x8xf32>
    %59 = vector.broadcast %58 : vector<1x8xf32> to vector<32x8xf32>
    %60 = arith.addf %57, %59 : vector<32x8xf32>
    %61 = vector.extract_strided_slice %54 {offsets = [0, 0], sizes = [32, 1], strides = [1, 1]} : vector<32x4xf32> to vector<32x1xf32>
    %62 = vector.broadcast %61 : vector<32x1xf32> to vector<32x8xf32>
    %63 = arith.mulf %60, %62 : vector<32x8xf32>
    %64 = vector.extract_strided_slice %54 {offsets = [0, 1], sizes = [32, 1], strides = [1, 1]} : vector<32x4xf32> to vector<32x1xf32>
    %65 = vector.broadcast %64 : vector<32x1xf32> to vector<32x8xf32>
    %66 = arith.mulf %60, %65 : vector<32x8xf32>
    %67 = vector.extract_strided_slice %54 {offsets = [0, 2], sizes = [32, 1], strides = [1, 1]} : vector<32x4xf32> to vector<32x1xf32>
    %68 = vector.broadcast %67 : vector<32x1xf32> to vector<32x8xf32>
    %69 = arith.mulf %60, %68 : vector<32x8xf32>
    %70 = vector.extract_strided_slice %54 {offsets = [0, 3], sizes = [32, 1], strides = [1, 1]} : vector<32x4xf32> to vector<32x1xf32>
    %71 = vector.broadcast %70 : vector<32x1xf32> to vector<32x8xf32>
    %72 = arith.mulf %60, %71 : vector<32x8xf32>
    %73 = tpu.concatenate %63, %66, %69, %72 in 1 : vector<32x8xf32>, vector<32x8xf32>, vector<32x8xf32>, vector<32x8xf32> -> vector<32x32xf32>
    %74 = arith.truncf %54 : vector<32x4xf32> to vector<32x4xbf16>
    %cst_45 = arith.constant dense<0.000000e+00> : vector<16x4xf32>
    %75 = tpu.matmul %1, %74, %cst_45 {dimension_numbers = #tpu.dot_dimension_numbers<[0], [0], [1], [1], [0, 1, 1, 1], [], []>} : vector<32x16xbf16>, vector<32x4xbf16>, vector<16x4xf32> -> vector<16x4xf32>
    %76 = arith.truncf %73 : vector<32x32xf32> to vector<32x32xbf16>
    %cst_46 = arith.constant dense<0.000000e+00> : vector<16x32xf32>
    %77 = tpu.matmul %1, %76, %cst_46 {dimension_numbers = #tpu.dot_dimension_numbers<[0], [0], [1], [1], [0, 1, 1, 1], [], []>} : vector<32x16xbf16>, vector<32x32xbf16>, vector<16x32xf32> -> vector<16x32xf32>
    %cst_47 = arith.constant 9.99999968E-21 : f32
    %78 = vector.broadcast %cst_47 : f32 to vector<16x4xf32>
    %79 = arith.maximumf %75, %78 : vector<16x4xf32>
    %80 = tpu.reciprocal %79 {approx = true} : vector<16x4xf32> -> vector<16x4xf32>
    %81 = vector.extract_strided_slice %77 {offsets = [0, 0], sizes = [16, 8], strides = [1, 1]} : vector<16x32xf32> to vector<16x8xf32>
    %82 = vector.extract_strided_slice %80 {offsets = [0, 0], sizes = [16, 1], strides = [1, 1]} : vector<16x4xf32> to vector<16x1xf32>
    %83 = vector.broadcast %82 : vector<16x1xf32> to vector<16x8xf32>
    %84 = arith.mulf %81, %83 : vector<16x8xf32>
    %85 = arith.addf %84, %16 : vector<16x8xf32>
    %86 = vector.extract_strided_slice %77 {offsets = [0, 8], sizes = [16, 8], strides = [1, 1]} : vector<16x32xf32> to vector<16x8xf32>
    %87 = vector.extract_strided_slice %80 {offsets = [0, 1], sizes = [16, 1], strides = [1, 1]} : vector<16x4xf32> to vector<16x1xf32>
    %88 = vector.broadcast %87 : vector<16x1xf32> to vector<16x8xf32>
    %89 = arith.mulf %86, %88 : vector<16x8xf32>
    %90 = arith.addf %89, %16 : vector<16x8xf32>
    %91 = vector.extract_strided_slice %77 {offsets = [0, 16], sizes = [16, 8], strides = [1, 1]} : vector<16x32xf32> to vector<16x8xf32>
    %92 = vector.extract_strided_slice %80 {offsets = [0, 2], sizes = [16, 1], strides = [1, 1]} : vector<16x4xf32> to vector<16x1xf32>
    %93 = vector.broadcast %92 : vector<16x1xf32> to vector<16x8xf32>
    %94 = arith.mulf %91, %93 : vector<16x8xf32>
    %95 = arith.addf %94, %16 : vector<16x8xf32>
    %96 = vector.extract_strided_slice %77 {offsets = [0, 24], sizes = [16, 8], strides = [1, 1]} : vector<16x32xf32> to vector<16x8xf32>
    %97 = vector.extract_strided_slice %80 {offsets = [0, 3], sizes = [16, 1], strides = [1, 1]} : vector<16x4xf32> to vector<16x1xf32>
    %98 = vector.broadcast %97 : vector<16x1xf32> to vector<16x8xf32>
    %99 = arith.mulf %96, %98 : vector<16x8xf32>
    %100 = arith.addf %99, %16 : vector<16x8xf32>
    %101 = tpu.concatenate %85, %90, %95, %100 in 1 : vector<16x8xf32>, vector<16x8xf32>, vector<16x8xf32>, vector<16x8xf32> -> vector<16x32xf32>
    %c0_48 = arith.constant 0 : index
    %c0_49 = arith.constant 0 : index
    %102 = vector.load %arg16[%c0_48, %c0_49] : memref<1x32xf32, #tpu.memory_space<vmem>>, vector<1x32xf32>
    %103 = vector.broadcast %102 : vector<1x32xf32> to vector<16x32xf32>
    %104 = arith.mulf %101, %103 : vector<16x32xf32>
    %c0_50 = arith.constant 0 : index
    %c0_51 = arith.constant 0 : index
    %105 = vector.load %arg17[%c0_50, %c0_51] : memref<1x32xf32, #tpu.memory_space<vmem>>, vector<1x32xf32>
    %106 = vector.broadcast %105 : vector<1x32xf32> to vector<16x32xf32>
    %107 = arith.addf %104, %106 : vector<16x32xf32>
    %cst_52 = arith.constant 0.000000e+00 : f32
    %108 = vector.broadcast %cst_52 : f32 to vector<16x32xf32>
    %109 = arith.maximumf %107, %108 : vector<16x32xf32>
    %c0_53 = arith.constant 0 : index
    %c0_54 = arith.constant 0 : index
    %110 = vector.load %arg18[%c0_53, %c0_54] : memref<32x8xf32, #tpu.memory_space<vmem>>, vector<32x8xf32>
    %cst_55 = arith.constant dense<0.000000e+00> : vector<16x8xf32>
    %111 = tpu.matmul %109, %110, %cst_55 {dimension_numbers = #tpu.dot_dimension_numbers<[1], [0], [0], [1], [0, 0, 1, 1], [], []>} : vector<16x32xf32>, vector<32x8xf32>, vector<16x8xf32> -> vector<16x8xf32>
    %c0_56 = arith.constant 0 : index
    %c0_57 = arith.constant 0 : index
    %112 = vector.load %arg19[%c0_56, %c0_57] : memref<1x8xf32, #tpu.memory_space<vmem>>, vector<1x8xf32>
    %113 = vector.broadcast %112 : vector<1x8xf32> to vector<16x8xf32>
    %114 = arith.addf %111, %113 : vector<16x8xf32>
    %c0_58 = arith.constant 0 : index
    %c0_59 = arith.constant 0 : index
    %115 = vector.load %arg22[%c0_58, %c0_59] : memref<8x4xf32, #tpu.memory_space<vmem>>, vector<8x4xf32>
    %cst_60 = arith.constant dense<0.000000e+00> : vector<16x4xf32>
    %116 = tpu.matmul %114, %115, %cst_60 {dimension_numbers = #tpu.dot_dimension_numbers<[1], [0], [0], [1], [0, 0, 1, 1], [], []>} : vector<16x8xf32>, vector<8x4xf32>, vector<16x4xf32> -> vector<16x4xf32>
    %c0_61 = arith.constant 0 : index
    %c0_62 = arith.constant 0 : index
    %117 = vector.load %arg23[%c0_61, %c0_62] : memref<8x12xf32, #tpu.memory_space<vmem>>, vector<8x12xf32>
    %cst_63 = arith.constant dense<0.000000e+00> : vector<16x12xf32>
    %118 = tpu.matmul %114, %117, %cst_63 {dimension_numbers = #tpu.dot_dimension_numbers<[1], [0], [0], [1], [0, 0, 1, 1], [], []>} : vector<16x8xf32>, vector<8x12xf32>, vector<16x12xf32> -> vector<16x12xf32>
    %119 = arith.truncf %116 : vector<16x4xf32> to vector<16x4xbf16>
    %cst_64 = arith.constant dense<0.000000e+00> : vector<32x4xf32>
    %120 = tpu.matmul %1, %119, %cst_64 {dimension_numbers = #tpu.dot_dimension_numbers<[1], [0], [0], [1], [0, 0, 1, 1], [], []>} : vector<32x16xbf16>, vector<16x4xbf16>, vector<32x4xf32> -> vector<32x4xf32>
    %121 = arith.truncf %118 : vector<16x12xf32> to vector<16x12xbf16>
    %cst_65 = arith.constant dense<0.000000e+00> : vector<32x12xf32>
    %122 = tpu.matmul %0, %121, %cst_65 {dimension_numbers = #tpu.dot_dimension_numbers<[1], [0], [0], [1], [0, 0, 1, 1], [], []>} : vector<32x16xbf16>, vector<16x12xbf16>, vector<32x12xf32> -> vector<32x12xf32>
    %123 = vector.extract_strided_slice %122 {offsets = [0, 0], sizes = [32, 4], strides = [1, 1]} : vector<32x12xf32> to vector<32x4xf32>
    %124 = vector.extract_strided_slice %122 {offsets = [0, 4], sizes = [32, 8], strides = [1, 1]} : vector<32x12xf32> to vector<32x8xf32>
    %c0_66 = arith.constant 0 : index
    %c0_67 = arith.constant 0 : index
    %125 = vector.load %arg20[%c0_66, %c0_67] : memref<32x8xf32, #tpu.memory_space<vmem>>, vector<32x8xf32>
    %cst_68 = arith.constant 0.000000e+00 : f32
    %126 = vector.broadcast %cst_68 : f32 to vector<32x8xf32>
    %127 = arith.cmpf ogt, %125, %126 : vector<32x8xf32>
    %cst_69 = arith.constant 2.000000e-01 : f32
    %128 = vector.broadcast %cst_69 : f32 to vector<32x8xf32>
    %129 = arith.mulf %128, %125 : vector<32x8xf32>
    %130 = arith.select %127, %125, %129 : vector<32x8xi1>, vector<32x8xf32>
    %c0_70 = arith.constant 0 : index
    %c0_71 = arith.constant 0 : index
    %131 = vector.load %arg21[%c0_70, %c0_71] : memref<16x8xf32, #tpu.memory_space<vmem>>, vector<16x8xf32>
    %cst_72 = arith.constant dense<0.000000e+00> : vector<32x8xf32>
    %132 = tpu.matmul %11, %131, %cst_72 {dimension_numbers = #tpu.dot_dimension_numbers<[1], [0], [0], [1], [0, 0, 1, 1], [], []>} : vector<32x16xf32>, vector<16x8xf32>, vector<32x8xf32> -> vector<32x8xf32>
    %cst_73 = arith.constant 0.000000e+00 : f32
    %133 = vector.broadcast %cst_73 : f32 to vector<32x8xf32>
    %134 = arith.cmpf ogt, %132, %133 : vector<32x8xf32>
    %cst_74 = arith.constant 2.000000e-01 : f32
    %135 = vector.broadcast %cst_74 : f32 to vector<32x8xf32>
    %136 = arith.mulf %135, %132 : vector<32x8xf32>
    %137 = arith.select %134, %132, %136 : vector<32x8xi1>, vector<32x8xf32>
    %138 = tpu.concatenate %130, %137 in 1 : vector<32x8xf32>, vector<32x8xf32> -> vector<32x16xf32>
    %139 = arith.addf %120, %123 : vector<32x4xf32>
    %c0_75 = arith.constant 0 : index
    %c0_76 = arith.constant 0 : index
    %140 = vector.load %arg24[%c0_75, %c0_76] : memref<16x4xf32, #tpu.memory_space<vmem>>, vector<16x4xf32>
    %cst_77 = arith.constant dense<0.000000e+00> : vector<32x4xf32>
    %141 = tpu.matmul %138, %140, %cst_77 {dimension_numbers = #tpu.dot_dimension_numbers<[1], [0], [0], [1], [0, 0, 1, 1], [], []>} : vector<32x16xf32>, vector<16x4xf32>, vector<32x4xf32> -> vector<32x4xf32>
    %142 = arith.addf %139, %141 : vector<32x4xf32>
    %cst_78 = arith.constant 0.000000e+00 : f32
    %143 = vector.broadcast %cst_78 : f32 to vector<32x4xf32>
    %144 = arith.cmpf ogt, %142, %143 : vector<32x4xf32>
    %cst_79 = arith.constant 2.000000e-01 : f32
    %145 = vector.broadcast %cst_79 : f32 to vector<32x4xf32>
    %146 = arith.mulf %145, %142 : vector<32x4xf32>
    %147 = arith.select %144, %142, %146 : vector<32x4xi1>, vector<32x4xf32>
    %cst_80 = arith.constant dense<0xFF800000> : vector<4xf32>
    %148 = vector.multi_reduction <maximumf>, %147, %cst_80 [0] : vector<32x4xf32> to vector<4xf32>
    %149 = vector.shape_cast %148 : vector<4xf32> to vector<1x4xf32>
    %150 = vector.broadcast %149 : vector<1x4xf32> to vector<32x4xf32>
    %151 = arith.subf %147, %150 : vector<32x4xf32>
    %152 = math.exp %151 : vector<32x4xf32>
    %c0_81 = arith.constant 0 : index
    %c0_82 = arith.constant 0 : index
    %153 = vector.load %arg25[%c0_81, %c0_82] : memref<8x8xf32, #tpu.memory_space<vmem>>, vector<8x8xf32>
    %cst_83 = arith.constant dense<0.000000e+00> : vector<32x8xf32>
    %154 = tpu.matmul %137, %153, %cst_83 {dimension_numbers = #tpu.dot_dimension_numbers<[1], [0], [0], [1], [0, 0, 1, 1], [], []>} : vector<32x8xf32>, vector<8x8xf32>, vector<32x8xf32> -> vector<32x8xf32>
    %155 = arith.addf %124, %154 : vector<32x8xf32>
    %c0_84 = arith.constant 0 : index
    %c0_85 = arith.constant 0 : index
    %156 = vector.load %arg26[%c0_84, %c0_85] : memref<1x8xf32, #tpu.memory_space<vmem>>, vector<1x8xf32>
    %157 = vector.broadcast %156 : vector<1x8xf32> to vector<32x8xf32>
    %158 = arith.addf %155, %157 : vector<32x8xf32>
    %159 = vector.extract_strided_slice %152 {offsets = [0, 0], sizes = [32, 1], strides = [1, 1]} : vector<32x4xf32> to vector<32x1xf32>
    %160 = vector.broadcast %159 : vector<32x1xf32> to vector<32x8xf32>
    %161 = arith.mulf %158, %160 : vector<32x8xf32>
    %162 = vector.extract_strided_slice %152 {offsets = [0, 1], sizes = [32, 1], strides = [1, 1]} : vector<32x4xf32> to vector<32x1xf32>
    %163 = vector.broadcast %162 : vector<32x1xf32> to vector<32x8xf32>
    %164 = arith.mulf %158, %163 : vector<32x8xf32>
    %165 = vector.extract_strided_slice %152 {offsets = [0, 2], sizes = [32, 1], strides = [1, 1]} : vector<32x4xf32> to vector<32x1xf32>
    %166 = vector.broadcast %165 : vector<32x1xf32> to vector<32x8xf32>
    %167 = arith.mulf %158, %166 : vector<32x8xf32>
    %168 = vector.extract_strided_slice %152 {offsets = [0, 3], sizes = [32, 1], strides = [1, 1]} : vector<32x4xf32> to vector<32x1xf32>
    %169 = vector.broadcast %168 : vector<32x1xf32> to vector<32x8xf32>
    %170 = arith.mulf %158, %169 : vector<32x8xf32>
    %171 = tpu.concatenate %161, %164, %167, %170 in 1 : vector<32x8xf32>, vector<32x8xf32>, vector<32x8xf32>, vector<32x8xf32> -> vector<32x32xf32>
    %172 = arith.truncf %152 : vector<32x4xf32> to vector<32x4xbf16>
    %cst_86 = arith.constant dense<0.000000e+00> : vector<16x4xf32>
    %173 = tpu.matmul %1, %172, %cst_86 {dimension_numbers = #tpu.dot_dimension_numbers<[0], [0], [1], [1], [0, 1, 1, 1], [], []>} : vector<32x16xbf16>, vector<32x4xbf16>, vector<16x4xf32> -> vector<16x4xf32>
    %174 = arith.truncf %171 : vector<32x32xf32> to vector<32x32xbf16>
    %cst_87 = arith.constant dense<0.000000e+00> : vector<16x32xf32>
    %175 = tpu.matmul %1, %174, %cst_87 {dimension_numbers = #tpu.dot_dimension_numbers<[0], [0], [1], [1], [0, 1, 1, 1], [], []>} : vector<32x16xbf16>, vector<32x32xbf16>, vector<16x32xf32> -> vector<16x32xf32>
    %cst_88 = arith.constant 9.99999968E-21 : f32
    %176 = vector.broadcast %cst_88 : f32 to vector<16x4xf32>
    %177 = arith.maximumf %173, %176 : vector<16x4xf32>
    %178 = tpu.reciprocal %177 {approx = true} : vector<16x4xf32> -> vector<16x4xf32>
    %179 = vector.extract_strided_slice %175 {offsets = [0, 0], sizes = [16, 8], strides = [1, 1]} : vector<16x32xf32> to vector<16x8xf32>
    %180 = vector.extract_strided_slice %178 {offsets = [0, 0], sizes = [16, 1], strides = [1, 1]} : vector<16x4xf32> to vector<16x1xf32>
    %181 = vector.broadcast %180 : vector<16x1xf32> to vector<16x8xf32>
    %182 = arith.mulf %179, %181 : vector<16x8xf32>
    %183 = arith.addf %182, %114 : vector<16x8xf32>
    %184 = vector.extract_strided_slice %175 {offsets = [0, 8], sizes = [16, 8], strides = [1, 1]} : vector<16x32xf32> to vector<16x8xf32>
    %185 = vector.extract_strided_slice %178 {offsets = [0, 1], sizes = [16, 1], strides = [1, 1]} : vector<16x4xf32> to vector<16x1xf32>
    %186 = vector.broadcast %185 : vector<16x1xf32> to vector<16x8xf32>
    %187 = arith.mulf %184, %186 : vector<16x8xf32>
    %188 = arith.addf %187, %114 : vector<16x8xf32>
    %189 = vector.extract_strided_slice %175 {offsets = [0, 16], sizes = [16, 8], strides = [1, 1]} : vector<16x32xf32> to vector<16x8xf32>
    %190 = vector.extract_strided_slice %178 {offsets = [0, 2], sizes = [16, 1], strides = [1, 1]} : vector<16x4xf32> to vector<16x1xf32>
    %191 = vector.broadcast %190 : vector<16x1xf32> to vector<16x8xf32>
    %192 = arith.mulf %189, %191 : vector<16x8xf32>
    %193 = arith.addf %192, %114 : vector<16x8xf32>
    %194 = vector.extract_strided_slice %175 {offsets = [0, 24], sizes = [16, 8], strides = [1, 1]} : vector<16x32xf32> to vector<16x8xf32>
    %195 = vector.extract_strided_slice %178 {offsets = [0, 3], sizes = [16, 1], strides = [1, 1]} : vector<16x4xf32> to vector<16x1xf32>
    %196 = vector.broadcast %195 : vector<16x1xf32> to vector<16x8xf32>
    %197 = arith.mulf %194, %196 : vector<16x8xf32>
    %198 = arith.addf %197, %114 : vector<16x8xf32>
    %199 = tpu.concatenate %183, %188, %193, %198 in 1 : vector<16x8xf32>, vector<16x8xf32>, vector<16x8xf32>, vector<16x8xf32> -> vector<16x32xf32>
    %c0_89 = arith.constant 0 : index
    %c0_90 = arith.constant 0 : index
    %200 = vector.load %arg27[%c0_89, %c0_90] : memref<1x32xf32, #tpu.memory_space<vmem>>, vector<1x32xf32>
    %201 = vector.broadcast %200 : vector<1x32xf32> to vector<16x32xf32>
    %202 = arith.mulf %199, %201 : vector<16x32xf32>
    %c0_91 = arith.constant 0 : index
    %c0_92 = arith.constant 0 : index
    %203 = vector.load %arg28[%c0_91, %c0_92] : memref<1x32xf32, #tpu.memory_space<vmem>>, vector<1x32xf32>
    %204 = vector.broadcast %203 : vector<1x32xf32> to vector<16x32xf32>
    %205 = arith.addf %202, %204 : vector<16x32xf32>
    %cst_93 = arith.constant 0.000000e+00 : f32
    %206 = vector.broadcast %cst_93 : f32 to vector<16x32xf32>
    %207 = arith.maximumf %205, %206 : vector<16x32xf32>
    %c0_94 = arith.constant 0 : index
    %c0_95 = arith.constant 0 : index
    %208 = vector.load %arg29[%c0_94, %c0_95] : memref<32x8xf32, #tpu.memory_space<vmem>>, vector<32x8xf32>
    %cst_96 = arith.constant dense<0.000000e+00> : vector<16x8xf32>
    %209 = tpu.matmul %207, %208, %cst_96 {dimension_numbers = #tpu.dot_dimension_numbers<[1], [0], [0], [1], [0, 0, 1, 1], [], []>} : vector<16x32xf32>, vector<32x8xf32>, vector<16x8xf32> -> vector<16x8xf32>
    %c0_97 = arith.constant 0 : index
    %c0_98 = arith.constant 0 : index
    %210 = vector.load %arg30[%c0_97, %c0_98] : memref<1x8xf32, #tpu.memory_space<vmem>>, vector<1x8xf32>
    %211 = vector.broadcast %210 : vector<1x8xf32> to vector<16x8xf32>
    %212 = arith.addf %209, %211 : vector<16x8xf32>
    %c0_99 = arith.constant 0 : index
    %c0_100 = arith.constant 0 : index
    %213 = vector.load %arg33[%c0_99, %c0_100] : memref<8x4xf32, #tpu.memory_space<vmem>>, vector<8x4xf32>
    %cst_101 = arith.constant dense<0.000000e+00> : vector<16x4xf32>
    %214 = tpu.matmul %212, %213, %cst_101 {dimension_numbers = #tpu.dot_dimension_numbers<[1], [0], [0], [1], [0, 0, 1, 1], [], []>} : vector<16x8xf32>, vector<8x4xf32>, vector<16x4xf32> -> vector<16x4xf32>
    %c0_102 = arith.constant 0 : index
    %c0_103 = arith.constant 0 : index
    %215 = vector.load %arg34[%c0_102, %c0_103] : memref<8x12xf32, #tpu.memory_space<vmem>>, vector<8x12xf32>
    %cst_104 = arith.constant dense<0.000000e+00> : vector<16x12xf32>
    %216 = tpu.matmul %212, %215, %cst_104 {dimension_numbers = #tpu.dot_dimension_numbers<[1], [0], [0], [1], [0, 0, 1, 1], [], []>} : vector<16x8xf32>, vector<8x12xf32>, vector<16x12xf32> -> vector<16x12xf32>
    %217 = arith.truncf %214 : vector<16x4xf32> to vector<16x4xbf16>
    %cst_105 = arith.constant dense<0.000000e+00> : vector<32x4xf32>
    %218 = tpu.matmul %1, %217, %cst_105 {dimension_numbers = #tpu.dot_dimension_numbers<[1], [0], [0], [1], [0, 0, 1, 1], [], []>} : vector<32x16xbf16>, vector<16x4xbf16>, vector<32x4xf32> -> vector<32x4xf32>
    %219 = arith.truncf %216 : vector<16x12xf32> to vector<16x12xbf16>
    %cst_106 = arith.constant dense<0.000000e+00> : vector<32x12xf32>
    %220 = tpu.matmul %0, %219, %cst_106 {dimension_numbers = #tpu.dot_dimension_numbers<[1], [0], [0], [1], [0, 0, 1, 1], [], []>} : vector<32x16xbf16>, vector<16x12xbf16>, vector<32x12xf32> -> vector<32x12xf32>
    %221 = vector.extract_strided_slice %220 {offsets = [0, 0], sizes = [32, 4], strides = [1, 1]} : vector<32x12xf32> to vector<32x4xf32>
    %222 = vector.extract_strided_slice %220 {offsets = [0, 4], sizes = [32, 8], strides = [1, 1]} : vector<32x12xf32> to vector<32x8xf32>
    %c0_107 = arith.constant 0 : index
    %c0_108 = arith.constant 0 : index
    %223 = vector.load %arg31[%c0_107, %c0_108] : memref<32x8xf32, #tpu.memory_space<vmem>>, vector<32x8xf32>
    %cst_109 = arith.constant 0.000000e+00 : f32
    %224 = vector.broadcast %cst_109 : f32 to vector<32x8xf32>
    %225 = arith.cmpf ogt, %223, %224 : vector<32x8xf32>
    %cst_110 = arith.constant 2.000000e-01 : f32
    %226 = vector.broadcast %cst_110 : f32 to vector<32x8xf32>
    %227 = arith.mulf %226, %223 : vector<32x8xf32>
    %228 = arith.select %225, %223, %227 : vector<32x8xi1>, vector<32x8xf32>
    %c0_111 = arith.constant 0 : index
    %c0_112 = arith.constant 0 : index
    %229 = vector.load %arg32[%c0_111, %c0_112] : memref<16x8xf32, #tpu.memory_space<vmem>>, vector<16x8xf32>
    %cst_113 = arith.constant dense<0.000000e+00> : vector<32x8xf32>
    %230 = tpu.matmul %11, %229, %cst_113 {dimension_numbers = #tpu.dot_dimension_numbers<[1], [0], [0], [1], [0, 0, 1, 1], [], []>} : vector<32x16xf32>, vector<16x8xf32>, vector<32x8xf32> -> vector<32x8xf32>
    %cst_114 = arith.constant 0.000000e+00 : f32
    %231 = vector.broadcast %cst_114 : f32 to vector<32x8xf32>
    %232 = arith.cmpf ogt, %230, %231 : vector<32x8xf32>
    %cst_115 = arith.constant 2.000000e-01 : f32
    %233 = vector.broadcast %cst_115 : f32 to vector<32x8xf32>
    %234 = arith.mulf %233, %230 : vector<32x8xf32>
    %235 = arith.select %232, %230, %234 : vector<32x8xi1>, vector<32x8xf32>
    %236 = tpu.concatenate %228, %235 in 1 : vector<32x8xf32>, vector<32x8xf32> -> vector<32x16xf32>
    %237 = arith.addf %218, %221 : vector<32x4xf32>
    %c0_116 = arith.constant 0 : index
    %c0_117 = arith.constant 0 : index
    %238 = vector.load %arg35[%c0_116, %c0_117] : memref<16x4xf32, #tpu.memory_space<vmem>>, vector<16x4xf32>
    %cst_118 = arith.constant dense<0.000000e+00> : vector<32x4xf32>
    %239 = tpu.matmul %236, %238, %cst_118 {dimension_numbers = #tpu.dot_dimension_numbers<[1], [0], [0], [1], [0, 0, 1, 1], [], []>} : vector<32x16xf32>, vector<16x4xf32>, vector<32x4xf32> -> vector<32x4xf32>
    %240 = arith.addf %237, %239 : vector<32x4xf32>
    %cst_119 = arith.constant 0.000000e+00 : f32
    %241 = vector.broadcast %cst_119 : f32 to vector<32x4xf32>
    %242 = arith.cmpf ogt, %240, %241 : vector<32x4xf32>
    %cst_120 = arith.constant 2.000000e-01 : f32
    %243 = vector.broadcast %cst_120 : f32 to vector<32x4xf32>
    %244 = arith.mulf %243, %240 : vector<32x4xf32>
    %245 = arith.select %242, %240, %244 : vector<32x4xi1>, vector<32x4xf32>
    %cst_121 = arith.constant dense<0xFF800000> : vector<4xf32>
    %246 = vector.multi_reduction <maximumf>, %245, %cst_121 [0] : vector<32x4xf32> to vector<4xf32>
    %247 = vector.shape_cast %246 : vector<4xf32> to vector<1x4xf32>
    %248 = vector.broadcast %247 : vector<1x4xf32> to vector<32x4xf32>
    %249 = arith.subf %245, %248 : vector<32x4xf32>
    %250 = math.exp %249 : vector<32x4xf32>
    %c0_122 = arith.constant 0 : index
    %c0_123 = arith.constant 0 : index
    %251 = vector.load %arg36[%c0_122, %c0_123] : memref<8x8xf32, #tpu.memory_space<vmem>>, vector<8x8xf32>
    %cst_124 = arith.constant dense<0.000000e+00> : vector<32x8xf32>
    %252 = tpu.matmul %235, %251, %cst_124 {dimension_numbers = #tpu.dot_dimension_numbers<[1], [0], [0], [1], [0, 0, 1, 1], [], []>} : vector<32x8xf32>, vector<8x8xf32>, vector<32x8xf32> -> vector<32x8xf32>
    %253 = arith.addf %222, %252 : vector<32x8xf32>
    %c0_125 = arith.constant 0 : index
    %c0_126 = arith.constant 0 : index
    %254 = vector.load %arg37[%c0_125, %c0_126] : memref<1x8xf32, #tpu.memory_space<vmem>>, vector<1x8xf32>
    %255 = vector.broadcast %254 : vector<1x8xf32> to vector<32x8xf32>
    %256 = arith.addf %253, %255 : vector<32x8xf32>
    %257 = vector.extract_strided_slice %250 {offsets = [0, 0], sizes = [32, 1], strides = [1, 1]} : vector<32x4xf32> to vector<32x1xf32>
    %258 = vector.broadcast %257 : vector<32x1xf32> to vector<32x8xf32>
    %259 = arith.mulf %256, %258 : vector<32x8xf32>
    %260 = vector.extract_strided_slice %250 {offsets = [0, 1], sizes = [32, 1], strides = [1, 1]} : vector<32x4xf32> to vector<32x1xf32>
    %261 = vector.broadcast %260 : vector<32x1xf32> to vector<32x8xf32>
    %262 = arith.mulf %256, %261 : vector<32x8xf32>
    %263 = vector.extract_strided_slice %250 {offsets = [0, 2], sizes = [32, 1], strides = [1, 1]} : vector<32x4xf32> to vector<32x1xf32>
    %264 = vector.broadcast %263 : vector<32x1xf32> to vector<32x8xf32>
    %265 = arith.mulf %256, %264 : vector<32x8xf32>
    %266 = vector.extract_strided_slice %250 {offsets = [0, 3], sizes = [32, 1], strides = [1, 1]} : vector<32x4xf32> to vector<32x1xf32>
    %267 = vector.broadcast %266 : vector<32x1xf32> to vector<32x8xf32>
    %268 = arith.mulf %256, %267 : vector<32x8xf32>
    %269 = tpu.concatenate %259, %262, %265, %268 in 1 : vector<32x8xf32>, vector<32x8xf32>, vector<32x8xf32>, vector<32x8xf32> -> vector<32x32xf32>
    %270 = arith.truncf %250 : vector<32x4xf32> to vector<32x4xbf16>
    %cst_127 = arith.constant dense<0.000000e+00> : vector<16x4xf32>
    %271 = tpu.matmul %1, %270, %cst_127 {dimension_numbers = #tpu.dot_dimension_numbers<[0], [0], [1], [1], [0, 1, 1, 1], [], []>} : vector<32x16xbf16>, vector<32x4xbf16>, vector<16x4xf32> -> vector<16x4xf32>
    %272 = arith.truncf %269 : vector<32x32xf32> to vector<32x32xbf16>
    %cst_128 = arith.constant dense<0.000000e+00> : vector<16x32xf32>
    %273 = tpu.matmul %1, %272, %cst_128 {dimension_numbers = #tpu.dot_dimension_numbers<[0], [0], [1], [1], [0, 1, 1, 1], [], []>} : vector<32x16xbf16>, vector<32x32xbf16>, vector<16x32xf32> -> vector<16x32xf32>
    %cst_129 = arith.constant 9.99999968E-21 : f32
    %274 = vector.broadcast %cst_129 : f32 to vector<16x4xf32>
    %275 = arith.maximumf %271, %274 : vector<16x4xf32>
    %276 = tpu.reciprocal %275 {approx = true} : vector<16x4xf32> -> vector<16x4xf32>
    %277 = vector.extract_strided_slice %273 {offsets = [0, 0], sizes = [16, 8], strides = [1, 1]} : vector<16x32xf32> to vector<16x8xf32>
    %278 = vector.extract_strided_slice %276 {offsets = [0, 0], sizes = [16, 1], strides = [1, 1]} : vector<16x4xf32> to vector<16x1xf32>
    %279 = vector.broadcast %278 : vector<16x1xf32> to vector<16x8xf32>
    %280 = arith.mulf %277, %279 : vector<16x8xf32>
    %281 = arith.addf %280, %212 : vector<16x8xf32>
    %282 = vector.extract_strided_slice %273 {offsets = [0, 8], sizes = [16, 8], strides = [1, 1]} : vector<16x32xf32> to vector<16x8xf32>
    %283 = vector.extract_strided_slice %276 {offsets = [0, 1], sizes = [16, 1], strides = [1, 1]} : vector<16x4xf32> to vector<16x1xf32>
    %284 = vector.broadcast %283 : vector<16x1xf32> to vector<16x8xf32>
    %285 = arith.mulf %282, %284 : vector<16x8xf32>
    %286 = arith.addf %285, %212 : vector<16x8xf32>
    %287 = vector.extract_strided_slice %273 {offsets = [0, 16], sizes = [16, 8], strides = [1, 1]} : vector<16x32xf32> to vector<16x8xf32>
    %288 = vector.extract_strided_slice %276 {offsets = [0, 2], sizes = [16, 1], strides = [1, 1]} : vector<16x4xf32> to vector<16x1xf32>
    %289 = vector.broadcast %288 : vector<16x1xf32> to vector<16x8xf32>
    %290 = arith.mulf %287, %289 : vector<16x8xf32>
    %291 = arith.addf %290, %212 : vector<16x8xf32>
    %292 = vector.extract_strided_slice %273 {offsets = [0, 24], sizes = [16, 8], strides = [1, 1]} : vector<16x32xf32> to vector<16x8xf32>
    %293 = vector.extract_strided_slice %276 {offsets = [0, 3], sizes = [16, 1], strides = [1, 1]} : vector<16x4xf32> to vector<16x1xf32>
    %294 = vector.broadcast %293 : vector<16x1xf32> to vector<16x8xf32>
    %295 = arith.mulf %292, %294 : vector<16x8xf32>
    %296 = arith.addf %295, %212 : vector<16x8xf32>
    %297 = tpu.concatenate %281, %286, %291, %296 in 1 : vector<16x8xf32>, vector<16x8xf32>, vector<16x8xf32>, vector<16x8xf32> -> vector<16x32xf32>
    %c0_130 = arith.constant 0 : index
    %c0_131 = arith.constant 0 : index
    %298 = vector.load %arg40[%c0_130, %c0_131] : memref<16x32xf32, #tpu.memory_space<vmem>>, vector<16x32xf32>
    tpu.vector_store %arg40[%c0_130, %c0_131], %297 {strides = array<i32>} : memref<16x32xf32, #tpu.memory_space<vmem>>, vector<16x32xf32>,
    return
  }
  func.func @transform_0(%arg0: i32) -> (i32, i32) {
    %c0_i32 = arith.constant 0 : i32
    %c0_i32_0 = arith.constant 0 : i32
    %c0_i32_1 = arith.constant 0 : i32
    return %c0_i32, %c0_i32_0 : i32, i32
  }
  func.func @transform_1(%arg0: i32) -> (i32, i32) {
    %c0_i32 = arith.constant 0 : i32
    %c0_i32_0 = arith.constant 0 : i32
    %c0_i32_1 = arith.constant 0 : i32
    return %c0_i32, %c0_i32_0 : i32, i32
  }
  func.func @transform_2(%arg0: i32) -> (i32, i32) {
    %c0_i32 = arith.constant 0 : i32
    %c0_i32_0 = arith.constant 0 : i32
    %c0_i32_1 = arith.constant 0 : i32
    return %c0_i32, %c0_i32_0 : i32, i32
  }
  func.func @transform_3(%arg0: i32) -> (i32, i32) {
    %c0_i32 = arith.constant 0 : i32
    %c0_i32_0 = arith.constant 0 : i32
    %c0_i32_1 = arith.constant 0 : i32
    return %c0_i32, %c0_i32_0 : i32, i32
  }
  func.func @transform_4(%arg0: i32) -> (i32, i32) {
    %c0_i32 = arith.constant 0 : i32
    %c0_i32_0 = arith.constant 0 : i32
    %c0_i32_1 = arith.constant 0 : i32
    return %c0_i32, %c0_i32_0 : i32, i32
  }
  func.func @transform_5(%arg0: i32) -> (i32, i32) {
    %c0_i32 = arith.constant 0 : i32
    %c0_i32_0 = arith.constant 0 : i32
    %c0_i32_1 = arith.constant 0 : i32
    return %c0_i32, %c0_i32_0 : i32, i32
  }
  func.func @transform_6(%arg0: i32) -> (i32, i32) {
    %c0_i32 = arith.constant 0 : i32
    %c0_i32_0 = arith.constant 0 : i32
    %c0_i32_1 = arith.constant 0 : i32
    return %c0_i32, %c0_i32_0 : i32, i32
  }
  func.func @transform_7(%arg0: i32) -> (i32, i32) {
    %c0_i32 = arith.constant 0 : i32
    %c0_i32_0 = arith.constant 0 : i32
    %c0_i32_1 = arith.constant 0 : i32
    return %c0_i32, %c0_i32_0 : i32, i32
  }
  func.func @transform_8(%arg0: i32) -> (i32, i32) {
    %c0_i32 = arith.constant 0 : i32
    %c0_i32_0 = arith.constant 0 : i32
    %c0_i32_1 = arith.constant 0 : i32
    return %c0_i32, %c0_i32_0 : i32, i32
  }
  func.func @transform_9(%arg0: i32) -> (i32, i32) {
    %c0_i32 = arith.constant 0 : i32
    %c0_i32_0 = arith.constant 0 : i32
    %c0_i32_1 = arith.constant 0 : i32
    return %c0_i32, %c0_i32_0 : i32, i32
  }
  func.func @transform_10(%arg0: i32) -> (i32, i32) {
    %c0_i32 = arith.constant 0 : i32
    %c0_i32_0 = arith.constant 0 : i32
    %c0_i32_1 = arith.constant 0 : i32
    return %c0_i32, %c0_i32_0 : i32, i32
  }
  func.func @transform_11(%arg0: i32) -> (i32, i32) {
    %c0_i32 = arith.constant 0 : i32
    %c0_i32_0 = arith.constant 0 : i32
    %c0_i32_1 = arith.constant 0 : i32
    return %c0_i32, %c0_i32_0 : i32, i32
  }
  func.func @transform_12(%arg0: i32) -> (i32, i32) {
    %c0_i32 = arith.constant 0 : i32
    %c0_i32_0 = arith.constant 0 : i32
    %c0_i32_1 = arith.constant 0 : i32
    return %c0_i32, %c0_i32_0 : i32, i32
  }
  func.func @transform_13(%arg0: i32) -> (i32, i32) {
    %c0_i32 = arith.constant 0 : i32
    %c0_i32_0 = arith.constant 0 : i32
    %c0_i32_1 = arith.constant 0 : i32
    return %c0_i32, %c0_i32_0 : i32, i32
  }
  func.func @transform_14(%arg0: i32) -> (i32, i32) {
    %c0_i32 = arith.constant 0 : i32
    %c0_i32_0 = arith.constant 0 : i32
    %c0_i32_1 = arith.constant 0 : i32
    return %c0_i32, %c0_i32_0 : i32, i32
  }
  func.func @transform_15(%arg0: i32) -> (i32, i32) {
    %c0_i32 = arith.constant 0 : i32
    %c0_i32_0 = arith.constant 0 : i32
    %c0_i32_1 = arith.constant 0 : i32
    return %c0_i32, %c0_i32_0 : i32, i32
  }
  func.func @transform_16(%arg0: i32) -> (i32, i32) {
    %c0_i32 = arith.constant 0 : i32
    %c0_i32_0 = arith.constant 0 : i32
    %c0_i32_1 = arith.constant 0 : i32
    return %c0_i32, %c0_i32_0 : i32, i32
  }
  func.func @transform_17(%arg0: i32) -> (i32, i32) {
    %c0_i32 = arith.constant 0 : i32
    %c0_i32_0 = arith.constant 0 : i32
    %c0_i32_1 = arith.constant 0 : i32
    return %c0_i32, %c0_i32_0 : i32, i32
  }
  func.func @transform_18(%arg0: i32) -> (i32, i32) {
    %c0_i32 = arith.constant 0 : i32
    %c0_i32_0 = arith.constant 0 : i32
    %c0_i32_1 = arith.constant 0 : i32
    return %c0_i32, %c0_i32_0 : i32, i32
  }
  func.func @transform_19(%arg0: i32) -> (i32, i32) {
    %c0_i32 = arith.constant 0 : i32
    %c0_i32_0 = arith.constant 0 : i32
    %c0_i32_1 = arith.constant 0 : i32
    return %c0_i32, %c0_i32_0 : i32, i32
  }
  func.func @transform_20(%arg0: i32) -> (i32, i32) {
    %c0_i32 = arith.constant 0 : i32
    %c0_i32_0 = arith.constant 0 : i32
    %c0_i32_1 = arith.constant 0 : i32
    return %c0_i32, %c0_i32_0 : i32, i32
  }
  func.func @transform_21(%arg0: i32) -> (i32, i32) {
    %c0_i32 = arith.constant 0 : i32
    %c0_i32_0 = arith.constant 0 : i32
    %c0_i32_1 = arith.constant 0 : i32
    return %c0_i32, %c0_i32_0 : i32, i32
  }
  func.func @transform_22(%arg0: i32) -> (i32, i32) {
    %c0_i32 = arith.constant 0 : i32
    %c0_i32_0 = arith.constant 0 : i32
    %c0_i32_1 = arith.constant 0 : i32
    return %c0_i32, %c0_i32_0 : i32, i32
  }
  func.func @transform_23(%arg0: i32) -> (i32, i32) {
    %c0_i32 = arith.constant 0 : i32
    %c0_i32_0 = arith.constant 0 : i32
    %c0_i32_1 = arith.constant 0 : i32
    return %c0_i32, %c0_i32_0 : i32, i32
  }
  func.func @transform_24(%arg0: i32) -> (i32, i32) {
    %c0_i32 = arith.constant 0 : i32
    %c0_i32_0 = arith.constant 0 : i32
    %c0_i32_1 = arith.constant 0 : i32
    return %c0_i32, %c0_i32_0 : i32, i32
  }
  func.func @transform_25(%arg0: i32) -> (i32, i32) {
    %c0_i32 = arith.constant 0 : i32
    %c0_i32_0 = arith.constant 0 : i32
    %c0_i32_1 = arith.constant 0 : i32
    return %c0_i32, %c0_i32_0 : i32, i32
  }
  func.func @transform_26(%arg0: i32) -> (i32, i32) {
    %c0_i32 = arith.constant 0 : i32
    %c0_i32_0 = arith.constant 0 : i32
    %c0_i32_1 = arith.constant 0 : i32
    return %c0_i32, %c0_i32_0 : i32, i32
  }
  func.func @transform_27(%arg0: i32) -> (i32, i32) {
    %c0_i32 = arith.constant 0 : i32
    %c0_i32_0 = arith.constant 0 : i32
    %c0_i32_1 = arith.constant 0 : i32
    return %c0_i32, %c0_i32_0 : i32, i32
  }
  func.func @transform_28(%arg0: i32) -> (i32, i32) {
    %c0_i32 = arith.constant 0 : i32
    %c0_i32_0 = arith.constant 0 : i32
    %c0_i32_1 = arith.constant 0 : i32
    return %c0_i32, %c0_i32_0 : i32, i32
  }
  func.func @transform_29(%arg0: i32) -> (i32, i32) {
    %c0_i32 = arith.constant 0 : i32
    %c0_i32_0 = arith.constant 0 : i32
    %c0_i32_1 = arith.constant 0 : i32
    return %c0_i32, %c0_i32_0 : i32, i32
  }
  func.func @transform_30(%arg0: i32) -> (i32, i32) {
    %c0_i32 = arith.constant 0 : i32
    %c0_i32_0 = arith.constant 0 : i32
    %c0_i32_1 = arith.constant 0 : i32
    return %c0_i32, %c0_i32_0 : i32, i32
  }
  func.func @transform_31(%arg0: i32) -> (i32, i32) {
    %c0_i32 = arith.constant 0 : i32
    %c0_i32_0 = arith.constant 0 : i32
    %c0_i32_1 = arith.constant 0 : i32
    return %c0_i32, %c0_i32_0 : i32, i32
  }
  func.func @transform_32(%arg0: i32) -> (i32, i32) {
    %c0_i32 = arith.constant 0 : i32
    %c0_i32_0 = arith.constant 0 : i32
    %c0_i32_1 = arith.constant 0 : i32
    return %c0_i32, %c0_i32_0 : i32, i32
  }
  func.func @transform_33(%arg0: i32) -> (i32, i32) {
    %c0_i32 = arith.constant 0 : i32
    %c0_i32_0 = arith.constant 0 : i32
    %c0_i32_1 = arith.constant 0 : i32
    return %c0_i32, %c0_i32_0 : i32, i32
  }
  func.func @transform_34(%arg0: i32) -> (i32, i32) {
    %c0_i32 = arith.constant 0 : i32
    %c0_i32_0 = arith.constant 0 : i32
    %c0_i32_1 = arith.constant 0 : i32
    return %c0_i32, %c0_i32_0 : i32, i32
  }
  func.func @transform_35(%arg0: i32) -> (i32, i32) {
    %c0_i32 = arith.constant 0 : i32
    %c0_i32_0 = arith.constant 0 : i32
    %c0_i32_1 = arith.constant 0 : i32
    return %c0_i32, %c0_i32_0 : i32, i32
  }
  func.func @transform_36(%arg0: i32) -> (i32, i32) {
    %c0_i32 = arith.constant 0 : i32
    %c0_i32_0 = arith.constant 0 : i32
    %c0_i32_1 = arith.constant 0 : i32
    return %c0_i32, %c0_i32_0 : i32, i32
  }
  func.func @transform_37(%arg0: i32) -> (i32, i32) {
    %c0_i32 = arith.constant 0 : i32
    %c0_i32_0 = arith.constant 0 : i32
    %c0_i32_1 = arith.constant 0 : i32
    return %c0_i32, %c0_i32_0 : i32, i32
  }
  func.func @transform_38(%arg0: i32) -> (i32, i32) {
    %c0_i32 = arith.constant 0 : i32
    %c0_i32_0 = arith.constant 0 : i32
    %c0_i32_1 = arith.constant 0 : i32
    return %c0_i32, %c0_i32_0 : i32, i32
  }
  func.func @transform_39(%arg0: i32) -> (i32, i32) {
    %c0_i32 = arith.constant 0 : i32
    %c0_i32_0 = arith.constant 0 : i32
    %c0_i32_1 = arith.constant 0 : i32
    return %c0_i32, %c0_i32_0 : i32, i32
  }
}

</mosaic_0001>

<llo_original>
// kernel: tpu_custom_call.1
$region0: #{tpu_custom_call.1}
  #allocation0 [shape = 'u32[]', space=smem, size = 0x4, offset = 0x4, fixed_abs, tag = 'smem constant byte address 0x4 - core index']
  #allocation1 [shape = 'u32[144,128]{1,0:T(1,128)}', space=vmem, size = 0x12000, scoped, tag = 'internal scratch']
  %s0 = inlined_call_operand.smem [shape: u32[40], index: -1, kind: input, shape index: {}]
  %s1 = sld [smem:[%s0]]
  %s2 = scalar_lea.smem %s0, 1
  %s3 = sld [smem:[%s2]]
  %s4 = scalar_lea.smem %s0, 2
  %s5 = sld [smem:[%s4]]
  %s6 = scalar_lea.smem %s0, 3
  %s7 = sld [smem:[%s6]]
  %s8 = scalar_lea.smem %s0, 4
  %s9 = sld [smem:[%s8]]
  %s10 = scalar_lea.smem %s0, 5
  %s11 = sld [smem:[%s10]]
  %s12 = scalar_lea.smem %s0, 6
  %s13 = sld [smem:[%s12]]
  %s14 = scalar_lea.smem %s0, 7
  %s15 = sld [smem:[%s14]]
  %s16 = scalar_lea.smem %s0, 8
  %s17 = sld [smem:[%s16]]
  %s18 = scalar_lea.smem %s0, 9
  %s19 = sld [smem:[%s18]]
  %s20 = scalar_lea.smem %s0, 10
  %s21 = sld [smem:[%s20]]
  %s22 = scalar_lea.smem %s0, 11
  %s23 = sld [smem:[%s22]]
  %s24 = scalar_lea.smem %s0, 12
  %s25 = sld [smem:[%s24]]
  %s26 = scalar_lea.smem %s0, 13
  %s27 = sld [smem:[%s26]]
  %s28 = scalar_lea.smem %s0, 14
  %s29 = sld [smem:[%s28]]
  %s30 = scalar_lea.smem %s0, 15
  %s31 = sld [smem:[%s30]]
  %s32 = scalar_lea.smem %s0, 16
  %s33 = sld [smem:[%s32]]
  %s34 = scalar_lea.smem %s0, 17
  %s35 = sld [smem:[%s34]]
  %s36 = scalar_lea.smem %s0, 18
  %s37 = sld [smem:[%s36]]
  %s38 = scalar_lea.smem %s0, 19
  %s39 = sld [smem:[%s38]]
  %s40 = scalar_lea.smem %s0, 20
  %s41 = sld [smem:[%s40]]
  %s42 = scalar_lea.smem %s0, 21
  %s43 = sld [smem:[%s42]]
  %s44 = scalar_lea.smem %s0, 22
  %s45 = sld [smem:[%s44]]
  %s46 = scalar_lea.smem %s0, 23
  %s47 = sld [smem:[%s46]]
  %s48 = scalar_lea.smem %s0, 24
  %s49 = sld [smem:[%s48]]
  %s50 = scalar_lea.smem %s0, 25
  %s51 = sld [smem:[%s50]]
  %s52 = scalar_lea.smem %s0, 26
  %s53 = sld [smem:[%s52]]
  %s54 = scalar_lea.smem %s0, 27
  %s55 = sld [smem:[%s54]]
  %s56 = scalar_lea.smem %s0, 28
  %s57 = sld [smem:[%s56]]
  %s58 = scalar_lea.smem %s0, 29
  %s59 = sld [smem:[%s58]]
  %s60 = scalar_lea.smem %s0, 30
  %s61 = sld [smem:[%s60]]
  %s62 = scalar_lea.smem %s0, 31
  %s63 = sld [smem:[%s62]]
  %s64 = scalar_lea.smem %s0, 32
  %s65 = sld [smem:[%s64]]
  %s66 = scalar_lea.smem %s0, 33
  %s67 = sld [smem:[%s66]]
  %s68 = scalar_lea.smem %s0, 34
  %s69 = sld [smem:[%s68]]
  %s70 = scalar_lea.smem %s0, 35
  %s71 = sld [smem:[%s70]]
  %s72 = scalar_lea.smem %s0, 36
  %s73 = sld [smem:[%s72]]
  %s74 = scalar_lea.smem %s0, 37
  %s75 = sld [smem:[%s74]]
  %s76 = scalar_lea.smem %s0, 38
  %s77 = sld [smem:[%s76]]
  %s78 = scalar_lea.smem %s0, 39
  %s79 = sld [smem:[%s78]]
  %s80 = sld [smem:[#allocation0]]
  $region166: #{tpu_custom_call.1} parent=0
    _
  %s82 = ssub.s32 1, %s80
  %s83 = scalar_select 0, %s82, %s80
  $region1: #{tpu_custom_call.1} parent=0
    #allocation2 [shape = 'u8[8192]{0}', space=vmem, size = 0x2000, scoped, tag = 'output window, operand 0, single buffered']
    #allocation3 [shape = 's32[1]{0}', space=sflag, size = 0x4, scoped, tag = 'scoped memory for tpu_custom_call.1']
    %84 = vsyncpa [#allocation3], 0
    // Predicated region
    $region2: #{tpu_custom_call.1} parent=1 // pred_check
      _
    $region3: #{tpu_custom_call.1} parent=1 // pred_check_branch
      %86 = sbr.rel (0) target = $region5
    $region4: #{tpu_custom_call.1} parent=1 // pred_region
      _
    $region5: #{tpu_custom_call.1} parent=1 // pred_fallthru
      _
    // Predicated region
    $region6: #{tpu_custom_call.1} parent=1 // pred_check
      _
    $region7: #{tpu_custom_call.1} parent=1 // pred_check_branch
      %88 = sbr.rel (0) target = $region9
    $region8: #{tpu_custom_call.1} parent=1 // pred_region
      _
    $region9: #{tpu_custom_call.1} parent=1 // pred_fallthru
      _
    // Predicated region
    $region10: #{tpu_custom_call.1} parent=1 // pred_check
      _
    $region11: #{tpu_custom_call.1} parent=1 // pred_check_branch
      %90 = sbr.rel (0) target = $region13
    $region12: #{tpu_custom_call.1} parent=1 // pred_region
      _
    $region13: #{tpu_custom_call.1} parent=1 // pred_fallthru
      _
    // Predicated region
    $region14: #{tpu_custom_call.1} parent=1 // pred_check
      _
    $region15: #{tpu_custom_call.1} parent=1 // pred_check_branch
      %92 = sbr.rel (0) target = $region17
    $region16: #{tpu_custom_call.1} parent=1 // pred_region
      _
    $region17: #{tpu_custom_call.1} parent=1 // pred_fallthru
      _
    // Predicated region
    $region18: #{tpu_custom_call.1} parent=1 // pred_check
      _
    $region19: #{tpu_custom_call.1} parent=1 // pred_check_branch
      %94 = sbr.rel (0) target = $region21
    $region20: #{tpu_custom_call.1} parent=1 // pred_region
      _
    $region21: #{tpu_custom_call.1} parent=1 // pred_fallthru
      _
    // Predicated region
    $region22: #{tpu_custom_call.1} parent=1 // pred_check
      _
    $region23: #{tpu_custom_call.1} parent=1 // pred_check_branch
      %96 = sbr.rel (0) target = $region25
    $region24: #{tpu_custom_call.1} parent=1 // pred_region
      _
    $region25: #{tpu_custom_call.1} parent=1 // pred_fallthru
      _
    // Predicated region
    $region26: #{tpu_custom_call.1} parent=1 // pred_check
      _
    $region27: #{tpu_custom_call.1} parent=1 // pred_check_branch
      %98 = sbr.rel (0) target = $region29
    $region28: #{tpu_custom_call.1} parent=1 // pred_region
      _
    $region29: #{tpu_custom_call.1} parent=1 // pred_fallthru
      _
    // Predicated region
    $region30: #{tpu_custom_call.1} parent=1 // pred_check
      _
    $region31: #{tpu_custom_call.1} parent=1 // pred_check_branch
      %100 = sbr.rel (0) target = $region33
    $region32: #{tpu_custom_call.1} parent=1 // pred_region
      _
    $region33: #{tpu_custom_call.1} parent=1 // pred_fallthru
      _
    // Predicated region
    $region34: #{tpu_custom_call.1} parent=1 // pred_check
      _
    $region35: #{tpu_custom_call.1} parent=1 // pred_check_branch
      %102 = sbr.rel (0) target = $region37
    $region36: #{tpu_custom_call.1} parent=1 // pred_region
      _
    $region37: #{tpu_custom_call.1} parent=1 // pred_fallthru
      _
    // Predicated region
    $region38: #{tpu_custom_call.1} parent=1 // pred_check
      _
    $region39: #{tpu_custom_call.1} parent=1 // pred_check_branch
      %104 = sbr.rel (0) target = $region41
    $region40: #{tpu_custom_call.1} parent=1 // pred_region
      _
    $region41: #{tpu_custom_call.1} parent=1 // pred_fallthru
      _
    // Predicated region
    $region42: #{tpu_custom_call.1} parent=1 // pred_check
      _
    $region43: #{tpu_custom_call.1} parent=1 // pred_check_branch
      %106 = sbr.rel (0) target = $region45
    $region44: #{tpu_custom_call.1} parent=1 // pred_region
      _
    $region45: #{tpu_custom_call.1} parent=1 // pred_fallthru
      _
    // Predicated region
    $region46: #{tpu_custom_call.1} parent=1 // pred_check
      _
    $region47: #{tpu_custom_call.1} parent=1 // pred_check_branch
      %108 = sbr.rel (0) target = $region49
    $region48: #{tpu_custom_call.1} parent=1 // pred_region
      _
    $region49: #{tpu_custom_call.1} parent=1 // pred_fallthru
      _
    // Predicated region
    $region50: #{tpu_custom_call.1} parent=1 // pred_check
      _
    $region51: #{tpu_custom_call.1} parent=1 // pred_check_branch
      %110 = sbr.rel (0) target = $region53
    $region52: #{tpu_custom_call.1} parent=1 // pred_region
      _
    $region53: #{tpu_custom_call.1} parent=1 // pred_fallthru
      _
    // Predicated region
    $region54: #{tpu_custom_call.1} parent=1 // pred_check
      _
    $region55: #{tpu_custom_call.1} parent=1 // pred_check_branch
      %112 = sbr.rel (0) target = $region57
    $region56: #{tpu_custom_call.1} parent=1 // pred_region
      _
    $region57: #{tpu_custom_call.1} parent=1 // pred_fallthru
      _
    // Predicated region
    $region58: #{tpu_custom_call.1} parent=1 // pred_check
      _
    $region59: #{tpu_custom_call.1} parent=1 // pred_check_branch
      %114 = sbr.rel (0) target = $region61
    $region60: #{tpu_custom_call.1} parent=1 // pred_region
      _
    $region61: #{tpu_custom_call.1} parent=1 // pred_fallthru
      _
    // Predicated region
    $region62: #{tpu_custom_call.1} parent=1 // pred_check
      _
    $region63: #{tpu_custom_call.1} parent=1 // pred_check_branch
      %116 = sbr.rel (0) target = $region65
    $region64: #{tpu_custom_call.1} parent=1 // pred_region
      _
    $region65: #{tpu_custom_call.1} parent=1 // pred_fallthru
      _
    // Predicated region
    $region66: #{tpu_custom_call.1} parent=1 // pred_check
      _
    $region67: #{tpu_custom_call.1} parent=1 // pred_check_branch
      %118 = sbr.rel (0) target = $region69
    $region68: #{tpu_custom_call.1} parent=1 // pred_region
      _
    $region69: #{tpu_custom_call.1} parent=1 // pred_fallthru
      _
    // Predicated region
    $region70: #{tpu_custom_call.1} parent=1 // pred_check
      _
    $region71: #{tpu_custom_call.1} parent=1 // pred_check_branch
      %120 = sbr.rel (0) target = $region73
    $region72: #{tpu_custom_call.1} parent=1 // pred_region
      _
    $region73: #{tpu_custom_call.1} parent=1 // pred_fallthru
      _
    // Predicated region
    $region74: #{tpu_custom_call.1} parent=1 // pred_check
      _
    $region75: #{tpu_custom_call.1} parent=1 // pred_check_branch
      %122 = sbr.rel (0) target = $region77
    $region76: #{tpu_custom_call.1} parent=1 // pred_region
      _
    $region77: #{tpu_custom_call.1} parent=1 // pred_fallthru
      _
    // Predicated region
    $region78: #{tpu_custom_call.1} parent=1 // pred_check
      _
    $region79: #{tpu_custom_call.1} parent=1 // pred_check_branch
      %124 = sbr.rel (0) target = $region81
    $region80: #{tpu_custom_call.1} parent=1 // pred_region
      _
    $region81: #{tpu_custom_call.1} parent=1 // pred_fallthru
      _
    // Predicated region
    $region82: #{tpu_custom_call.1} parent=1 // pred_check
      _
    $region83: #{tpu_custom_call.1} parent=1 // pred_check_branch
      %126 = sbr.rel (0) target = $region85
    $region84: #{tpu_custom_call.1} parent=1 // pred_region
      _
    $region85: #{tpu_custom_call.1} parent=1 // pred_fallthru
      _
    // Predicated region
    $region86: #{tpu_custom_call.1} parent=1 // pred_check
      _
    $region87: #{tpu_custom_call.1} parent=1 // pred_check_branch
      %128 = sbr.rel (0) target = $region89
    $region88: #{tpu_custom_call.1} parent=1 // pred_region
      _
    $region89: #{tpu_custom_call.1} parent=1 // pred_fallthru
      _
    // Predicated region
    $region90: #{tpu_custom_call.1} parent=1 // pred_check
      _
    $region91: #{tpu_custom_call.1} parent=1 // pred_check_branch
      %130 = sbr.rel (0) target = $region93
    $region92: #{tpu_custom_call.1} parent=1 // pred_region
      _
    $region93: #{tpu_custom_call.1} parent=1 // pred_fallthru
      _
    // Predicated region
    $region94: #{tpu_custom_call.1} parent=1 // pred_check
      _
    $region95: #{tpu_custom_call.1} parent=1 // pred_check_branch
      %132 = sbr.rel (0) target = $region97
    $region96: #{tpu_custom_call.1} parent=1 // pred_region
      _
    $region97: #{tpu_custom_call.1} parent=1 // pred_fallthru
      _
    // Predicated region
    $region98: #{tpu_custom_call.1} parent=1 // pred_check
      _
    $region99: #{tpu_custom_call.1} parent=1 // pred_check_branch
      %134 = sbr.rel (0) target = $region101
    $region100: #{tpu_custom_call.1} parent=1 // pred_region
      _
    $region101: #{tpu_custom_call.1} parent=1 // pred_fallthru
      _
    // Predicated region
    $region102: #{tpu_custom_call.1} parent=1 // pred_check
      _
    $region103: #{tpu_custom_call.1} parent=1 // pred_check_branch
      %136 = sbr.rel (0) target = $region105
    $region104: #{tpu_custom_call.1} parent=1 // pred_region
      _
    $region105: #{tpu_custom_call.1} parent=1 // pred_fallthru
      _
    // Predicated region
    $region106: #{tpu_custom_call.1} parent=1 // pred_check
      _
    $region107: #{tpu_custom_call.1} parent=1 // pred_check_branch
      %138 = sbr.rel (0) target = $region109
    $region108: #{tpu_custom_call.1} parent=1 // pred_region
      _
    $region109: #{tpu_custom_call.1} parent=1 // pred_fallthru
      _
    // Predicated region
    $region110: #{tpu_custom_call.1} parent=1 // pred_check
      _
    $region111: #{tpu_custom_call.1} parent=1 // pred_check_branch
      %140 = sbr.rel (0) target = $region113
    $region112: #{tpu_custom_call.1} parent=1 // pred_region
      _
    $region113: #{tpu_custom_call.1} parent=1 // pred_fallthru
      _
    // Predicated region
    $region114: #{tpu_custom_call.1} parent=1 // pred_check
      _
    $region115: #{tpu_custom_call.1} parent=1 // pred_check_branch
      %142 = sbr.rel (0) target = $region117
    $region116: #{tpu_custom_call.1} parent=1 // pred_region
      _
    $region117: #{tpu_custom_call.1} parent=1 // pred_fallthru
      _
    // Predicated region
    $region118: #{tpu_custom_call.1} parent=1 // pred_check
      _
    $region119: #{tpu_custom_call.1} parent=1 // pred_check_branch
      %144 = sbr.rel (0) target = $region121
    $region120: #{tpu_custom_call.1} parent=1 // pred_region
      _
    $region121: #{tpu_custom_call.1} parent=1 // pred_fallthru
      _
    // Predicated region
    $region122: #{tpu_custom_call.1} parent=1 // pred_check
      _
    $region123: #{tpu_custom_call.1} parent=1 // pred_check_branch
      %146 = sbr.rel (0) target = $region125
    $region124: #{tpu_custom_call.1} parent=1 // pred_region
      _
    $region125: #{tpu_custom_call.1} parent=1 // pred_fallthru
      _
    // Predicated region
    $region126: #{tpu_custom_call.1} parent=1 // pred_check
      _
    $region127: #{tpu_custom_call.1} parent=1 // pred_check_branch
      %148 = sbr.rel (0) target = $region129
    $region128: #{tpu_custom_call.1} parent=1 // pred_region
      _
    $region129: #{tpu_custom_call.1} parent=1 // pred_fallthru
      _
    // Predicated region
    $region130: #{tpu_custom_call.1} parent=1 // pred_check
      _
    $region131: #{tpu_custom_call.1} parent=1 // pred_check_branch
      %150 = sbr.rel (0) target = $region133
    $region132: #{tpu_custom_call.1} parent=1 // pred_region
      _
    $region133: #{tpu_custom_call.1} parent=1 // pred_fallthru
      _
    // Predicated region
    $region134: #{tpu_custom_call.1} parent=1 // pred_check
      _
    $region135: #{tpu_custom_call.1} parent=1 // pred_check_branch
      %152 = sbr.rel (0) target = $region137
    $region136: #{tpu_custom_call.1} parent=1 // pred_region
      _
    $region137: #{tpu_custom_call.1} parent=1 // pred_fallthru
      _
    // Predicated region
    $region138: #{tpu_custom_call.1} parent=1 // pred_check
      _
    $region139: #{tpu_custom_call.1} parent=1 // pred_check_branch
      %154 = sbr.rel (0) target = $region141
    $region140: #{tpu_custom_call.1} parent=1 // pred_region
      _
    $region141: #{tpu_custom_call.1} parent=1 // pred_fallthru
      _
    // Predicated region
    $region142: #{tpu_custom_call.1} parent=1 // pred_check
      _
    $region143: #{tpu_custom_call.1} parent=1 // pred_check_branch
      %156 = sbr.rel (0) target = $region145
    $region144: #{tpu_custom_call.1} parent=1 // pred_region
      _
    $region145: #{tpu_custom_call.1} parent=1 // pred_fallthru
      _
    // Predicated region
    $region146: #{tpu_custom_call.1} parent=1 // pred_check
      _
    $region147: #{tpu_custom_call.1} parent=1 // pred_check_branch
      %158 = sbr.rel (0) target = $region149
    $region148: #{tpu_custom_call.1} parent=1 // pred_region
      _
    $region149: #{tpu_custom_call.1} parent=1 // pred_fallthru
      _
    // Predicated region
    $region150: #{tpu_custom_call.1} parent=1 // pred_check
      _
    $region151: #{tpu_custom_call.1} parent=1 // pred_check_branch
      %160 = sbr.rel (0) target = $region153
    $region152: #{tpu_custom_call.1} parent=1 // pred_region
      _
    $region153: #{tpu_custom_call.1} parent=1 // pred_fallthru
      _
    // Predicated region
    $region154: #{tpu_custom_call.1} parent=1 // pred_check
      _
    $region155: #{tpu_custom_call.1} parent=1 // pred_check_branch
      %162 = sbr.rel (0) target = $region157
    $region156: #{tpu_custom_call.1} parent=1 // pred_region
      _
    $region157: #{tpu_custom_call.1} parent=1 // pred_fallthru
      _
    %v164 = vld [vmem:[%s5] sm:$0xf]
    %v165 = vld [vmem:[%s5 + $0x4] sm:$0xf]
    %v166 = vld [vmem:[%s5 + $0x8] sm:$0xf]
    %v167 = vld [vmem:[%s5 + $0xc] sm:$0xf]
    %v168 = vld [vmem:[%s7] sm:$0xf]
    %v169 = vld [vmem:[%s7 + $0x4] sm:$0xf]
    %v170 = vld [vmem:[%s7 + $0x8] sm:$0xf]
    %v171 = vld [vmem:[%s7 + $0xc] sm:$0xf]
    %v172 = vld [vmem:[%s9] sm:$0xff]
    %v173 = vld [vmem:[%s9 + $0x8] sm:$0xff]
    %v174 = vld [vmem:[%s9 + $0x10] sm:$0xff]
    %v175 = vld [vmem:[%s9 + $0x18] sm:$0xff]
    %v176 = vld [vmem:[%s11] sm:$0x1]
    %v177 = vld [vmem:[%s1] sm:$0xff]
    %v178 = vld [vmem:[%s1 + $0x8] sm:$0xff]
    %v180 = vlaneseq
    %v181 = vshrl.u32 %v180, 7
    %v182 = vsub.s32 0, %v181
    %v183 = vrot.slane %v176, %v182
    %vm185 = vcmask 261120
    %v187 = vsel %vm185, %v177, 0
    %v190 = vsel %vm185, %v178, 0
    %192 = vmatprep.subr.mxu0 0.0
    %193 = vmatpush1.msra.mxu0 %v172
    %194 = vmatprep.subr.mxu0 0.0
    %195 = vmatpush1.msra.mxu0 %v173
    %196 = vmatprep.subr.mxu0 0.0
    %197 = vmatpush1.msra.mxu0 %v174
    %198 = vmatprep.subr.mxu0 0.0
    %199 = vmatpush1.msra.mxu0 %v175
    %200 = vmatprep.subr.mxu0 0.0
    %201 = vmatpush1.msra.mxu0 0.0
    %202 = vmatprep.subr.mxu0 0.0
    %203 = vmatpush1.msra.mxu0 0.0
    %204 = vmatprep.subr.mxu0 0.0
    %205 = vmatpush1.msra.mxu0 0.0
    %206 = vmatprep.subr.mxu0 0.0
    %207 = vmatpush1.msra.mxu0 0.0
    %208 = vmatprep.subr.mxu0 0.0
    %209 = vmatpush1.msra.mxu0 0.0
    %210 = vmatprep.subr.mxu0 0.0
    %211 = vmatpush1.msra.mxu0 0.0
    %212 = vmatprep.subr.mxu0 0.0
    %213 = vmatpush1.msra.mxu0 0.0
    %214 = vmatprep.subr.mxu0 0.0
    %215 = vmatpush1.msra.mxu0 0.0
    %216 = vmatprep.subr.mxu0 0.0
    %217 = vmatpush1.msra.mxu0 0.0
    %218 = vmatprep.subr.mxu0 0.0
    %219 = vmatpush1.msra.mxu0 0.0
    %220 = vmatprep.subr.mxu0 0.0
    %221 = vmatpush1.msra.mxu0 0.0
    %222 = vmatprep.subr.mxu0 0.0
    %223 = vmatpush1.msra.mxu0 0.0
    %224 = vmatprep.subr.mxu0 0.0
    %225 = vmatpush1.msra.mxu0 0.0
    %226 = vmatprep.subr.mxu0 0.0
    %227 = vmatpush1.msra.mxu0 0.0
    %228 = vmatprep.subr.mxu0 0.0
    %229 = vmatpush1.msra.mxu0 0.0
    %230 = vmatprep.subr.mxu0 0.0
    %231 = vmatpush1.msra.mxu0 0.0
    %232 = vmatprep.subr.mxu0 0.0
    %233 = vmatpush1.msra.mxu0 0.0
    %234 = vmatprep.subr.mxu0 0.0
    %235 = vmatpush1.msra.mxu0 0.0
    %236 = vmatprep.subr.mxu0 0.0
    %237 = vmatpush1.msra.mxu0 0.0
    %238 = vmatprep.subr.mxu0 0.0
    %239 = vmatpush1.msra.mxu0 0.0
    %240 = vmatprep.subr.mxu0 0.0
    %241 = vmatpush1.msra.mxu0 0.0
    %242 = vmatprep.subr.mxu0 0.0
    %243 = vmatpush1.msra.mxu0 0.0
    %244 = vmatprep.subr.mxu0 0.0
    %245 = vmatpush1.msra.mxu0 0.0
    %246 = vmatprep.subr.mxu0 0.0
    %247 = vmatpush1.msra.mxu0 0.0
    %248 = vmatprep.subr.mxu0 0.0
    %249 = vmatpush1.msra.mxu0 0.0
    %250 = vmatprep.subr.mxu0 0.0
    %251 = vmatpush1.msra.mxu0 0.0
    %252 = vmatprep.subr.mxu0 0.0
    %253 = vmatpush1.msra.mxu0 0.0
    %254 = vmatprep.subr.mxu0 0.0
    %255 = vmatpush1.msra.mxu0 0.0
    %256 = vmatprep.mubr.f32.mxu0 0.0
    %257 = vmatmul.mubr.f32.gmra.mrb[0].mxu0 %v187
    %v258 = vpop.f32.mrb[0].mxu0
    %v259 = vadd.f32 %v183, %v258
    %v260 = vpop.f32.mrb[0].mxu0
    %261 = vmatprep.mubr.f32.mxu0 0.0
    %262 = vmatmul.mubr.f32.gmra.mrb[0].mxu0 %v190
    %v263 = vpop.f32.mrb[0].mxu0
    %v264 = vadd.f32 %v183, %v263
    %v265 = vpop.f32.mrb[0].mxu0
    %266 = vdwg.mxu0
    %v267 = vld [vmem:[%s3] sm:$0xff]
    %v268 = vld [vmem:[%s3 + $0x8] sm:$0xff]
    %v269 = vld [vmem:[%s3 + $0x10] sm:$0xff]
    %v270 = vld [vmem:[%s3 + $0x18] sm:$0xff]
    %v272 = vsel %vm185, %v267, 0
    %v275 = vsel %vm185, %v268, 0
    %v278 = vsel %vm185, %v269, 0
    %v281 = vsel %vm185, %v270, 0
    %283 = vmatprep.subr.mxu0 0.0
    %284 = vmatpush1.msra.mxu0 %v172
    %285 = vmatprep.subr.mxu0 0.0
    %286 = vmatpush1.msra.mxu0 %v173
    %287 = vmatprep.subr.mxu0 0.0
    %288 = vmatpush1.msra.mxu0 %v174
    %289 = vmatprep.subr.mxu0 0.0
    %290 = vmatpush1.msra.mxu0 %v175
    %291 = vmatprep.subr.mxu0 0.0
    %292 = vmatpush1.msra.mxu0 0.0
    %293 = vmatprep.subr.mxu0 0.0
    %294 = vmatpush1.msra.mxu0 0.0
    %295 = vmatprep.subr.mxu0 0.0
    %296 = vmatpush1.msra.mxu0 0.0
    %297 = vmatprep.subr.mxu0 0.0
    %298 = vmatpush1.msra.mxu0 0.0
    %299 = vmatprep.subr.mxu0 0.0
    %300 = vmatpush1.msra.mxu0 0.0
    %301 = vmatprep.subr.mxu0 0.0
    %302 = vmatpush1.msra.mxu0 0.0
    %303 = vmatprep.subr.mxu0 0.0
    %304 = vmatpush1.msra.mxu0 0.0
    %305 = vmatprep.subr.mxu0 0.0
    %306 = vmatpush1.msra.mxu0 0.0
    %307 = vmatprep.subr.mxu0 0.0
    %308 = vmatpush1.msra.mxu0 0.0
    %309 = vmatprep.subr.mxu0 0.0
    %310 = vmatpush1.msra.mxu0 0.0
    %311 = vmatprep.subr.mxu0 0.0
    %312 = vmatpush1.msra.mxu0 0.0
    %313 = vmatprep.subr.mxu0 0.0
    %314 = vmatpush1.msra.mxu0 0.0
    %315 = vmatprep.subr.mxu0 0.0
    %316 = vmatpush1.msra.mxu0 0.0
    %317 = vmatprep.subr.mxu0 0.0
    %318 = vmatpush1.msra.mxu0 0.0
    %319 = vmatprep.subr.mxu0 0.0
    %320 = vmatpush1.msra.mxu0 0.0
    %321 = vmatprep.subr.mxu0 0.0
    %322 = vmatpush1.msra.mxu0 0.0
    %323 = vmatprep.subr.mxu0 0.0
    %324 = vmatpush1.msra.mxu0 0.0
    %325 = vmatprep.subr.mxu0 0.0
    %326 = vmatpush1.msra.mxu0 0.0
    %327 = vmatprep.subr.mxu0 0.0
    %328 = vmatpush1.msra.mxu0 0.0
    %329 = vmatprep.subr.mxu0 0.0
    %330 = vmatpush1.msra.mxu0 0.0
    %331 = vmatprep.subr.mxu0 0.0
    %332 = vmatpush1.msra.mxu0 0.0
    %333 = vmatprep.subr.mxu0 0.0
    %334 = vmatpush1.msra.mxu0 0.0
    %335 = vmatprep.subr.mxu0 0.0
    %336 = vmatpush1.msra.mxu0 0.0
    %337 = vmatprep.subr.mxu0 0.0
    %338 = vmatpush1.msra.mxu0 0.0
    %339 = vmatprep.subr.mxu0 0.0
    %340 = vmatpush1.msra.mxu0 0.0
    %341 = vmatprep.subr.mxu0 0.0
    %342 = vmatpush1.msra.mxu0 0.0
    %343 = vmatprep.subr.mxu0 0.0
    %344 = vmatpush1.msra.mxu0 0.0
    %345 = vmatprep.subr.mxu0 0.0
    %346 = vmatpush1.msra.mxu0 0.0
    %347 = vmatprep.mubr.f32.mxu0 0.0
    %348 = vmatmul.mubr.f32.gmra.mrb[0].mxu0 %v272
    %v349 = vpop.f32.mrb[0].mxu0
    %v350 = vadd.f32 %v183, %v349
    %v351 = vpop.f32.mrb[0].mxu0
    %352 = vmatprep.mubr.f32.mxu0 0.0
    %353 = vmatmul.mubr.f32.gmra.mrb[0].mxu0 %v275
    %v354 = vpop.f32.mrb[0].mxu0
    %v355 = vadd.f32 %v183, %v354
    %v356 = vpop.f32.mrb[0].mxu0
    %357 = vmatprep.mubr.f32.mxu0 0.0
    %358 = vmatmul.mubr.f32.gmra.mrb[0].mxu0 %v278
    %v359 = vpop.f32.mrb[0].mxu0
    %v360 = vadd.f32 %v183, %v359
    %v361 = vpop.f32.mrb[0].mxu0
    %362 = vmatprep.mubr.f32.mxu0 0.0
    %363 = vmatmul.mubr.f32.gmra.mrb[0].mxu0 %v281
    %v364 = vpop.f32.mrb[0].mxu0
    %v365 = vadd.f32 %v183, %v364
    %v366 = vpop.f32.mrb[0].mxu0
    %367 = vdwg.mxu0
    %v368 = vld [vmem:[%s13] sm:$0xff]
    %v369 = vld [vmem:[%s13 + $0x8] sm:$0xff]
    %v370 = vld [vmem:[%s15] sm:$0x1]
    %v372 = vlaneseq
    %v373 = vshrl.u32 %v372, 7
    %v374 = vsub.s32 0, %v373
    %v375 = vrot.slane %v370, %v374
    %vm377 = vcmask 130048
    %v379 = vsel %vm377, %v259, 0
    %v382 = vsel %vm377, %v264, 0
    %384 = vmatprep.subr.mxu0 0.0
    %385 = vmatpush1.msra.mxu0 %v368
    %386 = vmatprep.subr.mxu0 0.0
    %387 = vmatpush1.msra.mxu0 %v369
    %388 = vmatprep.subr.mxu0 0.0
    %389 = vmatpush1.msra.mxu0 0.0
    %390 = vmatprep.subr.mxu0 0.0
    %391 = vmatpush1.msra.mxu0 0.0
    %392 = vmatprep.subr.mxu0 0.0
    %393 = vmatpush1.msra.mxu0 0.0
    %394 = vmatprep.subr.mxu0 0.0
    %395 = vmatpush1.msra.mxu0 0.0
    %396 = vmatprep.subr.mxu0 0.0
    %397 = vmatpush1.msra.mxu0 0.0
    %398 = vmatprep.subr.mxu0 0.0
    %399 = vmatpush1.msra.mxu0 0.0
    %400 = vmatprep.subr.mxu0 0.0
    %401 = vmatpush1.msra.mxu0 0.0
    %402 = vmatprep.subr.mxu0 0.0
    %403 = vmatpush1.msra.mxu0 0.0
    %404 = vmatprep.subr.mxu0 0.0
    %405 = vmatpush1.msra.mxu0 0.0
    %406 = vmatprep.subr.mxu0 0.0
    %407 = vmatpush1.msra.mxu0 0.0
    %408 = vmatprep.subr.mxu0 0.0
    %409 = vmatpush1.msra.mxu0 0.0
    %410 = vmatprep.subr.mxu0 0.0
    %411 = vmatpush1.msra.mxu0 0.0
    %412 = vmatprep.subr.mxu0 0.0
    %413 = vmatpush1.msra.mxu0 0.0
    %414 = vmatprep.subr.mxu0 0.0
    %415 = vmatpush1.msra.mxu0 0.0
    %416 = vmatprep.subr.mxu0 0.0
    %417 = vmatpush1.msra.mxu0 0.0
    %418 = vmatprep.subr.mxu0 0.0
    %419 = vmatpush1.msra.mxu0 0.0
    %420 = vmatprep.subr.mxu0 0.0
    %421 = vmatpush1.msra.mxu0 0.0
    %422 = vmatprep.subr.mxu0 0.0
    %423 = vmatpush1.msra.mxu0 0.0
    %424 = vmatprep.subr.mxu0 0.0
    %425 = vmatpush1.msra.mxu0 0.0
    %426 = vmatprep.subr.mxu0 0.0
    %427 = vmatpush1.msra.mxu0 0.0
    %428 = vmatprep.subr.mxu0 0.0
    %429 = vmatpush1.msra.mxu0 0.0
    %430 = vmatprep.subr.mxu0 0.0
    %431 = vmatpush1.msra.mxu0 0.0
    %432 = vmatprep.subr.mxu0 0.0
    %433 = vmatpush1.msra.mxu0 0.0
    %434 = vmatprep.subr.mxu0 0.0
    %435 = vmatpush1.msra.mxu0 0.0
    %436 = vmatprep.subr.mxu0 0.0
    %437 = vmatpush1.msra.mxu0 0.0
    %438 = vmatprep.subr.mxu0 0.0
    %439 = vmatpush1.msra.mxu0 0.0
    %440 = vmatprep.subr.mxu0 0.0
    %441 = vmatpush1.msra.mxu0 0.0
    %442 = vmatprep.subr.mxu0 0.0
    %443 = vmatpush1.msra.mxu0 0.0
    %444 = vmatprep.subr.mxu0 0.0
    %445 = vmatpush1.msra.mxu0 0.0
    %446 = vmatprep.subr.mxu0 0.0
    %447 = vmatpush1.msra.mxu0 0.0
    %448 = vmatprep.mubr.f32.mxu0 0.0
    %449 = vmatmul.mubr.f32.gmra.mrb[0].mxu0 %v379
    %v450 = vpop.f32.mrb[0].mxu0
    %v451 = vadd.f32 %v375, %v450
    %v452 = vpop.f32.mrb[0].mxu0
    %453 = vmatprep.mubr.f32.mxu0 0.0
    %454 = vmatmul.mubr.f32.gmra.mrb[0].mxu0 %v382
    %v455 = vpop.f32.mrb[0].mxu0
    %v456 = vadd.f32 %v375, %v455
    %v457 = vpop.f32.mrb[0].mxu0
    %458 = vdwg.mxu0
    %v459 = vld [vmem:[%s21] sm:$0xff]
    %vm460 = vcmask 64512
    %v462 = vsel %vm460, %v451, 0
    %v465 = vsel %vm460, %v456, 0
    %467 = vmatprep.subr.mxu0 0.0
    %468 = vmatpush1.msra.mxu0 %v459
    %469 = vmatprep.subr.mxu0 0.0
    %470 = vmatpush1.msra.mxu0 0.0
    %471 = vmatprep.subr.mxu0 0.0
    %472 = vmatpush1.msra.mxu0 0.0
    %473 = vmatprep.subr.mxu0 0.0
    %474 = vmatpush1.msra.mxu0 0.0
    %475 = vmatprep.subr.mxu0 0.0
    %476 = vmatpush1.msra.mxu0 0.0
    %477 = vmatprep.subr.mxu0 0.0
    %478 = vmatpush1.msra.mxu0 0.0
    %479 = vmatprep.subr.mxu0 0.0
    %480 = vmatpush1.msra.mxu0 0.0
    %481 = vmatprep.subr.mxu0 0.0
    %482 = vmatpush1.msra.mxu0 0.0
    %483 = vmatprep.subr.mxu0 0.0
    %484 = vmatpush1.msra.mxu0 0.0
    %485 = vmatprep.subr.mxu0 0.0
    %486 = vmatpush1.msra.mxu0 0.0
    %487 = vmatprep.subr.mxu0 0.0
    %488 = vmatpush1.msra.mxu0 0.0
    %489 = vmatprep.subr.mxu0 0.0
    %490 = vmatpush1.msra.mxu0 0.0
    %491 = vmatprep.subr.mxu0 0.0
    %492 = vmatpush1.msra.mxu0 0.0
    %493 = vmatprep.subr.mxu0 0.0
    %494 = vmatpush1.msra.mxu0 0.0
    %495 = vmatprep.subr.mxu0 0.0
    %496 = vmatpush1.msra.mxu0 0.0
    %497 = vmatprep.subr.mxu0 0.0
    %498 = vmatpush1.msra.mxu0 0.0
    %499 = vmatprep.subr.mxu0 0.0
    %500 = vmatpush1.msra.mxu0 0.0
    %501 = vmatprep.subr.mxu0 0.0
    %502 = vmatpush1.msra.mxu0 0.0
    %503 = vmatprep.subr.mxu0 0.0
    %504 = vmatpush1.msra.mxu0 0.0
    %505 = vmatprep.subr.mxu0 0.0
    %506 = vmatpush1.msra.mxu0 0.0
    %507 = vmatprep.subr.mxu0 0.0
    %508 = vmatpush1.msra.mxu0 0.0
    %509 = vmatprep.subr.mxu0 0.0
    %510 = vmatpush1.msra.mxu0 0.0
    %511 = vmatprep.subr.mxu0 0.0
    %512 = vmatpush1.msra.mxu0 0.0
    %513 = vmatprep.subr.mxu0 0.0
    %514 = vmatpush1.msra.mxu0 0.0
    %515 = vmatprep.subr.mxu0 0.0
    %516 = vmatpush1.msra.mxu0 0.0
    %517 = vmatprep.subr.mxu0 0.0
    %518 = vmatpush1.msra.mxu0 0.0
    %519 = vmatprep.subr.mxu0 0.0
    %520 = vmatpush1.msra.mxu0 0.0
    %521 = vmatprep.subr.mxu0 0.0
    %522 = vmatpush1.msra.mxu0 0.0
    %523 = vmatprep.subr.mxu0 0.0
    %524 = vmatpush1.msra.mxu0 0.0
    %525 = vmatprep.subr.mxu0 0.0
    %526 = vmatpush1.msra.mxu0 0.0
    %527 = vmatprep.subr.mxu0 0.0
    %528 = vmatpush1.msra.mxu0 0.0
    %529 = vmatprep.subr.mxu0 0.0
    %530 = vmatpush1.msra.mxu0 0.0
    %531 = vmatprep.mubr.f32.mxu0 0.0
    %532 = vmatmul.mubr.f32.gmra.mrb[0].mxu0 %v462
    %v533 = vpop.f32.mrb[0].mxu0
    %v534 = vadd.f32 0.0, %v533
    %v535 = vpop.f32.mrb[0].mxu0
    %536 = vmatprep.mubr.f32.mxu0 0.0
    %537 = vmatmul.mubr.f32.gmra.mrb[0].mxu0 %v465
    %v538 = vpop.f32.mrb[0].mxu0
    %v539 = vadd.f32 0.0, %v538
    %v540 = vpop.f32.mrb[0].mxu0
    %541 = vdwg.mxu0
    %v542 = vld [vmem:[%s23] sm:$0xff]
    %543 = vmatprep.subr.mxu0 0.0
    %544 = vmatpush1.msra.mxu0 %v542
    %545 = vmatprep.subr.mxu0 0.0
    %546 = vmatpush1.msra.mxu0 0.0
    %547 = vmatprep.subr.mxu0 0.0
    %548 = vmatpush1.msra.mxu0 0.0
    %549 = vmatprep.subr.mxu0 0.0
    %550 = vmatpush1.msra.mxu0 0.0
    %551 = vmatprep.subr.mxu0 0.0
    %552 = vmatpush1.msra.mxu0 0.0
    %553 = vmatprep.subr.mxu0 0.0
    %554 = vmatpush1.msra.mxu0 0.0
    %555 = vmatprep.subr.mxu0 0.0
    %556 = vmatpush1.msra.mxu0 0.0
    %557 = vmatprep.subr.mxu0 0.0
    %558 = vmatpush1.msra.mxu0 0.0
    %559 = vmatprep.subr.mxu0 0.0
    %560 = vmatpush1.msra.mxu0 0.0
    %561 = vmatprep.subr.mxu0 0.0
    %562 = vmatpush1.msra.mxu0 0.0
    %563 = vmatprep.subr.mxu0 0.0
    %564 = vmatpush1.msra.mxu0 0.0
    %565 = vmatprep.subr.mxu0 0.0
    %566 = vmatpush1.msra.mxu0 0.0
    %567 = vmatprep.subr.mxu0 0.0
    %568 = vmatpush1.msra.mxu0 0.0
    %569 = vmatprep.subr.mxu0 0.0
    %570 = vmatpush1.msra.mxu0 0.0
    %571 = vmatprep.subr.mxu0 0.0
    %572 = vmatpush1.msra.mxu0 0.0
    %573 = vmatprep.subr.mxu0 0.0
    %574 = vmatpush1.msra.mxu0 0.0
    %575 = vmatprep.subr.mxu0 0.0
    %576 = vmatpush1.msra.mxu0 0.0
    %577 = vmatprep.subr.mxu0 0.0
    %578 = vmatpush1.msra.mxu0 0.0
    %579 = vmatprep.subr.mxu0 0.0
    %580 = vmatpush1.msra.mxu0 0.0
    %581 = vmatprep.subr.mxu0 0.0
    %582 = vmatpush1.msra.mxu0 0.0
    %583 = vmatprep.subr.mxu0 0.0
    %584 = vmatpush1.msra.mxu0 0.0
    %585 = vmatprep.subr.mxu0 0.0
    %586 = vmatpush1.msra.mxu0 0.0
    %587 = vmatprep.subr.mxu0 0.0
    %588 = vmatpush1.msra.mxu0 0.0
    %589 = vmatprep.subr.mxu0 0.0
    %590 = vmatpush1.msra.mxu0 0.0
    %591 = vmatprep.subr.mxu0 0.0
    %592 = vmatpush1.msra.mxu0 0.0
    %593 = vmatprep.subr.mxu0 0.0
    %594 = vmatpush1.msra.mxu0 0.0
    %595 = vmatprep.subr.mxu0 0.0
    %596 = vmatpush1.msra.mxu0 0.0
    %597 = vmatprep.subr.mxu0 0.0
    %598 = vmatpush1.msra.mxu0 0.0
    %599 = vmatprep.subr.mxu0 0.0
    %600 = vmatpush1.msra.mxu0 0.0
    %601 = vmatprep.subr.mxu0 0.0
    %602 = vmatpush1.msra.mxu0 0.0
    %603 = vmatprep.subr.mxu0 0.0
    %604 = vmatpush1.msra.mxu0 0.0
    %605 = vmatprep.subr.mxu0 0.0
    %606 = vmatpush1.msra.mxu0 0.0
    %607 = vmatprep.mubr.f32.mxu0 0.0
    %608 = vmatmul.mubr.f32.gmra.mrb[0].mxu0 %v462
    %v609 = vpop.f32.mrb[0].mxu0
    %v610 = vadd.f32 0.0, %v609
    %v611 = vpop.f32.mrb[0].mxu0
    %612 = vmatprep.mubr.f32.mxu0 0.0
    %613 = vmatmul.mubr.f32.gmra.mrb[0].mxu0 %v465
    %v614 = vpop.f32.mrb[0].mxu0
    %v615 = vadd.f32 0.0, %v614
    %v616 = vpop.f32.mrb[0].mxu0
    %617 = vdwg.mxu0
    %v618 = vpack.c.bf16 %v539, %v534
    %v619 = vpack.c.bf16 %v615, %v610
    %v624 = vunpack.c.l.b16 %v164
    %v625 = vunpack.c.l.b16 %v165
    %v626 = vunpack.c.l.b16 %v166
    %v627 = vunpack.c.l.b16 %v167
    %v628 = vpack.c.b16 %v625, %v624
    %v629 = vpack.c.b16 %v627, %v626
    %v631 = vsel %vm377, %v628, 0
    %v634 = vsel %vm377, %v629, 0
    %636 = vmatprep.subr.bf16.mxu0 0
    %637 = vmatpush1.bf16.msra.mxu0 %v619
    %638 = vmatprep.subr.bf16.mxu0 0
    %639 = vmatpush1.bf16.msra.mxu0 0
    %640 = vmatprep.subr.bf16.mxu0 0
    %641 = vmatpush1.bf16.msra.mxu0 0
    %642 = vmatprep.subr.bf16.mxu0 0
    %643 = vmatpush1.bf16.msra.mxu0 0
    %644 = vmatprep.subr.bf16.mxu0 0
    %645 = vmatpush1.bf16.msra.mxu0 0
    %646 = vmatprep.subr.bf16.mxu0 0
    %647 = vmatpush1.bf16.msra.mxu0 0
    %648 = vmatprep.subr.bf16.mxu0 0
    %649 = vmatpush1.bf16.msra.mxu0 0
    %650 = vmatprep.subr.bf16.mxu0 0
    %651 = vmatpush1.bf16.msra.mxu0 0
    %652 = vmatprep.subr.bf16.mxu0 0
    %653 = vmatpush1.bf16.msra.mxu0 0
    %654 = vmatprep.subr.bf16.mxu0 0
    %655 = vmatpush1.bf16.msra.mxu0 0
    %656 = vmatprep.subr.bf16.mxu0 0
    %657 = vmatpush1.bf16.msra.mxu0 0
    %658 = vmatprep.subr.bf16.mxu0 0
    %659 = vmatpush1.bf16.msra.mxu0 0
    %660 = vmatprep.subr.bf16.mxu0 0
    %661 = vmatpush1.bf16.msra.mxu0 0
    %662 = vmatprep.subr.bf16.mxu0 0
    %663 = vmatpush1.bf16.msra.mxu0 0
    %664 = vmatprep.subr.bf16.mxu0 0
    %665 = vmatpush1.bf16.msra.mxu0 0
    %666 = vmatprep.subr.bf16.mxu0 0
    %667 = vmatpush1.bf16.msra.mxu0 0
    %668 = vmatprep.mubr.bf16.mxu0 0
    %669 = vmatmul.mubr.bf16.gmra.mrb[0].mxu0 %v631
    %v670 = vpop.f32.mrb[0].mxu0
    %v671 = vadd.f32 0.0, %v670
    %v672 = vpop.f32.mrb[0].mxu0
    %v673 = vpop.f32.mrb[0].mxu0
    %v674 = vadd.f32 0.0, %v673
    %v675 = vpop.f32.mrb[0].mxu0
    %676 = vmatprep.mubr.bf16.mxu0 0
    %677 = vmatmul.mubr.bf16.gmra.mrb[0].mxu0 %v634
    %v678 = vpop.f32.mrb[0].mxu0
    %v679 = vadd.f32 0.0, %v678
    %v680 = vpop.f32.mrb[0].mxu0
    %v681 = vpop.f32.mrb[0].mxu0
    %v682 = vadd.f32 0.0, %v681
    %v683 = vpop.f32.mrb[0].mxu0
    %684 = vdwg.mxu0
    %v685 = vld [vmem:[%s17] sm:$0xff]
    %v686 = vld [vmem:[%s17 + $0x8] sm:$0xff]
    %v687 = vld [vmem:[%s17 + $0x10] sm:$0xff]
    %v688 = vld [vmem:[%s17 + $0x18] sm:$0xff]
    %vm689 = vcmp.gt.f32.partialorder %v685, 0.0
    %vm690 = vcmp.gt.f32.partialorder %v686, 0.0
    %vm691 = vcmp.gt.f32.partialorder %v687, 0.0
    %vm692 = vcmp.gt.f32.partialorder %v688, 0.0
    %v693 = vmul.f32 %v685, 0.2
    %v694 = vmul.f32 %v686, 0.2
    %v695 = vmul.f32 %v687, 0.2
    %v696 = vmul.f32 %v688, 0.2
    %v697 = vsel %vm689, %v685, %v693
    %v698 = vsel %vm690, %v686, %v694
    %v699 = vsel %vm691, %v687, %v695
    %v700 = vsel %vm692, %v688, %v696
    %v701 = vld [vmem:[%s19] sm:$0xff]
    %v702 = vld [vmem:[%s19 + $0x8] sm:$0xff]
    %v704 = vsel %vm377, %v350, 0
    %v707 = vsel %vm377, %v355, 0
    %v710 = vsel %vm377, %v360, 0
    %v713 = vsel %vm377, %v365, 0
    %715 = vmatprep.subr.mxu0 0.0
    %716 = vmatpush1.msra.mxu0 %v701
    %717 = vmatprep.subr.mxu0 0.0
    %718 = vmatpush1.msra.mxu0 %v702
    %719 = vmatprep.subr.mxu0 0.0
    %720 = vmatpush1.msra.mxu0 0.0
    %721 = vmatprep.subr.mxu0 0.0
    %722 = vmatpush1.msra.mxu0 0.0
    %723 = vmatprep.subr.mxu0 0.0
    %724 = vmatpush1.msra.mxu0 0.0
    %725 = vmatprep.subr.mxu0 0.0
    %726 = vmatpush1.msra.mxu0 0.0
    %727 = vmatprep.subr.mxu0 0.0
    %728 = vmatpush1.msra.mxu0 0.0
    %729 = vmatprep.subr.mxu0 0.0
    %730 = vmatpush1.msra.mxu0 0.0
    %731 = vmatprep.subr.mxu0 0.0
    %732 = vmatpush1.msra.mxu0 0.0
    %733 = vmatprep.subr.mxu0 0.0
    %734 = vmatpush1.msra.mxu0 0.0
    %735 = vmatprep.subr.mxu0 0.0
    %736 = vmatpush1.msra.mxu0 0.0
    %737 = vmatprep.subr.mxu0 0.0
    %738 = vmatpush1.msra.mxu0 0.0
    %739 = vmatprep.subr.mxu0 0.0
    %740 = vmatpush1.msra.mxu0 0.0
    %741 = vmatprep.subr.mxu0 0.0
    %742 = vmatpush1.msra.mxu0 0.0
    %743 = vmatprep.subr.mxu0 0.0
    %744 = vmatpush1.msra.mxu0 0.0
    %745 = vmatprep.subr.mxu0 0.0
    %746 = vmatpush1.msra.mxu0 0.0
    %747 = vmatprep.subr.mxu0 0.0
    %748 = vmatpush1.msra.mxu0 0.0
    %749 = vmatprep.subr.mxu0 0.0
    %750 = vmatpush1.msra.mxu0 0.0
    %751 = vmatprep.subr.mxu0 0.0
    %752 = vmatpush1.msra.mxu0 0.0
    %753 = vmatprep.subr.mxu0 0.0
    %754 = vmatpush1.msra.mxu0 0.0
    %755 = vmatprep.subr.mxu0 0.0
    %756 = vmatpush1.msra.mxu0 0.0
    %757 = vmatprep.subr.mxu0 0.0
    %758 = vmatpush1.msra.mxu0 0.0
    %759 = vmatprep.subr.mxu0 0.0
    %760 = vmatpush1.msra.mxu0 0.0
    %761 = vmatprep.subr.mxu0 0.0
    %762 = vmatpush1.msra.mxu0 0.0
    %763 = vmatprep.subr.mxu0 0.0
    %764 = vmatpush1.msra.mxu0 0.0
    %765 = vmatprep.subr.mxu0 0.0
    %766 = vmatpush1.msra.mxu0 0.0
    %767 = vmatprep.subr.mxu0 0.0
    %768 = vmatpush1.msra.mxu0 0.0
    %769 = vmatprep.subr.mxu0 0.0
    %770 = vmatpush1.msra.mxu0 0.0
    %771 = vmatprep.subr.mxu0 0.0
    %772 = vmatpush1.msra.mxu0 0.0
    %773 = vmatprep.subr.mxu0 0.0
    %774 = vmatpush1.msra.mxu0 0.0
    %775 = vmatprep.subr.mxu0 0.0
    %776 = vmatpush1.msra.mxu0 0.0
    %777 = vmatprep.subr.mxu0 0.0
    %778 = vmatpush1.msra.mxu0 0.0
    %779 = vmatprep.mubr.f32.mxu0 0.0
    %780 = vmatmul.mubr.f32.gmra.mrb[0].mxu0 %v704
    %v781 = vpop.f32.mrb[0].mxu0
    %v782 = vadd.f32 0.0, %v781
    %v783 = vpop.f32.mrb[0].mxu0
    %784 = vmatprep.mubr.f32.mxu0 0.0
    %785 = vmatmul.mubr.f32.gmra.mrb[0].mxu0 %v707
    %v786 = vpop.f32.mrb[0].mxu0
    %v787 = vadd.f32 0.0, %v786
    %v788 = vpop.f32.mrb[0].mxu0
    %789 = vmatprep.mubr.f32.mxu0 0.0
    %790 = vmatmul.mubr.f32.gmra.mrb[0].mxu0 %v710
    %v791 = vpop.f32.mrb[0].mxu0
    %v792 = vadd.f32 0.0, %v791
    %v793 = vpop.f32.mrb[0].mxu0
    %794 = vmatprep.mubr.f32.mxu0 0.0
    %795 = vmatmul.mubr.f32.gmra.mrb[0].mxu0 %v713
    %v796 = vpop.f32.mrb[0].mxu0
    %v797 = vadd.f32 0.0, %v796
    %v798 = vpop.f32.mrb[0].mxu0
    %799 = vdwg.mxu0
    %vm800 = vcmp.gt.f32.partialorder %v782, 0.0
    %vm801 = vcmp.gt.f32.partialorder %v787, 0.0
    %vm802 = vcmp.gt.f32.partialorder %v792, 0.0
    %vm803 = vcmp.gt.f32.partialorder %v797, 0.0
    %v804 = vmul.f32 %v782, 0.2
    %v805 = vmul.f32 %v787, 0.2
    %v806 = vmul.f32 %v792, 0.2
    %v807 = vmul.f32 %v797, 0.2
    %v808 = vsel %vm800, %v782, %v804
    %v809 = vsel %vm801, %v787, %v805
    %v810 = vsel %vm802, %v792, %v806
    %v811 = vsel %vm803, %v797, %v807
    %816 = vrot.lane.b32.xlu0 %v808, 8
    %v817 = vpop.permute.xlu0 %816
    %818 = vrot.lane.b32.xlu0 %v809, 8
    %v819 = vpop.permute.xlu0 %818
    %820 = vrot.lane.b32.xlu0 %v810, 8
    %v821 = vpop.permute.xlu0 %820
    %822 = vrot.lane.b32.xlu0 %v811, 8
    %v823 = vpop.permute.xlu0 %822
    %v828 = vsel %vm460, %v697, %v817
    %v829 = vsel %vm460, %v698, %v819
    %v830 = vsel %vm460, %v699, %v821
    %v831 = vsel %vm460, %v700, %v823
    %v836 = vunpack.c.l.b16 %v168
    %v837 = vunpack.c.l.b16 %v169
    %v838 = vunpack.c.l.b16 %v170
    %v839 = vunpack.c.l.b16 %v171
    %v840 = vpack.c.b16 %v837, %v836
    %v841 = vpack.c.b16 %v839, %v838
    %v843 = vsel %vm377, %v840, 0
    %v846 = vsel %vm377, %v841, 0
    %848 = vmatprep.subr.bf16.mxu0 0
    %849 = vmatpush1.bf16.msra.mxu0 %v618
    %850 = vmatprep.subr.bf16.mxu0 0
    %851 = vmatpush1.bf16.msra.mxu0 0
    %852 = vmatprep.subr.bf16.mxu0 0
    %853 = vmatpush1.bf16.msra.mxu0 0
    %854 = vmatprep.subr.bf16.mxu0 0
    %855 = vmatpush1.bf16.msra.mxu0 0
    %856 = vmatprep.subr.bf16.mxu0 0
    %857 = vmatpush1.bf16.msra.mxu0 0
    %858 = vmatprep.subr.bf16.mxu0 0
    %859 = vmatpush1.bf16.msra.mxu0 0
    %860 = vmatprep.subr.bf16.mxu0 0
    %861 = vmatpush1.bf16.msra.mxu0 0
    %862 = vmatprep.subr.bf16.mxu0 0
    %863 = vmatpush1.bf16.msra.mxu0 0
    %864 = vmatprep.subr.bf16.mxu0 0
    %865 = vmatpush1.bf16.msra.mxu0 0
    %866 = vmatprep.subr.bf16.mxu0 0
    %867 = vmatpush1.bf16.msra.mxu0 0
    %868 = vmatprep.subr.bf16.mxu0 0
    %869 = vmatpush1.bf16.msra.mxu0 0
    %870 = vmatprep.subr.bf16.mxu0 0
    %871 = vmatpush1.bf16.msra.mxu0 0
    %872 = vmatprep.subr.bf16.mxu0 0
    %873 = vmatpush1.bf16.msra.mxu0 0
    %874 = vmatprep.subr.bf16.mxu0 0
    %875 = vmatpush1.bf16.msra.mxu0 0
    %876 = vmatprep.subr.bf16.mxu0 0
    %877 = vmatpush1.bf16.msra.mxu0 0
    %878 = vmatprep.subr.bf16.mxu0 0
    %879 = vmatpush1.bf16.msra.mxu0 0
    %880 = vmatprep.mubr.bf16.mxu0 0
    %881 = vmatmul.mubr.bf16.gmra.mrb[0].mxu0 %v843
    %v882 = vpop.f32.mrb[0].mxu0
    %v883 = vadd.f32 %v671, %v882
    %v884 = vpop.f32.mrb[0].mxu0
    %v885 = vpop.f32.mrb[0].mxu0
    %v886 = vadd.f32 %v674, %v885
    %v887 = vpop.f32.mrb[0].mxu0
    %888 = vmatprep.mubr.bf16.mxu0 0
    %889 = vmatmul.mubr.bf16.gmra.mrb[0].mxu0 %v846
    %v890 = vpop.f32.mrb[0].mxu0
    %v891 = vadd.f32 %v679, %v890
    %v892 = vpop.f32.mrb[0].mxu0
    %v893 = vpop.f32.mrb[0].mxu0
    %v894 = vadd.f32 %v682, %v893
    %v895 = vpop.f32.mrb[0].mxu0
    %896 = vdwg.mxu0
    %v897 = vld [vmem:[%s25] sm:$0xff]
    %v898 = vld [vmem:[%s25 + $0x8] sm:$0xff]
    %v900 = vsel %vm377, %v828, 0
    %v903 = vsel %vm377, %v829, 0
    %v906 = vsel %vm377, %v830, 0
    %v909 = vsel %vm377, %v831, 0
    %911 = vmatprep.subr.mxu0 0.0
    %912 = vmatpush1.msra.mxu0 %v897
    %913 = vmatprep.subr.mxu0 0.0
    %914 = vmatpush1.msra.mxu0 %v898
    %915 = vmatprep.subr.mxu0 0.0
    %916 = vmatpush1.msra.mxu0 0.0
    %917 = vmatprep.subr.mxu0 0.0
    %918 = vmatpush1.msra.mxu0 0.0
    %919 = vmatprep.subr.mxu0 0.0
    %920 = vmatpush1.msra.mxu0 0.0
    %921 = vmatprep.subr.mxu0 0.0
    %922 = vmatpush1.msra.mxu0 0.0
    %923 = vmatprep.subr.mxu0 0.0
    %924 = vmatpush1.msra.mxu0 0.0
    %925 = vmatprep.subr.mxu0 0.0
    %926 = vmatpush1.msra.mxu0 0.0
    %927 = vmatprep.subr.mxu0 0.0
    %928 = vmatpush1.msra.mxu0 0.0
    %929 = vmatprep.subr.mxu0 0.0
    %930 = vmatpush1.msra.mxu0 0.0
    %931 = vmatprep.subr.mxu0 0.0
    %932 = vmatpush1.msra.mxu0 0.0
    %933 = vmatprep.subr.mxu0 0.0
    %934 = vmatpush1.msra.mxu0 0.0
    %935 = vmatprep.subr.mxu0 0.0
    %936 = vmatpush1.msra.mxu0 0.0
    %937 = vmatprep.subr.mxu0 0.0
    %938 = vmatpush1.msra.mxu0 0.0
    %939 = vmatprep.subr.mxu0 0.0
    %940 = vmatpush1.msra.mxu0 0.0
    %941 = vmatprep.subr.mxu0 0.0
    %942 = vmatpush1.msra.mxu0 0.0
    %943 = vmatprep.subr.mxu0 0.0
    %944 = vmatpush1.msra.mxu0 0.0
    %945 = vmatprep.subr.mxu0 0.0
    %946 = vmatpush1.msra.mxu0 0.0
    %947 = vmatprep.subr.mxu0 0.0
    %948 = vmatpush1.msra.mxu0 0.0
    %949 = vmatprep.subr.mxu0 0.0
    %950 = vmatpush1.msra.mxu0 0.0
    %951 = vmatprep.subr.mxu0 0.0
    %952 = vmatpush1.msra.mxu0 0.0
    %953 = vmatprep.subr.mxu0 0.0
    %954 = vmatpush1.msra.mxu0 0.0
    %955 = vmatprep.subr.mxu0 0.0
    %956 = vmatpush1.msra.mxu0 0.0
    %957 = vmatprep.subr.mxu0 0.0
    %958 = vmatpush1.msra.mxu0 0.0
    %959 = vmatprep.subr.mxu0 0.0
    %960 = vmatpush1.msra.mxu0 0.0
    %961 = vmatprep.subr.mxu0 0.0
    %962 = vmatpush1.msra.mxu0 0.0
    %963 = vmatprep.subr.mxu0 0.0
    %964 = vmatpush1.msra.mxu0 0.0
    %965 = vmatprep.subr.mxu0 0.0
    %966 = vmatpush1.msra.mxu0 0.0
    %967 = vmatprep.subr.mxu0 0.0
    %968 = vmatpush1.msra.mxu0 0.0
    %969 = vmatprep.subr.mxu0 0.0
    %970 = vmatpush1.msra.mxu0 0.0
    %971 = vmatprep.subr.mxu0 0.0
    %972 = vmatpush1.msra.mxu0 0.0
    %973 = vmatprep.subr.mxu0 0.0
    %974 = vmatpush1.msra.mxu0 0.0
    %975 = vmatprep.mubr.f32.mxu0 0.0
    %976 = vmatmul.mubr.f32.gmra.mrb[0].mxu0 %v900
    %v977 = vpop.f32.mrb[0].mxu0
    %v978 = vadd.f32 0.0, %v977
    %v979 = vpop.f32.mrb[0].mxu0
    %980 = vmatprep.mubr.f32.mxu0 0.0
    %981 = vmatmul.mubr.f32.gmra.mrb[0].mxu0 %v903
    %v982 = vpop.f32.mrb[0].mxu0
    %v983 = vadd.f32 0.0, %v982
    %v984 = vpop.f32.mrb[0].mxu0
    %985 = vmatprep.mubr.f32.mxu0 0.0
    %986 = vmatmul.mubr.f32.gmra.mrb[0].mxu0 %v906
    %v987 = vpop.f32.mrb[0].mxu0
    %v988 = vadd.f32 0.0, %v987
    %v989 = vpop.f32.mrb[0].mxu0
    %990 = vmatprep.mubr.f32.mxu0 0.0
    %991 = vmatmul.mubr.f32.gmra.mrb[0].mxu0 %v909
    %v992 = vpop.f32.mrb[0].mxu0
    %v993 = vadd.f32 0.0, %v992
    %v994 = vpop.f32.mrb[0].mxu0
    %995 = vdwg.mxu0
    %v996 = vadd.f32 %v883, %v978
    %v997 = vadd.f32 %v886, %v983
    %v998 = vadd.f32 %v891, %v988
    %v999 = vadd.f32 %v894, %v993
    %vm1000 = vcmp.gt.f32.partialorder %v996, 0.0
    %vm1001 = vcmp.gt.f32.partialorder %v997, 0.0
    %vm1002 = vcmp.gt.f32.partialorder %v998, 0.0
    %vm1003 = vcmp.gt.f32.partialorder %v999, 0.0
    %v1004 = vmul.f32 %v996, 0.2
    %v1005 = vmul.f32 %v997, 0.2
    %v1006 = vmul.f32 %v998, 0.2
    %v1007 = vmul.f32 %v999, 0.2
    %v1008 = vsel %vm1000, %v996, %v1004
    %v1009 = vsel %vm1001, %v997, %v1005
    %v1010 = vsel %vm1002, %v998, %v1006
    %v1011 = vsel %vm1003, %v999, %v1007
    %vm1012 = vcmask 31744
    %v1013 = vsel %vm1012, %v1008, -inf
    %v1014 = vsel %vm1012, %v1009, -inf
    %v1015 = vsel %vm1012, %v1010, -inf
    %v1016 = vsel %vm1012, %v1011, -inf
    %v1017 = vmax.f32 %v1013, %v1014
    %v1018 = vmax.f32 %v1015, %v1016
    %v1019 = vmax.f32 %v1017, %v1018
    %v1020 = vrot.slane %v1019, 4
    %v1021 = vmax.f32 %v1019, %v1020
    %v1022 = vrot.slane %v1021, 2
    %v1023 = vmax.f32 %v1021, %v1022
    %v1024 = vrot.slane %v1023, 1
    %v1025 = vmax.f32 %v1023, %v1024
    %v1026 = vsub.f32 %v1008, %v1025
    %v1027 = vsub.f32 %v1009, %v1025
    %v1028 = vsub.f32 %v1010, %v1025
    %v1029 = vsub.f32 %v1011, %v1025
    %v1030 = vmul.f32 %v1026, 1.442695
    %v1031 = vpow.pop %v1030
    %v1032 = vmul.f32 %v1027, 1.442695
    %v1033 = vpow.pop %v1032
    %v1034 = vmul.f32 %v1028, 1.442695
    %v1035 = vpow.pop %v1034
    %v1036 = vmul.f32 %v1029, 1.442695
    %v1037 = vpow.pop %v1036
    %v1038 = vld [vmem:[%s27] sm:$0xff]
    %v1039 = vsel %vm460, %v808, 0
    %v1041 = vsel %vm460, %v809, 0
    %v1043 = vsel %vm460, %v810, 0
    %v1045 = vsel %vm460, %v811, 0
    %1047 = vmatprep.subr.mxu0 0.0
    %1048 = vmatpush1.msra.mxu0 %v1038
    %1049 = vmatprep.subr.mxu0 0.0
    %1050 = vmatpush1.msra.mxu0 0.0
    %1051 = vmatprep.subr.mxu0 0.0
    %1052 = vmatpush1.msra.mxu0 0.0
    %1053 = vmatprep.subr.mxu0 0.0
    %1054 = vmatpush1.msra.mxu0 0.0
    %1055 = vmatprep.subr.mxu0 0.0
    %1056 = vmatpush1.msra.mxu0 0.0
    %1057 = vmatprep.subr.mxu0 0.0
    %1058 = vmatpush1.msra.mxu0 0.0
    %1059 = vmatprep.subr.mxu0 0.0
    %1060 = vmatpush1.msra.mxu0 0.0
    %1061 = vmatprep.subr.mxu0 0.0
    %1062 = vmatpush1.msra.mxu0 0.0
    %1063 = vmatprep.subr.mxu0 0.0
    %1064 = vmatpush1.msra.mxu0 0.0
    %1065 = vmatprep.subr.mxu0 0.0
    %1066 = vmatpush1.msra.mxu0 0.0
    %1067 = vmatprep.subr.mxu0 0.0
    %1068 = vmatpush1.msra.mxu0 0.0
    %1069 = vmatprep.subr.mxu0 0.0
    %1070 = vmatpush1.msra.mxu0 0.0
    %1071 = vmatprep.subr.mxu0 0.0
    %1072 = vmatpush1.msra.mxu0 0.0
    %1073 = vmatprep.subr.mxu0 0.0
    %1074 = vmatpush1.msra.mxu0 0.0
    %1075 = vmatprep.subr.mxu0 0.0
    %1076 = vmatpush1.msra.mxu0 0.0
    %1077 = vmatprep.subr.mxu0 0.0
    %1078 = vmatpush1.msra.mxu0 0.0
    %1079 = vmatprep.subr.mxu0 0.0
    %1080 = vmatpush1.msra.mxu0 0.0
    %1081 = vmatprep.subr.mxu0 0.0
    %1082 = vmatpush1.msra.mxu0 0.0
    %1083 = vmatprep.subr.mxu0 0.0
    %1084 = vmatpush1.msra.mxu0 0.0
    %1085 = vmatprep.subr.mxu0 0.0
    %1086 = vmatpush1.msra.mxu0 0.0
    %1087 = vmatprep.subr.mxu0 0.0
    %1088 = vmatpush1.msra.mxu0 0.0
    %1089 = vmatprep.subr.mxu0 0.0
    %1090 = vmatpush1.msra.mxu0 0.0
    %1091 = vmatprep.subr.mxu0 0.0
    %1092 = vmatpush1.msra.mxu0 0.0
    %1093 = vmatprep.subr.mxu0 0.0
    %1094 = vmatpush1.msra.mxu0 0.0
    %1095 = vmatprep.subr.mxu0 0.0
    %1096 = vmatpush1.msra.mxu0 0.0
    %1097 = vmatprep.subr.mxu0 0.0
    %1098 = vmatpush1.msra.mxu0 0.0
    %1099 = vmatprep.subr.mxu0 0.0
    %1100 = vmatpush1.msra.mxu0 0.0
    %1101 = vmatprep.subr.mxu0 0.0
    %1102 = vmatpush1.msra.mxu0 0.0
    %1103 = vmatprep.subr.mxu0 0.0
    %1104 = vmatpush1.msra.mxu0 0.0
    %1105 = vmatprep.subr.mxu0 0.0
    %1106 = vmatpush1.msra.mxu0 0.0
    %1107 = vmatprep.subr.mxu0 0.0
    %1108 = vmatpush1.msra.mxu0 0.0
    %1109 = vmatprep.subr.mxu0 0.0
    %1110 = vmatpush1.msra.mxu0 0.0
    %1111 = vmatprep.mubr.f32.mxu0 0.0
    %1112 = vmatmul.mubr.f32.gmra.mrb[0].mxu0 %v1039
    %v1113 = vpop.f32.mrb[0].mxu0
    %v1114 = vadd.f32 0.0, %v1113
    %v1115 = vpop.f32.mrb[0].mxu0
    %1116 = vmatprep.mubr.f32.mxu0 0.0
    %1117 = vmatmul.mubr.f32.gmra.mrb[0].mxu0 %v1041
    %v1118 = vpop.f32.mrb[0].mxu0
    %v1119 = vadd.f32 0.0, %v1118
    %v1120 = vpop.f32.mrb[0].mxu0
    %1121 = vmatprep.mubr.f32.mxu0 0.0
    %1122 = vmatmul.mubr.f32.gmra.mrb[0].mxu0 %v1043
    %v1123 = vpop.f32.mrb[0].mxu0
    %v1124 = vadd.f32 0.0, %v1123
    %v1125 = vpop.f32.mrb[0].mxu0
    %1126 = vmatprep.mubr.f32.mxu0 0.0
    %1127 = vmatmul.mubr.f32.gmra.mrb[0].mxu0 %v1045
    %v1128 = vpop.f32.mrb[0].mxu0
    %v1129 = vadd.f32 0.0, %v1128
    %v1130 = vpop.f32.mrb[0].mxu0
    %1131 = vdwg.mxu0
    %1136 = vrot.lane.b32.xlu0 %v1114, 4
    %v1137 = vpop.permute.xlu0 %1136
    %1138 = vrot.lane.b32.xlu0 %v1119, 4
    %v1139 = vpop.permute.xlu0 %1138
    %1140 = vrot.lane.b32.xlu0 %v1124, 4
    %v1141 = vpop.permute.xlu0 %1140
    %1142 = vrot.lane.b32.xlu0 %v1129, 4
    %v1143 = vpop.permute.xlu0 %1142
    %v1148 = vadd.f32 %v671, %v1137
    %v1149 = vadd.f32 %v674, %v1139
    %v1150 = vadd.f32 %v679, %v1141
    %v1151 = vadd.f32 %v682, %v1143
    %v1152 = vld [vmem:[%s29] sm:$0x1]
    %v1154 = vlaneseq
    %v1155 = vshrl.u32 %v1154, 7
    %v1156 = vsub.s32 0, %v1155
    %v1157 = vrot.slane %v1152, %v1156
    %1158 = vrot.lane.b32.xlu0 %v1157, 4
    %v1159 = vpop.permute.xlu0 %1158
    %v1161 = vadd.f32 %v1148, %v1159
    %v1162 = vadd.f32 %v1149, %v1159
    %v1163 = vadd.f32 %v1150, %v1159
    %v1164 = vadd.f32 %v1151, %v1159
    %1166 = vset.pattern.permute.xlu0 0
    %1167 = vperm.xlu0 %1166, %v1031
    %v1168 = vpop.permute.xlu0 %1167
    %1171 = vset.pattern.permute.xlu0 0
    %1172 = vperm.xlu0 %1171, %v1033
    %v1173 = vpop.permute.xlu0 %1172
    %1176 = vset.pattern.permute.xlu0 0
    %1177 = vperm.xlu0 %1176, %v1035
    %v1178 = vpop.permute.xlu0 %1177
    %1181 = vset.pattern.permute.xlu0 0
    %1182 = vperm.xlu0 %1181, %v1037
    %v1183 = vpop.permute.xlu0 %1182
    %v1185 = vmul.f32 %v1161, %v1168
    %v1186 = vmul.f32 %v1162, %v1173
    %v1187 = vmul.f32 %v1163, %v1178
    %v1188 = vmul.f32 %v1164, %v1183
    %1189 = vset.pattern.permute.xlu0 1
    %1190 = vperm.xlu0 %1189, %v1031
    %v1191 = vpop.permute.xlu0 %1190
    %1193 = vset.pattern.permute.xlu0 1
    %1194 = vperm.xlu0 %1193, %v1033
    %v1195 = vpop.permute.xlu0 %1194
    %1197 = vset.pattern.permute.xlu0 1
    %1198 = vperm.xlu0 %1197, %v1035
    %v1199 = vpop.permute.xlu0 %1198
    %1201 = vset.pattern.permute.xlu0 1
    %1202 = vperm.xlu0 %1201, %v1037
    %v1203 = vpop.permute.xlu0 %1202
    %v1205 = vmul.f32 %v1161, %v1191
    %v1206 = vmul.f32 %v1162, %v1195
    %v1207 = vmul.f32 %v1163, %v1199
    %v1208 = vmul.f32 %v1164, %v1203
    %1209 = vset.pattern.permute.xlu0 2
    %1210 = vperm.xlu0 %1209, %v1031
    %v1211 = vpop.permute.xlu0 %1210
    %1213 = vset.pattern.permute.xlu0 2
    %1214 = vperm.xlu0 %1213, %v1033
    %v1215 = vpop.permute.xlu0 %1214
    %1217 = vset.pattern.permute.xlu0 2
    %1218 = vperm.xlu0 %1217, %v1035
    %v1219 = vpop.permute.xlu0 %1218
    %1221 = vset.pattern.permute.xlu0 2
    %1222 = vperm.xlu0 %1221, %v1037
    %v1223 = vpop.permute.xlu0 %1222
    %v1225 = vmul.f32 %v1161, %v1211
    %v1226 = vmul.f32 %v1162, %v1215
    %v1227 = vmul.f32 %v1163, %v1219
    %v1228 = vmul.f32 %v1164, %v1223
    %1229 = vset.pattern.permute.xlu0 3
    %1230 = vperm.xlu0 %1229, %v1031
    %v1231 = vpop.permute.xlu0 %1230
    %1233 = vset.pattern.permute.xlu0 3
    %1234 = vperm.xlu0 %1233, %v1033
    %v1235 = vpop.permute.xlu0 %1234
    %1237 = vset.pattern.permute.xlu0 3
    %1238 = vperm.xlu0 %1237, %v1035
    %v1239 = vpop.permute.xlu0 %1238
    %1241 = vset.pattern.permute.xlu0 3
    %1242 = vperm.xlu0 %1241, %v1037
    %v1243 = vpop.permute.xlu0 %1242
    %v1245 = vmul.f32 %v1161, %v1231
    %v1246 = vmul.f32 %v1162, %v1235
    %v1247 = vmul.f32 %v1163, %v1239
    %v1248 = vmul.f32 %v1164, %v1243
    %1253 = vrot.lane.b32.xlu0 %v1185, 124
    %v1254 = vpop.permute.xlu0 %1253
    %1255 = vrot.lane.b32.xlu0 %v1186, 124
    %v1256 = vpop.permute.xlu0 %1255
    %1257 = vrot.lane.b32.xlu0 %v1187, 124
    %v1258 = vpop.permute.xlu0 %1257
    %1259 = vrot.lane.b32.xlu0 %v1188, 124
    %v1260 = vpop.permute.xlu0 %1259
    %1269 = vrot.lane.b32.xlu0 %v1205, 4
    %v1270 = vpop.permute.xlu0 %1269
    %1271 = vrot.lane.b32.xlu0 %v1206, 4
    %v1272 = vpop.permute.xlu0 %1271
    %1273 = vrot.lane.b32.xlu0 %v1207, 4
    %v1274 = vpop.permute.xlu0 %1273
    %1275 = vrot.lane.b32.xlu0 %v1208, 4
    %v1276 = vpop.permute.xlu0 %1275
    %1285 = vrot.lane.b32.xlu0 %v1225, 12
    %v1286 = vpop.permute.xlu0 %1285
    %1287 = vrot.lane.b32.xlu0 %v1226, 12
    %v1288 = vpop.permute.xlu0 %1287
    %1289 = vrot.lane.b32.xlu0 %v1227, 12
    %v1290 = vpop.permute.xlu0 %1289
    %1291 = vrot.lane.b32.xlu0 %v1228, 12
    %v1292 = vpop.permute.xlu0 %1291
    %1301 = vrot.lane.b32.xlu0 %v1245, 20
    %v1302 = vpop.permute.xlu0 %1301
    %1303 = vrot.lane.b32.xlu0 %v1246, 20
    %v1304 = vpop.permute.xlu0 %1303
    %1305 = vrot.lane.b32.xlu0 %v1247, 20
    %v1306 = vpop.permute.xlu0 %1305
    %1307 = vrot.lane.b32.xlu0 %v1248, 20
    %v1308 = vpop.permute.xlu0 %1307
    %v1313 = vsel %vm460, %v1254, %v1270
    %v1314 = vsel %vm460, %v1256, %v1272
    %v1315 = vsel %vm460, %v1258, %v1274
    %v1316 = vsel %vm460, %v1260, %v1276
    %v1317 = vsel %vm377, %v1313, %v1286
    %v1318 = vsel %vm377, %v1314, %v1288
    %v1319 = vsel %vm377, %v1315, %v1290
    %v1320 = vsel %vm377, %v1316, %v1292
    %vm1321 = vcmask 195584
    %v1322 = vsel %vm1321, %v1317, %v1302
    %v1323 = vsel %vm1321, %v1318, %v1304
    %v1324 = vsel %vm1321, %v1319, %v1306
    %v1325 = vsel %vm1321, %v1320, %v1308
    %v1326 = vpack.c.bf16 %v1033, %v1031
    %v1327 = vpack.c.bf16 %v1037, %v1035
    %1330 = vxpose.xlu0.c.b16.start [1/8] %v840, 128
    %1331 = vxpose.xlu0.c.b16.cont [2/8] %v841, 128
    %1332 = vxpose.xlu0.c.b16.cont [3/8] 0, 128
    %1333 = vxpose.xlu0.c.b16.cont [4/8] 0, 128
    %1334 = vxpose.xlu0.c.b16.cont [5/8] 0, 128
    %1335 = vxpose.xlu0.c.b16.cont [6/8] 0, 128
    %1336 = vxpose.xlu0.c.b16.cont [7/8] 0, 128
    %1337 = vxpose.xlu0.c.b16.end [8/8] 0, 128
    %v1338 = vpop.trf.xlu0
    %v1339 = vpop.trf.xlu0
    %v1340 = vpop.trf.xlu0
    %v1341 = vpop.trf.xlu0
    %v1342 = vpop.trf.xlu0
    %v1343 = vpop.trf.xlu0
    %v1344 = vpop.trf.xlu0
    %v1345 = vpop.trf.xlu0
    %v1347 = vsel %vm185, %v1338, 0
    %1349 = vmatprep.subr.bf16.mxu0 0
    %1350 = vmatpush1.bf16.msra.mxu0 %v1326
    %1351 = vmatprep.subr.bf16.mxu0 0
    %1352 = vmatpush1.bf16.msra.mxu0 %v1327
    %1353 = vmatprep.subr.bf16.mxu0 0
    %1354 = vmatpush1.bf16.msra.mxu0 0
    %1355 = vmatprep.subr.bf16.mxu0 0
    %1356 = vmatpush1.bf16.msra.mxu0 0
    %1357 = vmatprep.subr.bf16.mxu0 0
    %1358 = vmatpush1.bf16.msra.mxu0 0
    %1359 = vmatprep.subr.bf16.mxu0 0
    %1360 = vmatpush1.bf16.msra.mxu0 0
    %1361 = vmatprep.subr.bf16.mxu0 0
    %1362 = vmatpush1.bf16.msra.mxu0 0
    %1363 = vmatprep.subr.bf16.mxu0 0
    %1364 = vmatpush1.bf16.msra.mxu0 0
    %1365 = vmatprep.subr.bf16.mxu0 0
    %1366 = vmatpush1.bf16.msra.mxu0 0
    %1367 = vmatprep.subr.bf16.mxu0 0
    %1368 = vmatpush1.bf16.msra.mxu0 0
    %1369 = vmatprep.subr.bf16.mxu0 0
    %1370 = vmatpush1.bf16.msra.mxu0 0
    %1371 = vmatprep.subr.bf16.mxu0 0
    %1372 = vmatpush1.bf16.msra.mxu0 0
    %1373 = vmatprep.subr.bf16.mxu0 0
    %1374 = vmatpush1.bf16.msra.mxu0 0
    %1375 = vmatprep.subr.bf16.mxu0 0
    %1376 = vmatpush1.bf16.msra.mxu0 0
    %1377 = vmatprep.subr.bf16.mxu0 0
    %1378 = vmatpush1.bf16.msra.mxu0 0
    %1379 = vmatprep.subr.bf16.mxu0 0
    %1380 = vmatpush1.bf16.msra.mxu0 0
    %1381 = vmatprep.mubr.bf16.mxu0 0
    %1382 = vmatmul.mubr.bf16.gmra.mrb[0].mxu0 %v1347
    %v1383 = vpop.f32.mrb[0].mxu0
    %v1384 = vadd.f32 0.0, %v1383
    %v1385 = vpop.f32.mrb[0].mxu0
    %v1386 = vpop.f32.mrb[0].mxu0
    %v1387 = vadd.f32 0.0, %v1386
    %v1388 = vpop.f32.mrb[0].mxu0
    %1389 = vdwg.mxu0
    %v1390 = vpack.c.bf16 %v1323, %v1322
    %v1391 = vpack.c.bf16 %v1325, %v1324
    %1392 = vmatprep.subr.bf16.mxu0 0
    %1393 = vmatpush1.bf16.msra.mxu0 %v1390
    %1394 = vmatprep.subr.bf16.mxu0 0
    %1395 = vmatpush1.bf16.msra.mxu0 %v1391
    %1396 = vmatprep.subr.bf16.mxu0 0
    %1397 = vmatpush1.bf16.msra.mxu0 0
    %1398 = vmatprep.subr.bf16.mxu0 0
    %1399 = vmatpush1.bf16.msra.mxu0 0
    %1400 = vmatprep.subr.bf16.mxu0 0
    %1401 = vmatpush1.bf16.msra.mxu0 0
    %1402 = vmatprep.subr.bf16.mxu0 0
    %1403 = vmatpush1.bf16.msra.mxu0 0
    %1404 = vmatprep.subr.bf16.mxu0 0
    %1405 = vmatpush1.bf16.msra.mxu0 0
    %1406 = vmatprep.subr.bf16.mxu0 0
    %1407 = vmatpush1.bf16.msra.mxu0 0
    %1408 = vmatprep.subr.bf16.mxu0 0
    %1409 = vmatpush1.bf16.msra.mxu0 0
    %1410 = vmatprep.subr.bf16.mxu0 0
    %1411 = vmatpush1.bf16.msra.mxu0 0
    %1412 = vmatprep.subr.bf16.mxu0 0
    %1413 = vmatpush1.bf16.msra.mxu0 0
    %1414 = vmatprep.subr.bf16.mxu0 0
    %1415 = vmatpush1.bf16.msra.mxu0 0
    %1416 = vmatprep.subr.bf16.mxu0 0
    %1417 = vmatpush1.bf16.msra.mxu0 0
    %1418 = vmatprep.subr.bf16.mxu0 0
    %1419 = vmatpush1.bf16.msra.mxu0 0
    %1420 = vmatprep.subr.bf16.mxu0 0
    %1421 = vmatpush1.bf16.msra.mxu0 0
    %1422 = vmatprep.subr.bf16.mxu0 0
    %1423 = vmatpush1.bf16.msra.mxu0 0
    %1424 = vmatprep.mubr.bf16.mxu0 0
    %1425 = vmatmul.mubr.bf16.gmra.mrb[0].mxu0 %v1347
    %v1426 = vpop.f32.mrb[0].mxu0
    %v1427 = vadd.f32 0.0, %v1426
    %v1428 = vpop.f32.mrb[0].mxu0
    %v1429 = vpop.f32.mrb[0].mxu0
    %v1430 = vadd.f32 0.0, %v1429
    %v1431 = vpop.f32.mrb[0].mxu0
    %1432 = vdwg.mxu0
    %v1433 = vmax.f32 %v1384, 1e-20
    %v1434 = vmax.f32 %v1387, 1e-20
    %v1435 = vrcp.pop %v1433
    %v1436 = vrcp.pop %v1434
    %1438 = vset.pattern.permute.xlu0 0
    %1439 = vperm.xlu0 %1438, %v1435
    %v1440 = vpop.permute.xlu0 %1439
    %1443 = vset.pattern.permute.xlu0 0
    %1444 = vperm.xlu0 %1443, %v1436
    %v1445 = vpop.permute.xlu0 %1444
    %v1447 = vmul.f32 %v1427, %v1440
    %v1448 = vmul.f32 %v1430, %v1445
    %v1449 = vadd.f32 %v1447, %v451
    %v1450 = vadd.f32 %v1448, %v456
    %1451 = vset.pattern.permute.xlu0 1
    %1452 = vperm.xlu0 %1451, %v1435
    %v1453 = vpop.permute.xlu0 %1452
    %1455 = vset.pattern.permute.xlu0 1
    %1456 = vperm.xlu0 %1455, %v1436
    %v1457 = vpop.permute.xlu0 %1456
    %v1459 = vmul.f32 %v1427, %v1453
    %v1460 = vmul.f32 %v1430, %v1457
    %1461 = vrot.lane.b32.xlu0 %v451, 8
    %v1462 = vpop.permute.xlu0 %1461
    %1463 = vrot.lane.b32.xlu0 %v456, 8
    %v1464 = vpop.permute.xlu0 %1463
    %v1467 = vadd.f32 %v1459, %v1462
    %v1468 = vadd.f32 %v1460, %v1464
    %1469 = vset.pattern.permute.xlu0 2
    %1470 = vperm.xlu0 %1469, %v1435
    %v1471 = vpop.permute.xlu0 %1470
    %1473 = vset.pattern.permute.xlu0 2
    %1474 = vperm.xlu0 %1473, %v1436
    %v1475 = vpop.permute.xlu0 %1474
    %v1477 = vmul.f32 %v1427, %v1471
    %v1478 = vmul.f32 %v1430, %v1475
    %1479 = vrot.lane.b32.xlu0 %v451, 16
    %v1480 = vpop.permute.xlu0 %1479
    %1481 = vrot.lane.b32.xlu0 %v456, 16
    %v1482 = vpop.permute.xlu0 %1481
    %v1485 = vadd.f32 %v1477, %v1480
    %v1486 = vadd.f32 %v1478, %v1482
    %1487 = vset.pattern.permute.xlu0 3
    %1488 = vperm.xlu0 %1487, %v1435
    %v1489 = vpop.permute.xlu0 %1488
    %1491 = vset.pattern.permute.xlu0 3
    %1492 = vperm.xlu0 %1491, %v1436
    %v1493 = vpop.permute.xlu0 %1492
    %v1495 = vmul.f32 %v1427, %v1489
    %v1496 = vmul.f32 %v1430, %v1493
    %1497 = vrot.lane.b32.xlu0 %v451, 24
    %v1498 = vpop.permute.xlu0 %1497
    %1499 = vrot.lane.b32.xlu0 %v456, 24
    %v1500 = vpop.permute.xlu0 %1499
    %v1503 = vadd.f32 %v1495, %v1498
    %v1504 = vadd.f32 %v1496, %v1500
    %v1505 = vsel %vm460, %v1449, %v1467
    %v1506 = vsel %vm460, %v1450, %v1468
    %v1507 = vsel %vm377, %v1505, %v1485
    %v1508 = vsel %vm377, %v1506, %v1486
    %v1509 = vsel %vm1321, %v1507, %v1503
    %v1510 = vsel %vm1321, %v1508, %v1504
    %v1511 = vld [vmem:[%s31] sm:$0x1]
    %v1513 = vlaneseq
    %v1514 = vshrl.u32 %v1513, 7
    %v1515 = vsub.s32 0, %v1514
    %v1516 = vrot.slane %v1511, %v1515
    %v1518 = vmul.f32 %v1509, %v1516
    %v1519 = vmul.f32 %v1510, %v1516
    %v1520 = vld [vmem:[%s33] sm:$0x1]
    %v1522 = vlaneseq
    %v1523 = vshrl.u32 %v1522, 7
    %v1524 = vsub.s32 0, %v1523
    %v1525 = vrot.slane %v1520, %v1524
    %v1527 = vadd.f32 %v1518, %v1525
    %v1528 = vadd.f32 %v1519, %v1525
    %v1529 = vmax.f32 %v1527, 0.0
    %v1530 = vmax.f32 %v1528, 0.0
    %v1531 = vld [vmem:[%s35] sm:$0xff]
    %v1532 = vld [vmem:[%s35 + $0x8] sm:$0xff]
    %v1533 = vld [vmem:[%s35 + $0x10] sm:$0xff]
    %v1534 = vld [vmem:[%s35 + $0x18] sm:$0xff]
    %v1535 = vld [vmem:[%s37] sm:$0x1]
    %v1537 = vlaneseq
    %v1538 = vshrl.u32 %v1537, 7
    %v1539 = vsub.s32 0, %v1538
    %v1540 = vrot.slane %v1535, %v1539
    %v1543 = vsel %vm185, %v1529, 0
    %v1546 = vsel %vm185, %v1530, 0
    %1548 = vmatprep.subr.mxu0 0.0
    %1549 = vmatpush1.msra.mxu0 %v1531
    %1550 = vmatprep.subr.mxu0 0.0
    %1551 = vmatpush1.msra.mxu0 %v1532
    %1552 = vmatprep.subr.mxu0 0.0
    %1553 = vmatpush1.msra.mxu0 %v1533
    %1554 = vmatprep.subr.mxu0 0.0
    %1555 = vmatpush1.msra.mxu0 %v1534
    %1556 = vmatprep.subr.mxu0 0.0
    %1557 = vmatpush1.msra.mxu0 0.0
    %1558 = vmatprep.subr.mxu0 0.0
    %1559 = vmatpush1.msra.mxu0 0.0
    %1560 = vmatprep.subr.mxu0 0.0
    %1561 = vmatpush1.msra.mxu0 0.0
    %1562 = vmatprep.subr.mxu0 0.0
    %1563 = vmatpush1.msra.mxu0 0.0
    %1564 = vmatprep.subr.mxu0 0.0
    %1565 = vmatpush1.msra.mxu0 0.0
    %1566 = vmatprep.subr.mxu0 0.0
    %1567 = vmatpush1.msra.mxu0 0.0
    %1568 = vmatprep.subr.mxu0 0.0
    %1569 = vmatpush1.msra.mxu0 0.0
    %1570 = vmatprep.subr.mxu0 0.0
    %1571 = vmatpush1.msra.mxu0 0.0
    %1572 = vmatprep.subr.mxu0 0.0
    %1573 = vmatpush1.msra.mxu0 0.0
    %1574 = vmatprep.subr.mxu0 0.0
    %1575 = vmatpush1.msra.mxu0 0.0
    %1576 = vmatprep.subr.mxu0 0.0
    %1577 = vmatpush1.msra.mxu0 0.0
    %1578 = vmatprep.subr.mxu0 0.0
    %1579 = vmatpush1.msra.mxu0 0.0
    %1580 = vmatprep.subr.mxu0 0.0
    %1581 = vmatpush1.msra.mxu0 0.0
    %1582 = vmatprep.subr.mxu0 0.0
    %1583 = vmatpush1.msra.mxu0 0.0
    %1584 = vmatprep.subr.mxu0 0.0
    %1585 = vmatpush1.msra.mxu0 0.0
    %1586 = vmatprep.subr.mxu0 0.0
    %1587 = vmatpush1.msra.mxu0 0.0
    %1588 = vmatprep.subr.mxu0 0.0
    %1589 = vmatpush1.msra.mxu0 0.0
    %1590 = vmatprep.subr.mxu0 0.0
    %1591 = vmatpush1.msra.mxu0 0.0
    %1592 = vmatprep.subr.mxu0 0.0
    %1593 = vmatpush1.msra.mxu0 0.0
    %1594 = vmatprep.subr.mxu0 0.0
    %1595 = vmatpush1.msra.mxu0 0.0
    %1596 = vmatprep.subr.mxu0 0.0
    %1597 = vmatpush1.msra.mxu0 0.0
    %1598 = vmatprep.subr.mxu0 0.0
    %1599 = vmatpush1.msra.mxu0 0.0
    %1600 = vmatprep.subr.mxu0 0.0
    %1601 = vmatpush1.msra.mxu0 0.0
    %1602 = vmatprep.subr.mxu0 0.0
    %1603 = vmatpush1.msra.mxu0 0.0
    %1604 = vmatprep.subr.mxu0 0.0
    %1605 = vmatpush1.msra.mxu0 0.0
    %1606 = vmatprep.subr.mxu0 0.0
    %1607 = vmatpush1.msra.mxu0 0.0
    %1608 = vmatprep.subr.mxu0 0.0
    %1609 = vmatpush1.msra.mxu0 0.0
    %1610 = vmatprep.subr.mxu0 0.0
    %1611 = vmatpush1.msra.mxu0 0.0
    %1612 = vmatprep.mubr.f32.mxu0 0.0
    %1613 = vmatmul.mubr.f32.gmra.mrb[0].mxu0 %v1543
    %v1614 = vpop.f32.mrb[0].mxu0
    %v1615 = vadd.f32 %v1540, %v1614
    %v1616 = vpop.f32.mrb[0].mxu0
    %1617 = vmatprep.mubr.f32.mxu0 0.0
    %1618 = vmatmul.mubr.f32.gmra.mrb[0].mxu0 %v1546
    %v1619 = vpop.f32.mrb[0].mxu0
    %v1620 = vadd.f32 %v1540, %v1619
    %v1621 = vpop.f32.mrb[0].mxu0
    %1622 = vdwg.mxu0
    %v1623 = vld [vmem:[%s43] sm:$0xff]
    %v1625 = vsel %vm460, %v1615, 0
    %v1628 = vsel %vm460, %v1620, 0
    %1630 = vmatprep.subr.mxu0 0.0
    %1631 = vmatpush1.msra.mxu0 %v1623
    %1632 = vmatprep.subr.mxu0 0.0
    %1633 = vmatpush1.msra.mxu0 0.0
    %1634 = vmatprep.subr.mxu0 0.0
    %1635 = vmatpush1.msra.mxu0 0.0
    %1636 = vmatprep.subr.mxu0 0.0
    %1637 = vmatpush1.msra.mxu0 0.0
    %1638 = vmatprep.subr.mxu0 0.0
    %1639 = vmatpush1.msra.mxu0 0.0
    %1640 = vmatprep.subr.mxu0 0.0
    %1641 = vmatpush1.msra.mxu0 0.0
    %1642 = vmatprep.subr.mxu0 0.0
    %1643 = vmatpush1.msra.mxu0 0.0
    %1644 = vmatprep.subr.mxu0 0.0
    %1645 = vmatpush1.msra.mxu0 0.0
    %1646 = vmatprep.subr.mxu0 0.0
    %1647 = vmatpush1.msra.mxu0 0.0
    %1648 = vmatprep.subr.mxu0 0.0
    %1649 = vmatpush1.msra.mxu0 0.0
    %1650 = vmatprep.subr.mxu0 0.0
    %1651 = vmatpush1.msra.mxu0 0.0
    %1652 = vmatprep.subr.mxu0 0.0
    %1653 = vmatpush1.msra.mxu0 0.0
    %1654 = vmatprep.subr.mxu0 0.0
    %1655 = vmatpush1.msra.mxu0 0.0
    %1656 = vmatprep.subr.mxu0 0.0
    %1657 = vmatpush1.msra.mxu0 0.0
    %1658 = vmatprep.subr.mxu0 0.0
    %1659 = vmatpush1.msra.mxu0 0.0
    %1660 = vmatprep.subr.mxu0 0.0
    %1661 = vmatpush1.msra.mxu0 0.0
    %1662 = vmatprep.subr.mxu0 0.0
    %1663 = vmatpush1.msra.mxu0 0.0
    %1664 = vmatprep.subr.mxu0 0.0
    %1665 = vmatpush1.msra.mxu0 0.0
    %1666 = vmatprep.subr.mxu0 0.0
    %1667 = vmatpush1.msra.mxu0 0.0
    %1668 = vmatprep.subr.mxu0 0.0
    %1669 = vmatpush1.msra.mxu0 0.0
    %1670 = vmatprep.subr.mxu0 0.0
    %1671 = vmatpush1.msra.mxu0 0.0
    %1672 = vmatprep.subr.mxu0 0.0
    %1673 = vmatpush1.msra.mxu0 0.0
    %1674 = vmatprep.subr.mxu0 0.0
    %1675 = vmatpush1.msra.mxu0 0.0
    %1676 = vmatprep.subr.mxu0 0.0
    %1677 = vmatpush1.msra.mxu0 0.0
    %1678 = vmatprep.subr.mxu0 0.0
    %1679 = vmatpush1.msra.mxu0 0.0
    %1680 = vmatprep.subr.mxu0 0.0
    %1681 = vmatpush1.msra.mxu0 0.0
    %1682 = vmatprep.subr.mxu0 0.0
    %1683 = vmatpush1.msra.mxu0 0.0
    %1684 = vmatprep.subr.mxu0 0.0
    %1685 = vmatpush1.msra.mxu0 0.0
    %1686 = vmatprep.subr.mxu0 0.0
    %1687 = vmatpush1.msra.mxu0 0.0
    %1688 = vmatprep.subr.mxu0 0.0
    %1689 = vmatpush1.msra.mxu0 0.0
    %1690 = vmatprep.subr.mxu0 0.0
    %1691 = vmatpush1.msra.mxu0 0.0
    %1692 = vmatprep.subr.mxu0 0.0
    %1693 = vmatpush1.msra.mxu0 0.0
    %1694 = vmatprep.mubr.f32.mxu0 0.0
    %1695 = vmatmul.mubr.f32.gmra.mrb[0].mxu0 %v1625
    %v1696 = vpop.f32.mrb[0].mxu0
    %v1697 = vadd.f32 0.0, %v1696
    %v1698 = vpop.f32.mrb[0].mxu0
    %1699 = vmatprep.mubr.f32.mxu0 0.0
    %1700 = vmatmul.mubr.f32.gmra.mrb[0].mxu0 %v1628
    %v1701 = vpop.f32.mrb[0].mxu0
    %v1702 = vadd.f32 0.0, %v1701
    %v1703 = vpop.f32.mrb[0].mxu0
    %1704 = vdwg.mxu0
    %v1705 = vld [vmem:[%s45] sm:$0xff]
    %1706 = vmatprep.subr.mxu0 0.0
    %1707 = vmatpush1.msra.mxu0 %v1705
    %1708 = vmatprep.subr.mxu0 0.0
    %1709 = vmatpush1.msra.mxu0 0.0
    %1710 = vmatprep.subr.mxu0 0.0
    %1711 = vmatpush1.msra.mxu0 0.0
    %1712 = vmatprep.subr.mxu0 0.0
    %1713 = vmatpush1.msra.mxu0 0.0
    %1714 = vmatprep.subr.mxu0 0.0
    %1715 = vmatpush1.msra.mxu0 0.0
    %1716 = vmatprep.subr.mxu0 0.0
    %1717 = vmatpush1.msra.mxu0 0.0
    %1718 = vmatprep.subr.mxu0 0.0
    %1719 = vmatpush1.msra.mxu0 0.0
    %1720 = vmatprep.subr.mxu0 0.0
    %1721 = vmatpush1.msra.mxu0 0.0
    %1722 = vmatprep.subr.mxu0 0.0
    %1723 = vmatpush1.msra.mxu0 0.0
    %1724 = vmatprep.subr.mxu0 0.0
    %1725 = vmatpush1.msra.mxu0 0.0
    %1726 = vmatprep.subr.mxu0 0.0
    %1727 = vmatpush1.msra.mxu0 0.0
    %1728 = vmatprep.subr.mxu0 0.0
    %1729 = vmatpush1.msra.mxu0 0.0
    %1730 = vmatprep.subr.mxu0 0.0
    %1731 = vmatpush1.msra.mxu0 0.0
    %1732 = vmatprep.subr.mxu0 0.0
    %1733 = vmatpush1.msra.mxu0 0.0
    %1734 = vmatprep.subr.mxu0 0.0
    %1735 = vmatpush1.msra.mxu0 0.0
    %1736 = vmatprep.subr.mxu0 0.0
    %1737 = vmatpush1.msra.mxu0 0.0
    %1738 = vmatprep.subr.mxu0 0.0
    %1739 = vmatpush1.msra.mxu0 0.0
    %1740 = vmatprep.subr.mxu0 0.0
    %1741 = vmatpush1.msra.mxu0 0.0
    %1742 = vmatprep.subr.mxu0 0.0
    %1743 = vmatpush1.msra.mxu0 0.0
    %1744 = vmatprep.subr.mxu0 0.0
    %1745 = vmatpush1.msra.mxu0 0.0
    %1746 = vmatprep.subr.mxu0 0.0
    %1747 = vmatpush1.msra.mxu0 0.0
    %1748 = vmatprep.subr.mxu0 0.0
    %1749 = vmatpush1.msra.mxu0 0.0
    %1750 = vmatprep.subr.mxu0 0.0
    %1751 = vmatpush1.msra.mxu0 0.0
    %1752 = vmatprep.subr.mxu0 0.0
    %1753 = vmatpush1.msra.mxu0 0.0
    %1754 = vmatprep.subr.mxu0 0.0
    %1755 = vmatpush1.msra.mxu0 0.0
    %1756 = vmatprep.subr.mxu0 0.0
    %1757 = vmatpush1.msra.mxu0 0.0
    %1758 = vmatprep.subr.mxu0 0.0
    %1759 = vmatpush1.msra.mxu0 0.0
    %1760 = vmatprep.subr.mxu0 0.0
    %1761 = vmatpush1.msra.mxu0 0.0
    %1762 = vmatprep.subr.mxu0 0.0
    %1763 = vmatpush1.msra.mxu0 0.0
    %1764 = vmatprep.subr.mxu0 0.0
    %1765 = vmatpush1.msra.mxu0 0.0
    %1766 = vmatprep.subr.mxu0 0.0
    %1767 = vmatpush1.msra.mxu0 0.0
    %1768 = vmatprep.subr.mxu0 0.0
    %1769 = vmatpush1.msra.mxu0 0.0
    %1770 = vmatprep.mubr.f32.mxu0 0.0
    %1771 = vmatmul.mubr.f32.gmra.mrb[0].mxu0 %v1625
    %v1772 = vpop.f32.mrb[0].mxu0
    %v1773 = vadd.f32 0.0, %v1772
    %v1774 = vpop.f32.mrb[0].mxu0
    %1775 = vmatprep.mubr.f32.mxu0 0.0
    %1776 = vmatmul.mubr.f32.gmra.mrb[0].mxu0 %v1628
    %v1777 = vpop.f32.mrb[0].mxu0
    %v1778 = vadd.f32 0.0, %v1777
    %v1779 = vpop.f32.mrb[0].mxu0
    %1780 = vdwg.mxu0
    %v1781 = vpack.c.bf16 %v1702, %v1697
    %v1782 = vpack.c.bf16 %v1778, %v1773
    %1783 = vmatprep.subr.bf16.mxu0 0
    %1784 = vmatpush1.bf16.msra.mxu0 %v1782
    %1785 = vmatprep.subr.bf16.mxu0 0
    %1786 = vmatpush1.bf16.msra.mxu0 0
    %1787 = vmatprep.subr.bf16.mxu0 0
    %1788 = vmatpush1.bf16.msra.mxu0 0
    %1789 = vmatprep.subr.bf16.mxu0 0
    %1790 = vmatpush1.bf16.msra.mxu0 0
    %1791 = vmatprep.subr.bf16.mxu0 0
    %1792 = vmatpush1.bf16.msra.mxu0 0
    %1793 = vmatprep.subr.bf16.mxu0 0
    %1794 = vmatpush1.bf16.msra.mxu0 0
    %1795 = vmatprep.subr.bf16.mxu0 0
    %1796 = vmatpush1.bf16.msra.mxu0 0
    %1797 = vmatprep.subr.bf16.mxu0 0
    %1798 = vmatpush1.bf16.msra.mxu0 0
    %1799 = vmatprep.subr.bf16.mxu0 0
    %1800 = vmatpush1.bf16.msra.mxu0 0
    %1801 = vmatprep.subr.bf16.mxu0 0
    %1802 = vmatpush1.bf16.msra.mxu0 0
    %1803 = vmatprep.subr.bf16.mxu0 0
    %1804 = vmatpush1.bf16.msra.mxu0 0
    %1805 = vmatprep.subr.bf16.mxu0 0
    %1806 = vmatpush1.bf16.msra.mxu0 0
    %1807 = vmatprep.subr.bf16.mxu0 0
    %1808 = vmatpush1.bf16.msra.mxu0 0
    %1809 = vmatprep.subr.bf16.mxu0 0
    %1810 = vmatpush1.bf16.msra.mxu0 0
    %1811 = vmatprep.subr.bf16.mxu0 0
    %1812 = vmatpush1.bf16.msra.mxu0 0
    %1813 = vmatprep.subr.bf16.mxu0 0
    %1814 = vmatpush1.bf16.msra.mxu0 0
    %1815 = vmatprep.mubr.bf16.mxu0 0
    %1816 = vmatmul.mubr.bf16.gmra.mrb[0].mxu0 %v631
    %v1817 = vpop.f32.mrb[0].mxu0
    %v1818 = vadd.f32 0.0, %v1817
    %v1819 = vpop.f32.mrb[0].mxu0
    %v1820 = vpop.f32.mrb[0].mxu0
    %v1821 = vadd.f32 0.0, %v1820
    %v1822 = vpop.f32.mrb[0].mxu0
    %1823 = vmatprep.mubr.bf16.mxu0 0
    %1824 = vmatmul.mubr.bf16.gmra.mrb[0].mxu0 %v634
    %v1825 = vpop.f32.mrb[0].mxu0
    %v1826 = vadd.f32 0.0, %v1825
    %v1827 = vpop.f32.mrb[0].mxu0
    %v1828 = vpop.f32.mrb[0].mxu0
    %v1829 = vadd.f32 0.0, %v1828
    %v1830 = vpop.f32.mrb[0].mxu0
    %1831 = vdwg.mxu0
    %v1832 = vld [vmem:[%s39] sm:$0xff]
    %v1833 = vld [vmem:[%s39 + $0x8] sm:$0xff]
    %v1834 = vld [vmem:[%s39 + $0x10] sm:$0xff]
    %v1835 = vld [vmem:[%s39 + $0x18] sm:$0xff]
    %vm1836 = vcmp.gt.f32.partialorder %v1832, 0.0
    %vm1837 = vcmp.gt.f32.partialorder %v1833, 0.0
    %vm1838 = vcmp.gt.f32.partialorder %v1834, 0.0
    %vm1839 = vcmp.gt.f32.partialorder %v1835, 0.0
    %v1840 = vmul.f32 %v1832, 0.2
    %v1841 = vmul.f32 %v1833, 0.2
    %v1842 = vmul.f32 %v1834, 0.2
    %v1843 = vmul.f32 %v1835, 0.2
    %v1844 = vsel %vm1836, %v1832, %v1840
    %v1845 = vsel %vm1837, %v1833, %v1841
    %v1846 = vsel %vm1838, %v1834, %v1842
    %v1847 = vsel %vm1839, %v1835, %v1843
    %v1848 = vld [vmem:[%s41] sm:$0xff]
    %v1849 = vld [vmem:[%s41 + $0x8] sm:$0xff]
    %1850 = vmatprep.subr.mxu0 0.0
    %1851 = vmatpush1.msra.mxu0 %v1848
    %1852 = vmatprep.subr.mxu0 0.0
    %1853 = vmatpush1.msra.mxu0 %v1849
    %1854 = vmatprep.subr.mxu0 0.0
    %1855 = vmatpush1.msra.mxu0 0.0
    %1856 = vmatprep.subr.mxu0 0.0
    %1857 = vmatpush1.msra.mxu0 0.0
    %1858 = vmatprep.subr.mxu0 0.0
    %1859 = vmatpush1.msra.mxu0 0.0
    %1860 = vmatprep.subr.mxu0 0.0
    %1861 = vmatpush1.msra.mxu0 0.0
    %1862 = vmatprep.subr.mxu0 0.0
    %1863 = vmatpush1.msra.mxu0 0.0
    %1864 = vmatprep.subr.mxu0 0.0
    %1865 = vmatpush1.msra.mxu0 0.0
    %1866 = vmatprep.subr.mxu0 0.0
    %1867 = vmatpush1.msra.mxu0 0.0
    %1868 = vmatprep.subr.mxu0 0.0
    %1869 = vmatpush1.msra.mxu0 0.0
    %1870 = vmatprep.subr.mxu0 0.0
    %1871 = vmatpush1.msra.mxu0 0.0
    %1872 = vmatprep.subr.mxu0 0.0
    %1873 = vmatpush1.msra.mxu0 0.0
    %1874 = vmatprep.subr.mxu0 0.0
    %1875 = vmatpush1.msra.mxu0 0.0
    %1876 = vmatprep.subr.mxu0 0.0
    %1877 = vmatpush1.msra.mxu0 0.0
    %1878 = vmatprep.subr.mxu0 0.0
    %1879 = vmatpush1.msra.mxu0 0.0
    %1880 = vmatprep.subr.mxu0 0.0
    %1881 = vmatpush1.msra.mxu0 0.0
    %1882 = vmatprep.subr.mxu0 0.0
    %1883 = vmatpush1.msra.mxu0 0.0
    %1884 = vmatprep.subr.mxu0 0.0
    %1885 = vmatpush1.msra.mxu0 0.0
    %1886 = vmatprep.subr.mxu0 0.0
    %1887 = vmatpush1.msra.mxu0 0.0
    %1888 = vmatprep.subr.mxu0 0.0
    %1889 = vmatpush1.msra.mxu0 0.0
    %1890 = vmatprep.subr.mxu0 0.0
    %1891 = vmatpush1.msra.mxu0 0.0
    %1892 = vmatprep.subr.mxu0 0.0
    %1893 = vmatpush1.msra.mxu0 0.0
    %1894 = vmatprep.subr.mxu0 0.0
    %1895 = vmatpush1.msra.mxu0 0.0
    %1896 = vmatprep.subr.mxu0 0.0
    %1897 = vmatpush1.msra.mxu0 0.0
    %1898 = vmatprep.subr.mxu0 0.0
    %1899 = vmatpush1.msra.mxu0 0.0
    %1900 = vmatprep.subr.mxu0 0.0
    %1901 = vmatpush1.msra.mxu0 0.0
    %1902 = vmatprep.subr.mxu0 0.0
    %1903 = vmatpush1.msra.mxu0 0.0
    %1904 = vmatprep.subr.mxu0 0.0
    %1905 = vmatpush1.msra.mxu0 0.0
    %1906 = vmatprep.subr.mxu0 0.0
    %1907 = vmatpush1.msra.mxu0 0.0
    %1908 = vmatprep.subr.mxu0 0.0
    %1909 = vmatpush1.msra.mxu0 0.0
    %1910 = vmatprep.subr.mxu0 0.0
    %1911 = vmatpush1.msra.mxu0 0.0
    %1912 = vmatprep.subr.mxu0 0.0
    %1913 = vmatpush1.msra.mxu0 0.0
    %1914 = vmatprep.mubr.f32.mxu0 0.0
    %1915 = vmatmul.mubr.f32.gmra.mrb[0].mxu0 %v704
    %v1916 = vpop.f32.mrb[0].mxu0
    %v1917 = vadd.f32 0.0, %v1916
    %v1918 = vpop.f32.mrb[0].mxu0
    %1919 = vmatprep.mubr.f32.mxu0 0.0
    %1920 = vmatmul.mubr.f32.gmra.mrb[0].mxu0 %v707
    %v1921 = vpop.f32.mrb[0].mxu0
    %v1922 = vadd.f32 0.0, %v1921
    %v1923 = vpop.f32.mrb[0].mxu0
    %1924 = vmatprep.mubr.f32.mxu0 0.0
    %1925 = vmatmul.mubr.f32.gmra.mrb[0].mxu0 %v710
    %v1926 = vpop.f32.mrb[0].mxu0
    %v1927 = vadd.f32 0.0, %v1926
    %v1928 = vpop.f32.mrb[0].mxu0
    %1929 = vmatprep.mubr.f32.mxu0 0.0
    %1930 = vmatmul.mubr.f32.gmra.mrb[0].mxu0 %v713
    %v1931 = vpop.f32.mrb[0].mxu0
    %v1932 = vadd.f32 0.0, %v1931
    %v1933 = vpop.f32.mrb[0].mxu0
    %1934 = vdwg.mxu0
    %vm1935 = vcmp.gt.f32.partialorder %v1917, 0.0
    %vm1936 = vcmp.gt.f32.partialorder %v1922, 0.0
    %vm1937 = vcmp.gt.f32.partialorder %v1927, 0.0
    %vm1938 = vcmp.gt.f32.partialorder %v1932, 0.0
    %v1939 = vmul.f32 %v1917, 0.2
    %v1940 = vmul.f32 %v1922, 0.2
    %v1941 = vmul.f32 %v1927, 0.2
    %v1942 = vmul.f32 %v1932, 0.2
    %v1943 = vsel %vm1935, %v1917, %v1939
    %v1944 = vsel %vm1936, %v1922, %v1940
    %v1945 = vsel %vm1937, %v1927, %v1941
    %v1946 = vsel %vm1938, %v1932, %v1942
    %1951 = vrot.lane.b32.xlu0 %v1943, 8
    %v1952 = vpop.permute.xlu0 %1951
    %1953 = vrot.lane.b32.xlu0 %v1944, 8
    %v1954 = vpop.permute.xlu0 %1953
    %1955 = vrot.lane.b32.xlu0 %v1945, 8
    %v1956 = vpop.permute.xlu0 %1955
    %1957 = vrot.lane.b32.xlu0 %v1946, 8
    %v1958 = vpop.permute.xlu0 %1957
    %v1963 = vsel %vm460, %v1844, %v1952
    %v1964 = vsel %vm460, %v1845, %v1954
    %v1965 = vsel %vm460, %v1846, %v1956
    %v1966 = vsel %vm460, %v1847, %v1958
    %1967 = vmatprep.subr.bf16.mxu0 0
    %1968 = vmatpush1.bf16.msra.mxu0 %v1781
    %1969 = vmatprep.subr.bf16.mxu0 0
    %1970 = vmatpush1.bf16.msra.mxu0 0
    %1971 = vmatprep.subr.bf16.mxu0 0
    %1972 = vmatpush1.bf16.msra.mxu0 0
    %1973 = vmatprep.subr.bf16.mxu0 0
    %1974 = vmatpush1.bf16.msra.mxu0 0
    %1975 = vmatprep.subr.bf16.mxu0 0
    %1976 = vmatpush1.bf16.msra.mxu0 0
    %1977 = vmatprep.subr.bf16.mxu0 0
    %1978 = vmatpush1.bf16.msra.mxu0 0
    %1979 = vmatprep.subr.bf16.mxu0 0
    %1980 = vmatpush1.bf16.msra.mxu0 0
    %1981 = vmatprep.subr.bf16.mxu0 0
    %1982 = vmatpush1.bf16.msra.mxu0 0
    %1983 = vmatprep.subr.bf16.mxu0 0
    %1984 = vmatpush1.bf16.msra.mxu0 0
    %1985 = vmatprep.subr.bf16.mxu0 0
    %1986 = vmatpush1.bf16.msra.mxu0 0
    %1987 = vmatprep.subr.bf16.mxu0 0
    %1988 = vmatpush1.bf16.msra.mxu0 0
    %1989 = vmatprep.subr.bf16.mxu0 0
    %1990 = vmatpush1.bf16.msra.mxu0 0
    %1991 = vmatprep.subr.bf16.mxu0 0
    %1992 = vmatpush1.bf16.msra.mxu0 0
    %1993 = vmatprep.subr.bf16.mxu0 0
    %1994 = vmatpush1.bf16.msra.mxu0 0
    %1995 = vmatprep.subr.bf16.mxu0 0
    %1996 = vmatpush1.bf16.msra.mxu0 0
    %1997 = vmatprep.subr.bf16.mxu0 0
    %1998 = vmatpush1.bf16.msra.mxu0 0
    %1999 = vmatprep.mubr.bf16.mxu0 0
    %2000 = vmatmul.mubr.bf16.gmra.mrb[0].mxu0 %v843
    %v2001 = vpop.f32.mrb[0].mxu0
    %v2002 = vadd.f32 %v1818, %v2001
    %v2003 = vpop.f32.mrb[0].mxu0
    %v2004 = vpop.f32.mrb[0].mxu0
    %v2005 = vadd.f32 %v1821, %v2004
    %v2006 = vpop.f32.mrb[0].mxu0
    %2007 = vmatprep.mubr.bf16.mxu0 0
    %2008 = vmatmul.mubr.bf16.gmra.mrb[0].mxu0 %v846
    %v2009 = vpop.f32.mrb[0].mxu0
    %v2010 = vadd.f32 %v1826, %v2009
    %v2011 = vpop.f32.mrb[0].mxu0
    %v2012 = vpop.f32.mrb[0].mxu0
    %v2013 = vadd.f32 %v1829, %v2012
    %v2014 = vpop.f32.mrb[0].mxu0
    %2015 = vdwg.mxu0
    %v2016 = vld [vmem:[%s47] sm:$0xff]
    %v2017 = vld [vmem:[%s47 + $0x8] sm:$0xff]
    %v2019 = vsel %vm377, %v1963, 0
    %v2022 = vsel %vm377, %v1964, 0
    %v2025 = vsel %vm377, %v1965, 0
    %v2028 = vsel %vm377, %v1966, 0
    %2030 = vmatprep.subr.mxu0 0.0
    %2031 = vmatpush1.msra.mxu0 %v2016
    %2032 = vmatprep.subr.mxu0 0.0
    %2033 = vmatpush1.msra.mxu0 %v2017
    %2034 = vmatprep.subr.mxu0 0.0
    %2035 = vmatpush1.msra.mxu0 0.0
    %2036 = vmatprep.subr.mxu0 0.0
    %2037 = vmatpush1.msra.mxu0 0.0
    %2038 = vmatprep.subr.mxu0 0.0
    %2039 = vmatpush1.msra.mxu0 0.0
    %2040 = vmatprep.subr.mxu0 0.0
    %2041 = vmatpush1.msra.mxu0 0.0
    %2042 = vmatprep.subr.mxu0 0.0
    %2043 = vmatpush1.msra.mxu0 0.0
    %2044 = vmatprep.subr.mxu0 0.0
    %2045 = vmatpush1.msra.mxu0 0.0
    %2046 = vmatprep.subr.mxu0 0.0
    %2047 = vmatpush1.msra.mxu0 0.0
    %2048 = vmatprep.subr.mxu0 0.0
    %2049 = vmatpush1.msra.mxu0 0.0
    %2050 = vmatprep.subr.mxu0 0.0
    %2051 = vmatpush1.msra.mxu0 0.0
    %2052 = vmatprep.subr.mxu0 0.0
    %2053 = vmatpush1.msra.mxu0 0.0
    %2054 = vmatprep.subr.mxu0 0.0
    %2055 = vmatpush1.msra.mxu0 0.0
    %2056 = vmatprep.subr.mxu0 0.0
    %2057 = vmatpush1.msra.mxu0 0.0
    %2058 = vmatprep.subr.mxu0 0.0
    %2059 = vmatpush1.msra.mxu0 0.0
    %2060 = vmatprep.subr.mxu0 0.0
    %2061 = vmatpush1.msra.mxu0 0.0
    %2062 = vmatprep.subr.mxu0 0.0
    %2063 = vmatpush1.msra.mxu0 0.0
    %2064 = vmatprep.subr.mxu0 0.0
    %2065 = vmatpush1.msra.mxu0 0.0
    %2066 = vmatprep.subr.mxu0 0.0
    %2067 = vmatpush1.msra.mxu0 0.0
    %2068 = vmatprep.subr.mxu0 0.0
    %2069 = vmatpush1.msra.mxu0 0.0
    %2070 = vmatprep.subr.mxu0 0.0
    %2071 = vmatpush1.msra.mxu0 0.0
    %2072 = vmatprep.subr.mxu0 0.0
    %2073 = vmatpush1.msra.mxu0 0.0
    %2074 = vmatprep.subr.mxu0 0.0
    %2075 = vmatpush1.msra.mxu0 0.0
    %2076 = vmatprep.subr.mxu0 0.0
    %2077 = vmatpush1.msra.mxu0 0.0
    %2078 = vmatprep.subr.mxu0 0.0
    %2079 = vmatpush1.msra.mxu0 0.0
    %2080 = vmatprep.subr.mxu0 0.0
    %2081 = vmatpush1.msra.mxu0 0.0
    %2082 = vmatprep.subr.mxu0 0.0
    %2083 = vmatpush1.msra.mxu0 0.0
    %2084 = vmatprep.subr.mxu0 0.0
    %2085 = vmatpush1.msra.mxu0 0.0
    %2086 = vmatprep.subr.mxu0 0.0
    %2087 = vmatpush1.msra.mxu0 0.0
    %2088 = vmatprep.subr.mxu0 0.0
    %2089 = vmatpush1.msra.mxu0 0.0
    %2090 = vmatprep.subr.mxu0 0.0
    %2091 = vmatpush1.msra.mxu0 0.0
    %2092 = vmatprep.subr.mxu0 0.0
    %2093 = vmatpush1.msra.mxu0 0.0
    %2094 = vmatprep.mubr.f32.mxu0 0.0
    %2095 = vmatmul.mubr.f32.gmra.mrb[0].mxu0 %v2019
    %v2096 = vpop.f32.mrb[0].mxu0
    %v2097 = vadd.f32 0.0, %v2096
    %v2098 = vpop.f32.mrb[0].mxu0
    %2099 = vmatprep.mubr.f32.mxu0 0.0
    %2100 = vmatmul.mubr.f32.gmra.mrb[0].mxu0 %v2022
    %v2101 = vpop.f32.mrb[0].mxu0
    %v2102 = vadd.f32 0.0, %v2101
    %v2103 = vpop.f32.mrb[0].mxu0
    %2104 = vmatprep.mubr.f32.mxu0 0.0
    %2105 = vmatmul.mubr.f32.gmra.mrb[0].mxu0 %v2025
    %v2106 = vpop.f32.mrb[0].mxu0
    %v2107 = vadd.f32 0.0, %v2106
    %v2108 = vpop.f32.mrb[0].mxu0
    %2109 = vmatprep.mubr.f32.mxu0 0.0
    %2110 = vmatmul.mubr.f32.gmra.mrb[0].mxu0 %v2028
    %v2111 = vpop.f32.mrb[0].mxu0
    %v2112 = vadd.f32 0.0, %v2111
    %v2113 = vpop.f32.mrb[0].mxu0
    %2114 = vdwg.mxu0
    %v2115 = vadd.f32 %v2002, %v2097
    %v2116 = vadd.f32 %v2005, %v2102
    %v2117 = vadd.f32 %v2010, %v2107
    %v2118 = vadd.f32 %v2013, %v2112
    %vm2119 = vcmp.gt.f32.partialorder %v2115, 0.0
    %vm2120 = vcmp.gt.f32.partialorder %v2116, 0.0
    %vm2121 = vcmp.gt.f32.partialorder %v2117, 0.0
    %vm2122 = vcmp.gt.f32.partialorder %v2118, 0.0
    %v2123 = vmul.f32 %v2115, 0.2
    %v2124 = vmul.f32 %v2116, 0.2
    %v2125 = vmul.f32 %v2117, 0.2
    %v2126 = vmul.f32 %v2118, 0.2
    %v2127 = vsel %vm2119, %v2115, %v2123
    %v2128 = vsel %vm2120, %v2116, %v2124
    %v2129 = vsel %vm2121, %v2117, %v2125
    %v2130 = vsel %vm2122, %v2118, %v2126
    %v2131 = vsel %vm1012, %v2127, -inf
    %v2132 = vsel %vm1012, %v2128, -inf
    %v2133 = vsel %vm1012, %v2129, -inf
    %v2134 = vsel %vm1012, %v2130, -inf
    %v2135 = vmax.f32 %v2131, %v2132
    %v2136 = vmax.f32 %v2133, %v2134
    %v2137 = vmax.f32 %v2135, %v2136
    %v2138 = vrot.slane %v2137, 4
    %v2139 = vmax.f32 %v2137, %v2138
    %v2140 = vrot.slane %v2139, 2
    %v2141 = vmax.f32 %v2139, %v2140
    %v2142 = vrot.slane %v2141, 1
    %v2143 = vmax.f32 %v2141, %v2142
    %v2144 = vsub.f32 %v2127, %v2143
    %v2145 = vsub.f32 %v2128, %v2143
    %v2146 = vsub.f32 %v2129, %v2143
    %v2147 = vsub.f32 %v2130, %v2143
    %v2148 = vmul.f32 %v2144, 1.442695
    %v2149 = vpow.pop %v2148
    %v2150 = vmul.f32 %v2145, 1.442695
    %v2151 = vpow.pop %v2150
    %v2152 = vmul.f32 %v2146, 1.442695
    %v2153 = vpow.pop %v2152
    %v2154 = vmul.f32 %v2147, 1.442695
    %v2155 = vpow.pop %v2154
    %v2156 = vld [vmem:[%s49] sm:$0xff]
    %v2157 = vsel %vm460, %v1943, 0
    %v2159 = vsel %vm460, %v1944, 0
    %v2161 = vsel %vm460, %v1945, 0
    %v2163 = vsel %vm460, %v1946, 0
    %2165 = vmatprep.subr.mxu0 0.0
    %2166 = vmatpush1.msra.mxu0 %v2156
    %2167 = vmatprep.subr.mxu0 0.0
    %2168 = vmatpush1.msra.mxu0 0.0
    %2169 = vmatprep.subr.mxu0 0.0
    %2170 = vmatpush1.msra.mxu0 0.0
    %2171 = vmatprep.subr.mxu0 0.0
    %2172 = vmatpush1.msra.mxu0 0.0
    %2173 = vmatprep.subr.mxu0 0.0
    %2174 = vmatpush1.msra.mxu0 0.0
    %2175 = vmatprep.subr.mxu0 0.0
    %2176 = vmatpush1.msra.mxu0 0.0
    %2177 = vmatprep.subr.mxu0 0.0
    %2178 = vmatpush1.msra.mxu0 0.0
    %2179 = vmatprep.subr.mxu0 0.0
    %2180 = vmatpush1.msra.mxu0 0.0
    %2181 = vmatprep.subr.mxu0 0.0
    %2182 = vmatpush1.msra.mxu0 0.0
    %2183 = vmatprep.subr.mxu0 0.0
    %2184 = vmatpush1.msra.mxu0 0.0
    %2185 = vmatprep.subr.mxu0 0.0
    %2186 = vmatpush1.msra.mxu0 0.0
    %2187 = vmatprep.subr.mxu0 0.0
    %2188 = vmatpush1.msra.mxu0 0.0
    %2189 = vmatprep.subr.mxu0 0.0
    %2190 = vmatpush1.msra.mxu0 0.0
    %2191 = vmatprep.subr.mxu0 0.0
    %2192 = vmatpush1.msra.mxu0 0.0
    %2193 = vmatprep.subr.mxu0 0.0
    %2194 = vmatpush1.msra.mxu0 0.0
    %2195 = vmatprep.subr.mxu0 0.0
    %2196 = vmatpush1.msra.mxu0 0.0
    %2197 = vmatprep.subr.mxu0 0.0
    %2198 = vmatpush1.msra.mxu0 0.0
    %2199 = vmatprep.subr.mxu0 0.0
    %2200 = vmatpush1.msra.mxu0 0.0
    %2201 = vmatprep.subr.mxu0 0.0
    %2202 = vmatpush1.msra.mxu0 0.0
    %2203 = vmatprep.subr.mxu0 0.0
    %2204 = vmatpush1.msra.mxu0 0.0
    %2205 = vmatprep.subr.mxu0 0.0
    %2206 = vmatpush1.msra.mxu0 0.0
    %2207 = vmatprep.subr.mxu0 0.0
    %2208 = vmatpush1.msra.mxu0 0.0
    %2209 = vmatprep.subr.mxu0 0.0
    %2210 = vmatpush1.msra.mxu0 0.0
    %2211 = vmatprep.subr.mxu0 0.0
    %2212 = vmatpush1.msra.mxu0 0.0
    %2213 = vmatprep.subr.mxu0 0.0
    %2214 = vmatpush1.msra.mxu0 0.0
    %2215 = vmatprep.subr.mxu0 0.0
    %2216 = vmatpush1.msra.mxu0 0.0
    %2217 = vmatprep.subr.mxu0 0.0
    %2218 = vmatpush1.msra.mxu0 0.0
    %2219 = vmatprep.subr.mxu0 0.0
    %2220 = vmatpush1.msra.mxu0 0.0
    %2221 = vmatprep.subr.mxu0 0.0
    %2222 = vmatpush1.msra.mxu0 0.0
    %2223 = vmatprep.subr.mxu0 0.0
    %2224 = vmatpush1.msra.mxu0 0.0
    %2225 = vmatprep.subr.mxu0 0.0
    %2226 = vmatpush1.msra.mxu0 0.0
    %2227 = vmatprep.subr.mxu0 0.0
    %2228 = vmatpush1.msra.mxu0 0.0
    %2229 = vmatprep.mubr.f32.mxu0 0.0
    %2230 = vmatmul.mubr.f32.gmra.mrb[0].mxu0 %v2157
    %v2231 = vpop.f32.mrb[0].mxu0
    %v2232 = vadd.f32 0.0, %v2231
    %v2233 = vpop.f32.mrb[0].mxu0
    %2234 = vmatprep.mubr.f32.mxu0 0.0
    %2235 = vmatmul.mubr.f32.gmra.mrb[0].mxu0 %v2159
    %v2236 = vpop.f32.mrb[0].mxu0
    %v2237 = vadd.f32 0.0, %v2236
    %v2238 = vpop.f32.mrb[0].mxu0
    %2239 = vmatprep.mubr.f32.mxu0 0.0
    %2240 = vmatmul.mubr.f32.gmra.mrb[0].mxu0 %v2161
    %v2241 = vpop.f32.mrb[0].mxu0
    %v2242 = vadd.f32 0.0, %v2241
    %v2243 = vpop.f32.mrb[0].mxu0
    %2244 = vmatprep.mubr.f32.mxu0 0.0
    %2245 = vmatmul.mubr.f32.gmra.mrb[0].mxu0 %v2163
    %v2246 = vpop.f32.mrb[0].mxu0
    %v2247 = vadd.f32 0.0, %v2246
    %v2248 = vpop.f32.mrb[0].mxu0
    %2249 = vdwg.mxu0
    %2254 = vrot.lane.b32.xlu0 %v2232, 4
    %v2255 = vpop.permute.xlu0 %2254
    %2256 = vrot.lane.b32.xlu0 %v2237, 4
    %v2257 = vpop.permute.xlu0 %2256
    %2258 = vrot.lane.b32.xlu0 %v2242, 4
    %v2259 = vpop.permute.xlu0 %2258
    %2260 = vrot.lane.b32.xlu0 %v2247, 4
    %v2261 = vpop.permute.xlu0 %2260
    %v2266 = vadd.f32 %v1818, %v2255
    %v2267 = vadd.f32 %v1821, %v2257
    %v2268 = vadd.f32 %v1826, %v2259
    %v2269 = vadd.f32 %v1829, %v2261
    %v2270 = vld [vmem:[%s51] sm:$0x1]
    %v2272 = vlaneseq
    %v2273 = vshrl.u32 %v2272, 7
    %v2274 = vsub.s32 0, %v2273
    %v2275 = vrot.slane %v2270, %v2274
    %2276 = vrot.lane.b32.xlu0 %v2275, 4
    %v2277 = vpop.permute.xlu0 %2276
    %v2279 = vadd.f32 %v2266, %v2277
    %v2280 = vadd.f32 %v2267, %v2277
    %v2281 = vadd.f32 %v2268, %v2277
    %v2282 = vadd.f32 %v2269, %v2277
    %2284 = vset.pattern.permute.xlu0 0
    %2285 = vperm.xlu0 %2284, %v2149
    %v2286 = vpop.permute.xlu0 %2285
    %2289 = vset.pattern.permute.xlu0 0
    %2290 = vperm.xlu0 %2289, %v2151
    %v2291 = vpop.permute.xlu0 %2290
    %2294 = vset.pattern.permute.xlu0 0
    %2295 = vperm.xlu0 %2294, %v2153
    %v2296 = vpop.permute.xlu0 %2295
    %2299 = vset.pattern.permute.xlu0 0
    %2300 = vperm.xlu0 %2299, %v2155
    %v2301 = vpop.permute.xlu0 %2300
    %v2303 = vmul.f32 %v2279, %v2286
    %v2304 = vmul.f32 %v2280, %v2291
    %v2305 = vmul.f32 %v2281, %v2296
    %v2306 = vmul.f32 %v2282, %v2301
    %2307 = vset.pattern.permute.xlu0 1
    %2308 = vperm.xlu0 %2307, %v2149
    %v2309 = vpop.permute.xlu0 %2308
    %2311 = vset.pattern.permute.xlu0 1
    %2312 = vperm.xlu0 %2311, %v2151
    %v2313 = vpop.permute.xlu0 %2312
    %2315 = vset.pattern.permute.xlu0 1
    %2316 = vperm.xlu0 %2315, %v2153
    %v2317 = vpop.permute.xlu0 %2316
    %2319 = vset.pattern.permute.xlu0 1
    %2320 = vperm.xlu0 %2319, %v2155
    %v2321 = vpop.permute.xlu0 %2320
    %v2323 = vmul.f32 %v2279, %v2309
    %v2324 = vmul.f32 %v2280, %v2313
    %v2325 = vmul.f32 %v2281, %v2317
    %v2326 = vmul.f32 %v2282, %v2321
    %2327 = vset.pattern.permute.xlu0 2
    %2328 = vperm.xlu0 %2327, %v2149
    %v2329 = vpop.permute.xlu0 %2328
    %2331 = vset.pattern.permute.xlu0 2
    %2332 = vperm.xlu0 %2331, %v2151
    %v2333 = vpop.permute.xlu0 %2332
    %2335 = vset.pattern.permute.xlu0 2
    %2336 = vperm.xlu0 %2335, %v2153
    %v2337 = vpop.permute.xlu0 %2336
    %2339 = vset.pattern.permute.xlu0 2
    %2340 = vperm.xlu0 %2339, %v2155
    %v2341 = vpop.permute.xlu0 %2340
    %v2343 = vmul.f32 %v2279, %v2329
    %v2344 = vmul.f32 %v2280, %v2333
    %v2345 = vmul.f32 %v2281, %v2337
    %v2346 = vmul.f32 %v2282, %v2341
    %2347 = vset.pattern.permute.xlu0 3
    %2348 = vperm.xlu0 %2347, %v2149
    %v2349 = vpop.permute.xlu0 %2348
    %2351 = vset.pattern.permute.xlu0 3
    %2352 = vperm.xlu0 %2351, %v2151
    %v2353 = vpop.permute.xlu0 %2352
    %2355 = vset.pattern.permute.xlu0 3
    %2356 = vperm.xlu0 %2355, %v2153
    %v2357 = vpop.permute.xlu0 %2356
    %2359 = vset.pattern.permute.xlu0 3
    %2360 = vperm.xlu0 %2359, %v2155
    %v2361 = vpop.permute.xlu0 %2360
    %v2363 = vmul.f32 %v2279, %v2349
    %v2364 = vmul.f32 %v2280, %v2353
    %v2365 = vmul.f32 %v2281, %v2357
    %v2366 = vmul.f32 %v2282, %v2361
    %2371 = vrot.lane.b32.xlu0 %v2303, 124
    %v2372 = vpop.permute.xlu0 %2371
    %2373 = vrot.lane.b32.xlu0 %v2304, 124
    %v2374 = vpop.permute.xlu0 %2373
    %2375 = vrot.lane.b32.xlu0 %v2305, 124
    %v2376 = vpop.permute.xlu0 %2375
    %2377 = vrot.lane.b32.xlu0 %v2306, 124
    %v2378 = vpop.permute.xlu0 %2377
    %2387 = vrot.lane.b32.xlu0 %v2323, 4
    %v2388 = vpop.permute.xlu0 %2387
    %2389 = vrot.lane.b32.xlu0 %v2324, 4
    %v2390 = vpop.permute.xlu0 %2389
    %2391 = vrot.lane.b32.xlu0 %v2325, 4
    %v2392 = vpop.permute.xlu0 %2391
    %2393 = vrot.lane.b32.xlu0 %v2326, 4
    %v2394 = vpop.permute.xlu0 %2393
    %2403 = vrot.lane.b32.xlu0 %v2343, 12
    %v2404 = vpop.permute.xlu0 %2403
    %2405 = vrot.lane.b32.xlu0 %v2344, 12
    %v2406 = vpop.permute.xlu0 %2405
    %2407 = vrot.lane.b32.xlu0 %v2345, 12
    %v2408 = vpop.permute.xlu0 %2407
    %2409 = vrot.lane.b32.xlu0 %v2346, 12
    %v2410 = vpop.permute.xlu0 %2409
    %2419 = vrot.lane.b32.xlu0 %v2363, 20
    %v2420 = vpop.permute.xlu0 %2419
    %2421 = vrot.lane.b32.xlu0 %v2364, 20
    %v2422 = vpop.permute.xlu0 %2421
    %2423 = vrot.lane.b32.xlu0 %v2365, 20
    %v2424 = vpop.permute.xlu0 %2423
    %2425 = vrot.lane.b32.xlu0 %v2366, 20
    %v2426 = vpop.permute.xlu0 %2425
    %v2431 = vsel %vm460, %v2372, %v2388
    %v2432 = vsel %vm460, %v2374, %v2390
    %v2433 = vsel %vm460, %v2376, %v2392
    %v2434 = vsel %vm460, %v2378, %v2394
    %v2435 = vsel %vm377, %v2431, %v2404
    %v2436 = vsel %vm377, %v2432, %v2406
    %v2437 = vsel %vm377, %v2433, %v2408
    %v2438 = vsel %vm377, %v2434, %v2410
    %v2439 = vsel %vm1321, %v2435, %v2420
    %v2440 = vsel %vm1321, %v2436, %v2422
    %v2441 = vsel %vm1321, %v2437, %v2424
    %v2442 = vsel %vm1321, %v2438, %v2426
    %v2443 = vpack.c.bf16 %v2151, %v2149
    %v2444 = vpack.c.bf16 %v2155, %v2153
    %2445 = vmatprep.subr.bf16.mxu0 0
    %2446 = vmatpush1.bf16.msra.mxu0 %v2443
    %2447 = vmatprep.subr.bf16.mxu0 0
    %2448 = vmatpush1.bf16.msra.mxu0 %v2444
    %2449 = vmatprep.subr.bf16.mxu0 0
    %2450 = vmatpush1.bf16.msra.mxu0 0
    %2451 = vmatprep.subr.bf16.mxu0 0
    %2452 = vmatpush1.bf16.msra.mxu0 0
    %2453 = vmatprep.subr.bf16.mxu0 0
    %2454 = vmatpush1.bf16.msra.mxu0 0
    %2455 = vmatprep.subr.bf16.mxu0 0
    %2456 = vmatpush1.bf16.msra.mxu0 0
    %2457 = vmatprep.subr.bf16.mxu0 0
    %2458 = vmatpush1.bf16.msra.mxu0 0
    %2459 = vmatprep.subr.bf16.mxu0 0
    %2460 = vmatpush1.bf16.msra.mxu0 0
    %2461 = vmatprep.subr.bf16.mxu0 0
    %2462 = vmatpush1.bf16.msra.mxu0 0
    %2463 = vmatprep.subr.bf16.mxu0 0
    %2464 = vmatpush1.bf16.msra.mxu0 0
    %2465 = vmatprep.subr.bf16.mxu0 0
    %2466 = vmatpush1.bf16.msra.mxu0 0
    %2467 = vmatprep.subr.bf16.mxu0 0
    %2468 = vmatpush1.bf16.msra.mxu0 0
    %2469 = vmatprep.subr.bf16.mxu0 0
    %2470 = vmatpush1.bf16.msra.mxu0 0
    %2471 = vmatprep.subr.bf16.mxu0 0
    %2472 = vmatpush1.bf16.msra.mxu0 0
    %2473 = vmatprep.subr.bf16.mxu0 0
    %2474 = vmatpush1.bf16.msra.mxu0 0
    %2475 = vmatprep.subr.bf16.mxu0 0
    %2476 = vmatpush1.bf16.msra.mxu0 0
    %2477 = vmatprep.mubr.bf16.mxu0 0
    %2478 = vmatmul.mubr.bf16.gmra.mrb[0].mxu0 %v1347
    %v2479 = vpop.f32.mrb[0].mxu0
    %v2480 = vadd.f32 0.0, %v2479
    %v2481 = vpop.f32.mrb[0].mxu0
    %v2482 = vpop.f32.mrb[0].mxu0
    %v2483 = vadd.f32 0.0, %v2482
    %v2484 = vpop.f32.mrb[0].mxu0
    %2485 = vdwg.mxu0
    %v2486 = vpack.c.bf16 %v2440, %v2439
    %v2487 = vpack.c.bf16 %v2442, %v2441
    %2488 = vmatprep.subr.bf16.mxu0 0
    %2489 = vmatpush1.bf16.msra.mxu0 %v2486
    %2490 = vmatprep.subr.bf16.mxu0 0
    %2491 = vmatpush1.bf16.msra.mxu0 %v2487
    %2492 = vmatprep.subr.bf16.mxu0 0
    %2493 = vmatpush1.bf16.msra.mxu0 0
    %2494 = vmatprep.subr.bf16.mxu0 0
    %2495 = vmatpush1.bf16.msra.mxu0 0
    %2496 = vmatprep.subr.bf16.mxu0 0
    %2497 = vmatpush1.bf16.msra.mxu0 0
    %2498 = vmatprep.subr.bf16.mxu0 0
    %2499 = vmatpush1.bf16.msra.mxu0 0
    %2500 = vmatprep.subr.bf16.mxu0 0
    %2501 = vmatpush1.bf16.msra.mxu0 0
    %2502 = vmatprep.subr.bf16.mxu0 0
    %2503 = vmatpush1.bf16.msra.mxu0 0
    %2504 = vmatprep.subr.bf16.mxu0 0
    %2505 = vmatpush1.bf16.msra.mxu0 0
    %2506 = vmatprep.subr.bf16.mxu0 0
    %2507 = vmatpush1.bf16.msra.mxu0 0
    %2508 = vmatprep.subr.bf16.mxu0 0
    %2509 = vmatpush1.bf16.msra.mxu0 0
    %2510 = vmatprep.subr.bf16.mxu0 0
    %2511 = vmatpush1.bf16.msra.mxu0 0
    %2512 = vmatprep.subr.bf16.mxu0 0
    %2513 = vmatpush1.bf16.msra.mxu0 0
    %2514 = vmatprep.subr.bf16.mxu0 0
    %2515 = vmatpush1.bf16.msra.mxu0 0
    %2516 = vmatprep.subr.bf16.mxu0 0
    %2517 = vmatpush1.bf16.msra.mxu0 0
    %2518 = vmatprep.subr.bf16.mxu0 0
    %2519 = vmatpush1.bf16.msra.mxu0 0
    %2520 = vmatprep.mubr.bf16.mxu0 0
    %2521 = vmatmul.mubr.bf16.gmra.mrb[0].mxu0 %v1347
    %v2522 = vpop.f32.mrb[0].mxu0
    %v2523 = vadd.f32 0.0, %v2522
    %v2524 = vpop.f32.mrb[0].mxu0
    %v2525 = vpop.f32.mrb[0].mxu0
    %v2526 = vadd.f32 0.0, %v2525
    %v2527 = vpop.f32.mrb[0].mxu0
    %2528 = vdwg.mxu0
    %v2529 = vmax.f32 %v2480, 1e-20
    %v2530 = vmax.f32 %v2483, 1e-20
    %v2531 = vrcp.pop %v2529
    %v2532 = vrcp.pop %v2530
    %2534 = vset.pattern.permute.xlu0 0
    %2535 = vperm.xlu0 %2534, %v2531
    %v2536 = vpop.permute.xlu0 %2535
    %2539 = vset.pattern.permute.xlu0 0
    %2540 = vperm.xlu0 %2539, %v2532
    %v2541 = vpop.permute.xlu0 %2540
    %v2543 = vmul.f32 %v2523, %v2536
    %v2544 = vmul.f32 %v2526, %v2541
    %v2545 = vadd.f32 %v2543, %v1615
    %v2546 = vadd.f32 %v2544, %v1620
    %2547 = vset.pattern.permute.xlu0 1
    %2548 = vperm.xlu0 %2547, %v2531
    %v2549 = vpop.permute.xlu0 %2548
    %2551 = vset.pattern.permute.xlu0 1
    %2552 = vperm.xlu0 %2551, %v2532
    %v2553 = vpop.permute.xlu0 %2552
    %v2555 = vmul.f32 %v2523, %v2549
    %v2556 = vmul.f32 %v2526, %v2553
    %2557 = vrot.lane.b32.xlu0 %v1615, 8
    %v2558 = vpop.permute.xlu0 %2557
    %2559 = vrot.lane.b32.xlu0 %v1620, 8
    %v2560 = vpop.permute.xlu0 %2559
    %v2563 = vadd.f32 %v2555, %v2558
    %v2564 = vadd.f32 %v2556, %v2560
    %2565 = vset.pattern.permute.xlu0 2
    %2566 = vperm.xlu0 %2565, %v2531
    %v2567 = vpop.permute.xlu0 %2566
    %2569 = vset.pattern.permute.xlu0 2
    %2570 = vperm.xlu0 %2569, %v2532
    %v2571 = vpop.permute.xlu0 %2570
    %v2573 = vmul.f32 %v2523, %v2567
    %v2574 = vmul.f32 %v2526, %v2571
    %2575 = vrot.lane.b32.xlu0 %v1615, 16
    %v2576 = vpop.permute.xlu0 %2575
    %2577 = vrot.lane.b32.xlu0 %v1620, 16
    %v2578 = vpop.permute.xlu0 %2577
    %v2581 = vadd.f32 %v2573, %v2576
    %v2582 = vadd.f32 %v2574, %v2578
    %2583 = vset.pattern.permute.xlu0 3
    %2584 = vperm.xlu0 %2583, %v2531
    %v2585 = vpop.permute.xlu0 %2584
    %2587 = vset.pattern.permute.xlu0 3
    %2588 = vperm.xlu0 %2587, %v2532
    %v2589 = vpop.permute.xlu0 %2588
    %v2591 = vmul.f32 %v2523, %v2585
    %v2592 = vmul.f32 %v2526, %v2589
    %2593 = vrot.lane.b32.xlu0 %v1615, 24
    %v2594 = vpop.permute.xlu0 %2593
    %2595 = vrot.lane.b32.xlu0 %v1620, 24
    %v2596 = vpop.permute.xlu0 %2595
    %v2599 = vadd.f32 %v2591, %v2594
    %v2600 = vadd.f32 %v2592, %v2596
    %v2601 = vsel %vm460, %v2545, %v2563
    %v2602 = vsel %vm460, %v2546, %v2564
    %v2603 = vsel %vm377, %v2601, %v2581
    %v2604 = vsel %vm377, %v2602, %v2582
    %v2605 = vsel %vm1321, %v2603, %v2599
    %v2606 = vsel %vm1321, %v2604, %v2600
    %v2607 = vld [vmem:[%s53] sm:$0x1]
    %v2609 = vlaneseq
    %v2610 = vshrl.u32 %v2609, 7
    %v2611 = vsub.s32 0, %v2610
    %v2612 = vrot.slane %v2607, %v2611
    %v2614 = vmul.f32 %v2605, %v2612
    %v2615 = vmul.f32 %v2606, %v2612
    %v2616 = vld [vmem:[%s55] sm:$0x1]
    %v2618 = vlaneseq
    %v2619 = vshrl.u32 %v2618, 7
    %v2620 = vsub.s32 0, %v2619
    %v2621 = vrot.slane %v2616, %v2620
    %v2623 = vadd.f32 %v2614, %v2621
    %v2624 = vadd.f32 %v2615, %v2621
    %v2625 = vmax.f32 %v2623, 0.0
    %v2626 = vmax.f32 %v2624, 0.0
    %v2627 = vld [vmem:[%s57] sm:$0xff]
    %v2628 = vld [vmem:[%s57 + $0x8] sm:$0xff]
    %v2629 = vld [vmem:[%s57 + $0x10] sm:$0xff]
    %v2630 = vld [vmem:[%s57 + $0x18] sm:$0xff]
    %v2631 = vld [vmem:[%s59] sm:$0x1]
    %v2633 = vlaneseq
    %v2634 = vshrl.u32 %v2633, 7
    %v2635 = vsub.s32 0, %v2634
    %v2636 = vrot.slane %v2631, %v2635
    %v2639 = vsel %vm185, %v2625, 0
    %v2642 = vsel %vm185, %v2626, 0
    %2644 = vmatprep.subr.mxu0 0.0
    %2645 = vmatpush1.msra.mxu0 %v2627
    %2646 = vmatprep.subr.mxu0 0.0
    %2647 = vmatpush1.msra.mxu0 %v2628
    %2648 = vmatprep.subr.mxu0 0.0
    %2649 = vmatpush1.msra.mxu0 %v2629
    %2650 = vmatprep.subr.mxu0 0.0
    %2651 = vmatpush1.msra.mxu0 %v2630
    %2652 = vmatprep.subr.mxu0 0.0
    %2653 = vmatpush1.msra.mxu0 0.0
    %2654 = vmatprep.subr.mxu0 0.0
    %2655 = vmatpush1.msra.mxu0 0.0
    %2656 = vmatprep.subr.mxu0 0.0
    %2657 = vmatpush1.msra.mxu0 0.0
    %2658 = vmatprep.subr.mxu0 0.0
    %2659 = vmatpush1.msra.mxu0 0.0
    %2660 = vmatprep.subr.mxu0 0.0
    %2661 = vmatpush1.msra.mxu0 0.0
    %2662 = vmatprep.subr.mxu0 0.0
    %2663 = vmatpush1.msra.mxu0 0.0
    %2664 = vmatprep.subr.mxu0 0.0
    %2665 = vmatpush1.msra.mxu0 0.0
    %2666 = vmatprep.subr.mxu0 0.0
    %2667 = vmatpush1.msra.mxu0 0.0
    %2668 = vmatprep.subr.mxu0 0.0
    %2669 = vmatpush1.msra.mxu0 0.0
    %2670 = vmatprep.subr.mxu0 0.0
    %2671 = vmatpush1.msra.mxu0 0.0
    %2672 = vmatprep.subr.mxu0 0.0
    %2673 = vmatpush1.msra.mxu0 0.0
    %2674 = vmatprep.subr.mxu0 0.0
    %2675 = vmatpush1.msra.mxu0 0.0
    %2676 = vmatprep.subr.mxu0 0.0
    %2677 = vmatpush1.msra.mxu0 0.0
    %2678 = vmatprep.subr.mxu0 0.0
    %2679 = vmatpush1.msra.mxu0 0.0
    %2680 = vmatprep.subr.mxu0 0.0
    %2681 = vmatpush1.msra.mxu0 0.0
    %2682 = vmatprep.subr.mxu0 0.0
    %2683 = vmatpush1.msra.mxu0 0.0
    %2684 = vmatprep.subr.mxu0 0.0
    %2685 = vmatpush1.msra.mxu0 0.0
    %2686 = vmatprep.subr.mxu0 0.0
    %2687 = vmatpush1.msra.mxu0 0.0
    %2688 = vmatprep.subr.mxu0 0.0
    %2689 = vmatpush1.msra.mxu0 0.0
    %2690 = vmatprep.subr.mxu0 0.0
    %2691 = vmatpush1.msra.mxu0 0.0
    %2692 = vmatprep.subr.mxu0 0.0
    %2693 = vmatpush1.msra.mxu0 0.0
    %2694 = vmatprep.subr.mxu0 0.0
    %2695 = vmatpush1.msra.mxu0 0.0
    %2696 = vmatprep.subr.mxu0 0.0
    %2697 = vmatpush1.msra.mxu0 0.0
    %2698 = vmatprep.subr.mxu0 0.0
    %2699 = vmatpush1.msra.mxu0 0.0
    %2700 = vmatprep.subr.mxu0 0.0
    %2701 = vmatpush1.msra.mxu0 0.0
    %2702 = vmatprep.subr.mxu0 0.0
    %2703 = vmatpush1.msra.mxu0 0.0
    %2704 = vmatprep.subr.mxu0 0.0
    %2705 = vmatpush1.msra.mxu0 0.0
    %2706 = vmatprep.subr.mxu0 0.0
    %2707 = vmatpush1.msra.mxu0 0.0
    %2708 = vmatprep.mubr.f32.mxu0 0.0
    %2709 = vmatmul.mubr.f32.gmra.mrb[0].mxu0 %v2639
    %v2710 = vpop.f32.mrb[0].mxu0
    %v2711 = vadd.f32 %v2636, %v2710
    %v2712 = vpop.f32.mrb[0].mxu0
    %2713 = vmatprep.mubr.f32.mxu0 0.0
    %2714 = vmatmul.mubr.f32.gmra.mrb[0].mxu0 %v2642
    %v2715 = vpop.f32.mrb[0].mxu0
    %v2716 = vadd.f32 %v2636, %v2715
    %v2717 = vpop.f32.mrb[0].mxu0
    %2718 = vdwg.mxu0
    %v2719 = vld [vmem:[%s65] sm:$0xff]
    %v2721 = vsel %vm460, %v2711, 0
    %v2724 = vsel %vm460, %v2716, 0
    %2726 = vmatprep.subr.mxu0 0.0
    %2727 = vmatpush1.msra.mxu0 %v2719
    %2728 = vmatprep.subr.mxu0 0.0
    %2729 = vmatpush1.msra.mxu0 0.0
    %2730 = vmatprep.subr.mxu0 0.0
    %2731 = vmatpush1.msra.mxu0 0.0
    %2732 = vmatprep.subr.mxu0 0.0
    %2733 = vmatpush1.msra.mxu0 0.0
    %2734 = vmatprep.subr.mxu0 0.0
    %2735 = vmatpush1.msra.mxu0 0.0
    %2736 = vmatprep.subr.mxu0 0.0
    %2737 = vmatpush1.msra.mxu0 0.0
    %2738 = vmatprep.subr.mxu0 0.0
    %2739 = vmatpush1.msra.mxu0 0.0
    %2740 = vmatprep.subr.mxu0 0.0
    %2741 = vmatpush1.msra.mxu0 0.0
    %2742 = vmatprep.subr.mxu0 0.0
    %2743 = vmatpush1.msra.mxu0 0.0
    %2744 = vmatprep.subr.mxu0 0.0
    %2745 = vmatpush1.msra.mxu0 0.0
    %2746 = vmatprep.subr.mxu0 0.0
    %2747 = vmatpush1.msra.mxu0 0.0
    %2748 = vmatprep.subr.mxu0 0.0
    %2749 = vmatpush1.msra.mxu0 0.0
    %2750 = vmatprep.subr.mxu0 0.0
    %2751 = vmatpush1.msra.mxu0 0.0
    %2752 = vmatprep.subr.mxu0 0.0
    %2753 = vmatpush1.msra.mxu0 0.0
    %2754 = vmatprep.subr.mxu0 0.0
    %2755 = vmatpush1.msra.mxu0 0.0
    %2756 = vmatprep.subr.mxu0 0.0
    %2757 = vmatpush1.msra.mxu0 0.0
    %2758 = vmatprep.subr.mxu0 0.0
    %2759 = vmatpush1.msra.mxu0 0.0
    %2760 = vmatprep.subr.mxu0 0.0
    %2761 = vmatpush1.msra.mxu0 0.0
    %2762 = vmatprep.subr.mxu0 0.0
    %2763 = vmatpush1.msra.mxu0 0.0
    %2764 = vmatprep.subr.mxu0 0.0
    %2765 = vmatpush1.msra.mxu0 0.0
    %2766 = vmatprep.subr.mxu0 0.0
    %2767 = vmatpush1.msra.mxu0 0.0
    %2768 = vmatprep.subr.mxu0 0.0
    %2769 = vmatpush1.msra.mxu0 0.0
    %2770 = vmatprep.subr.mxu0 0.0
    %2771 = vmatpush1.msra.mxu0 0.0
    %2772 = vmatprep.subr.mxu0 0.0
    %2773 = vmatpush1.msra.mxu0 0.0
    %2774 = vmatprep.subr.mxu0 0.0
    %2775 = vmatpush1.msra.mxu0 0.0
    %2776 = vmatprep.subr.mxu0 0.0
    %2777 = vmatpush1.msra.mxu0 0.0
    %2778 = vmatprep.subr.mxu0 0.0
    %2779 = vmatpush1.msra.mxu0 0.0
    %2780 = vmatprep.subr.mxu0 0.0
    %2781 = vmatpush1.msra.mxu0 0.0
    %2782 = vmatprep.subr.mxu0 0.0
    %2783 = vmatpush1.msra.mxu0 0.0
    %2784 = vmatprep.subr.mxu0 0.0
    %2785 = vmatpush1.msra.mxu0 0.0
    %2786 = vmatprep.subr.mxu0 0.0
    %2787 = vmatpush1.msra.mxu0 0.0
    %2788 = vmatprep.subr.mxu0 0.0
    %2789 = vmatpush1.msra.mxu0 0.0
    %2790 = vmatprep.mubr.f32.mxu0 0.0
    %2791 = vmatmul.mubr.f32.gmra.mrb[0].mxu0 %v2721
    %v2792 = vpop.f32.mrb[0].mxu0
    %v2793 = vadd.f32 0.0, %v2792
    %v2794 = vpop.f32.mrb[0].mxu0
    %2795 = vmatprep.mubr.f32.mxu0 0.0
    %2796 = vmatmul.mubr.f32.gmra.mrb[0].mxu0 %v2724
    %v2797 = vpop.f32.mrb[0].mxu0
    %v2798 = vadd.f32 0.0, %v2797
    %v2799 = vpop.f32.mrb[0].mxu0
    %2800 = vdwg.mxu0
    %v2801 = vld [vmem:[%s67] sm:$0xff]
    %2802 = vmatprep.subr.mxu0 0.0
    %2803 = vmatpush1.msra.mxu0 %v2801
    %2804 = vmatprep.subr.mxu0 0.0
    %2805 = vmatpush1.msra.mxu0 0.0
    %2806 = vmatprep.subr.mxu0 0.0
    %2807 = vmatpush1.msra.mxu0 0.0
    %2808 = vmatprep.subr.mxu0 0.0
    %2809 = vmatpush1.msra.mxu0 0.0
    %2810 = vmatprep.subr.mxu0 0.0
    %2811 = vmatpush1.msra.mxu0 0.0
    %2812 = vmatprep.subr.mxu0 0.0
    %2813 = vmatpush1.msra.mxu0 0.0
    %2814 = vmatprep.subr.mxu0 0.0
    %2815 = vmatpush1.msra.mxu0 0.0
    %2816 = vmatprep.subr.mxu0 0.0
    %2817 = vmatpush1.msra.mxu0 0.0
    %2818 = vmatprep.subr.mxu0 0.0
    %2819 = vmatpush1.msra.mxu0 0.0
    %2820 = vmatprep.subr.mxu0 0.0
    %2821 = vmatpush1.msra.mxu0 0.0
    %2822 = vmatprep.subr.mxu0 0.0
    %2823 = vmatpush1.msra.mxu0 0.0
    %2824 = vmatprep.subr.mxu0 0.0
    %2825 = vmatpush1.msra.mxu0 0.0
    %2826 = vmatprep.subr.mxu0 0.0
    %2827 = vmatpush1.msra.mxu0 0.0
    %2828 = vmatprep.subr.mxu0 0.0
    %2829 = vmatpush1.msra.mxu0 0.0
    %2830 = vmatprep.subr.mxu0 0.0
    %2831 = vmatpush1.msra.mxu0 0.0
    %2832 = vmatprep.subr.mxu0 0.0
    %2833 = vmatpush1.msra.mxu0 0.0
    %2834 = vmatprep.subr.mxu0 0.0
    %2835 = vmatpush1.msra.mxu0 0.0
    %2836 = vmatprep.subr.mxu0 0.0
    %2837 = vmatpush1.msra.mxu0 0.0
    %2838 = vmatprep.subr.mxu0 0.0
    %2839 = vmatpush1.msra.mxu0 0.0
    %2840 = vmatprep.subr.mxu0 0.0
    %2841 = vmatpush1.msra.mxu0 0.0
    %2842 = vmatprep.subr.mxu0 0.0
    %2843 = vmatpush1.msra.mxu0 0.0
    %2844 = vmatprep.subr.mxu0 0.0
    %2845 = vmatpush1.msra.mxu0 0.0
    %2846 = vmatprep.subr.mxu0 0.0
    %2847 = vmatpush1.msra.mxu0 0.0
    %2848 = vmatprep.subr.mxu0 0.0
    %2849 = vmatpush1.msra.mxu0 0.0
    %2850 = vmatprep.subr.mxu0 0.0
    %2851 = vmatpush1.msra.mxu0 0.0
    %2852 = vmatprep.subr.mxu0 0.0
    %2853 = vmatpush1.msra.mxu0 0.0
    %2854 = vmatprep.subr.mxu0 0.0
    %2855 = vmatpush1.msra.mxu0 0.0
    %2856 = vmatprep.subr.mxu0 0.0
    %2857 = vmatpush1.msra.mxu0 0.0
    %2858 = vmatprep.subr.mxu0 0.0
    %2859 = vmatpush1.msra.mxu0 0.0
    %2860 = vmatprep.subr.mxu0 0.0
    %2861 = vmatpush1.msra.mxu0 0.0
    %2862 = vmatprep.subr.mxu0 0.0
    %2863 = vmatpush1.msra.mxu0 0.0
    %2864 = vmatprep.subr.mxu0 0.0
    %2865 = vmatpush1.msra.mxu0 0.0
    %2866 = vmatprep.mubr.f32.mxu0 0.0
    %2867 = vmatmul.mubr.f32.gmra.mrb[0].mxu0 %v2721
    %v2868 = vpop.f32.mrb[0].mxu0
    %v2869 = vadd.f32 0.0, %v2868
    %v2870 = vpop.f32.mrb[0].mxu0
    %2871 = vmatprep.mubr.f32.mxu0 0.0
    %2872 = vmatmul.mubr.f32.gmra.mrb[0].mxu0 %v2724
    %v2873 = vpop.f32.mrb[0].mxu0
    %v2874 = vadd.f32 0.0, %v2873
    %v2875 = vpop.f32.mrb[0].mxu0
    %2876 = vdwg.mxu0
    %v2877 = vpack.c.bf16 %v2798, %v2793
    %v2878 = vpack.c.bf16 %v2874, %v2869
    %2879 = vmatprep.subr.bf16.mxu0 0
    %2880 = vmatpush1.bf16.msra.mxu0 %v2878
    %2881 = vmatprep.subr.bf16.mxu0 0
    %2882 = vmatpush1.bf16.msra.mxu0 0
    %2883 = vmatprep.subr.bf16.mxu0 0
    %2884 = vmatpush1.bf16.msra.mxu0 0
    %2885 = vmatprep.subr.bf16.mxu0 0
    %2886 = vmatpush1.bf16.msra.mxu0 0
    %2887 = vmatprep.subr.bf16.mxu0 0
    %2888 = vmatpush1.bf16.msra.mxu0 0
    %2889 = vmatprep.subr.bf16.mxu0 0
    %2890 = vmatpush1.bf16.msra.mxu0 0
    %2891 = vmatprep.subr.bf16.mxu0 0
    %2892 = vmatpush1.bf16.msra.mxu0 0
    %2893 = vmatprep.subr.bf16.mxu0 0
    %2894 = vmatpush1.bf16.msra.mxu0 0
    %2895 = vmatprep.subr.bf16.mxu0 0
    %2896 = vmatpush1.bf16.msra.mxu0 0
    %2897 = vmatprep.subr.bf16.mxu0 0
    %2898 = vmatpush1.bf16.msra.mxu0 0
    %2899 = vmatprep.subr.bf16.mxu0 0
    %2900 = vmatpush1.bf16.msra.mxu0 0
    %2901 = vmatprep.subr.bf16.mxu0 0
    %2902 = vmatpush1.bf16.msra.mxu0 0
    %2903 = vmatprep.subr.bf16.mxu0 0
    %2904 = vmatpush1.bf16.msra.mxu0 0
    %2905 = vmatprep.subr.bf16.mxu0 0
    %2906 = vmatpush1.bf16.msra.mxu0 0
    %2907 = vmatprep.subr.bf16.mxu0 0
    %2908 = vmatpush1.bf16.msra.mxu0 0
    %2909 = vmatprep.subr.bf16.mxu0 0
    %2910 = vmatpush1.bf16.msra.mxu0 0
    %2911 = vmatprep.mubr.bf16.mxu0 0
    %2912 = vmatmul.mubr.bf16.gmra.mrb[0].mxu0 %v631
    %v2913 = vpop.f32.mrb[0].mxu0
    %v2914 = vadd.f32 0.0, %v2913
    %v2915 = vpop.f32.mrb[0].mxu0
    %v2916 = vpop.f32.mrb[0].mxu0
    %v2917 = vadd.f32 0.0, %v2916
    %v2918 = vpop.f32.mrb[0].mxu0
    %2919 = vmatprep.mubr.bf16.mxu0 0
    %2920 = vmatmul.mubr.bf16.gmra.mrb[0].mxu0 %v634
    %v2921 = vpop.f32.mrb[0].mxu0
    %v2922 = vadd.f32 0.0, %v2921
    %v2923 = vpop.f32.mrb[0].mxu0
    %v2924 = vpop.f32.mrb[0].mxu0
    %v2925 = vadd.f32 0.0, %v2924
    %v2926 = vpop.f32.mrb[0].mxu0
    %2927 = vdwg.mxu0
    %v2928 = vld [vmem:[%s61] sm:$0xff]
    %v2929 = vld [vmem:[%s61 + $0x8] sm:$0xff]
    %v2930 = vld [vmem:[%s61 + $0x10] sm:$0xff]
    %v2931 = vld [vmem:[%s61 + $0x18] sm:$0xff]
    %vm2932 = vcmp.gt.f32.partialorder %v2928, 0.0
    %vm2933 = vcmp.gt.f32.partialorder %v2929, 0.0
    %vm2934 = vcmp.gt.f32.partialorder %v2930, 0.0
    %vm2935 = vcmp.gt.f32.partialorder %v2931, 0.0
    %v2936 = vmul.f32 %v2928, 0.2
    %v2937 = vmul.f32 %v2929, 0.2
    %v2938 = vmul.f32 %v2930, 0.2
    %v2939 = vmul.f32 %v2931, 0.2
    %v2940 = vsel %vm2932, %v2928, %v2936
    %v2941 = vsel %vm2933, %v2929, %v2937
    %v2942 = vsel %vm2934, %v2930, %v2938
    %v2943 = vsel %vm2935, %v2931, %v2939
    %v2944 = vld [vmem:[%s63] sm:$0xff]
    %v2945 = vld [vmem:[%s63 + $0x8] sm:$0xff]
    %2946 = vmatprep.subr.mxu0 0.0
    %2947 = vmatpush1.msra.mxu0 %v2944
    %2948 = vmatprep.subr.mxu0 0.0
    %2949 = vmatpush1.msra.mxu0 %v2945
    %2950 = vmatprep.subr.mxu0 0.0
    %2951 = vmatpush1.msra.mxu0 0.0
    %2952 = vmatprep.subr.mxu0 0.0
    %2953 = vmatpush1.msra.mxu0 0.0
    %2954 = vmatprep.subr.mxu0 0.0
    %2955 = vmatpush1.msra.mxu0 0.0
    %2956 = vmatprep.subr.mxu0 0.0
    %2957 = vmatpush1.msra.mxu0 0.0
    %2958 = vmatprep.subr.mxu0 0.0
    %2959 = vmatpush1.msra.mxu0 0.0
    %2960 = vmatprep.subr.mxu0 0.0
    %2961 = vmatpush1.msra.mxu0 0.0
    %2962 = vmatprep.subr.mxu0 0.0
    %2963 = vmatpush1.msra.mxu0 0.0
    %2964 = vmatprep.subr.mxu0 0.0
    %2965 = vmatpush1.msra.mxu0 0.0
    %2966 = vmatprep.subr.mxu0 0.0
    %2967 = vmatpush1.msra.mxu0 0.0
    %2968 = vmatprep.subr.mxu0 0.0
    %2969 = vmatpush1.msra.mxu0 0.0
    %2970 = vmatprep.subr.mxu0 0.0
    %2971 = vmatpush1.msra.mxu0 0.0
    %2972 = vmatprep.subr.mxu0 0.0
    %2973 = vmatpush1.msra.mxu0 0.0
    %2974 = vmatprep.subr.mxu0 0.0
    %2975 = vmatpush1.msra.mxu0 0.0
    %2976 = vmatprep.subr.mxu0 0.0
    %2977 = vmatpush1.msra.mxu0 0.0
    %2978 = vmatprep.subr.mxu0 0.0
    %2979 = vmatpush1.msra.mxu0 0.0
    %2980 = vmatprep.subr.mxu0 0.0
    %2981 = vmatpush1.msra.mxu0 0.0
    %2982 = vmatprep.subr.mxu0 0.0
    %2983 = vmatpush1.msra.mxu0 0.0
    %2984 = vmatprep.subr.mxu0 0.0
    %2985 = vmatpush1.msra.mxu0 0.0
    %2986 = vmatprep.subr.mxu0 0.0
    %2987 = vmatpush1.msra.mxu0 0.0
    %2988 = vmatprep.subr.mxu0 0.0
    %2989 = vmatpush1.msra.mxu0 0.0
    %2990 = vmatprep.subr.mxu0 0.0
    %2991 = vmatpush1.msra.mxu0 0.0
    %2992 = vmatprep.subr.mxu0 0.0
    %2993 = vmatpush1.msra.mxu0 0.0
    %2994 = vmatprep.subr.mxu0 0.0
    %2995 = vmatpush1.msra.mxu0 0.0
    %2996 = vmatprep.subr.mxu0 0.0
    %2997 = vmatpush1.msra.mxu0 0.0
    %2998 = vmatprep.subr.mxu0 0.0
    %2999 = vmatpush1.msra.mxu0 0.0
    %3000 = vmatprep.subr.mxu0 0.0
    %3001 = vmatpush1.msra.mxu0 0.0
    %3002 = vmatprep.subr.mxu0 0.0
    %3003 = vmatpush1.msra.mxu0 0.0
    %3004 = vmatprep.subr.mxu0 0.0
    %3005 = vmatpush1.msra.mxu0 0.0
    %3006 = vmatprep.subr.mxu0 0.0
    %3007 = vmatpush1.msra.mxu0 0.0
    %3008 = vmatprep.subr.mxu0 0.0
    %3009 = vmatpush1.msra.mxu0 0.0
    %3010 = vmatprep.mubr.f32.mxu0 0.0
    %3011 = vmatmul.mubr.f32.gmra.mrb[0].mxu0 %v704
    %v3012 = vpop.f32.mrb[0].mxu0
    %v3013 = vadd.f32 0.0, %v3012
    %v3014 = vpop.f32.mrb[0].mxu0
    %3015 = vmatprep.mubr.f32.mxu0 0.0
    %3016 = vmatmul.mubr.f32.gmra.mrb[0].mxu0 %v707
    %v3017 = vpop.f32.mrb[0].mxu0
    %v3018 = vadd.f32 0.0, %v3017
    %v3019 = vpop.f32.mrb[0].mxu0
    %3020 = vmatprep.mubr.f32.mxu0 0.0
    %3021 = vmatmul.mubr.f32.gmra.mrb[0].mxu0 %v710
    %v3022 = vpop.f32.mrb[0].mxu0
    %v3023 = vadd.f32 0.0, %v3022
    %v3024 = vpop.f32.mrb[0].mxu0
    %3025 = vmatprep.mubr.f32.mxu0 0.0
    %3026 = vmatmul.mubr.f32.gmra.mrb[0].mxu0 %v713
    %v3027 = vpop.f32.mrb[0].mxu0
    %v3028 = vadd.f32 0.0, %v3027
    %v3029 = vpop.f32.mrb[0].mxu0
    %3030 = vdwg.mxu0
    %vm3031 = vcmp.gt.f32.partialorder %v3013, 0.0
    %vm3032 = vcmp.gt.f32.partialorder %v3018, 0.0
    %vm3033 = vcmp.gt.f32.partialorder %v3023, 0.0
    %vm3034 = vcmp.gt.f32.partialorder %v3028, 0.0
    %v3035 = vmul.f32 %v3013, 0.2
    %v3036 = vmul.f32 %v3018, 0.2
    %v3037 = vmul.f32 %v3023, 0.2
    %v3038 = vmul.f32 %v3028, 0.2
    %v3039 = vsel %vm3031, %v3013, %v3035
    %v3040 = vsel %vm3032, %v3018, %v3036
    %v3041 = vsel %vm3033, %v3023, %v3037
    %v3042 = vsel %vm3034, %v3028, %v3038
    %3047 = vrot.lane.b32.xlu0 %v3039, 8
    %v3048 = vpop.permute.xlu0 %3047
    %3049 = vrot.lane.b32.xlu0 %v3040, 8
    %v3050 = vpop.permute.xlu0 %3049
    %3051 = vrot.lane.b32.xlu0 %v3041, 8
    %v3052 = vpop.permute.xlu0 %3051
    %3053 = vrot.lane.b32.xlu0 %v3042, 8
    %v3054 = vpop.permute.xlu0 %3053
    %v3059 = vsel %vm460, %v2940, %v3048
    %v3060 = vsel %vm460, %v2941, %v3050
    %v3061 = vsel %vm460, %v2942, %v3052
    %v3062 = vsel %vm460, %v2943, %v3054
    %3063 = vmatprep.subr.bf16.mxu0 0
    %3064 = vmatpush1.bf16.msra.mxu0 %v2877
    %3065 = vmatprep.subr.bf16.mxu0 0
    %3066 = vmatpush1.bf16.msra.mxu0 0
    %3067 = vmatprep.subr.bf16.mxu0 0
    %3068 = vmatpush1.bf16.msra.mxu0 0
    %3069 = vmatprep.subr.bf16.mxu0 0
    %3070 = vmatpush1.bf16.msra.mxu0 0
    %3071 = vmatprep.subr.bf16.mxu0 0
    %3072 = vmatpush1.bf16.msra.mxu0 0
    %3073 = vmatprep.subr.bf16.mxu0 0
    %3074 = vmatpush1.bf16.msra.mxu0 0
    %3075 = vmatprep.subr.bf16.mxu0 0
    %3076 = vmatpush1.bf16.msra.mxu0 0
    %3077 = vmatprep.subr.bf16.mxu0 0
    %3078 = vmatpush1.bf16.msra.mxu0 0
    %3079 = vmatprep.subr.bf16.mxu0 0
    %3080 = vmatpush1.bf16.msra.mxu0 0
    %3081 = vmatprep.subr.bf16.mxu0 0
    %3082 = vmatpush1.bf16.msra.mxu0 0
    %3083 = vmatprep.subr.bf16.mxu0 0
    %3084 = vmatpush1.bf16.msra.mxu0 0
    %3085 = vmatprep.subr.bf16.mxu0 0
    %3086 = vmatpush1.bf16.msra.mxu0 0
    %3087 = vmatprep.subr.bf16.mxu0 0
    %3088 = vmatpush1.bf16.msra.mxu0 0
    %3089 = vmatprep.subr.bf16.mxu0 0
    %3090 = vmatpush1.bf16.msra.mxu0 0
    %3091 = vmatprep.subr.bf16.mxu0 0
    %3092 = vmatpush1.bf16.msra.mxu0 0
    %3093 = vmatprep.subr.bf16.mxu0 0
    %3094 = vmatpush1.bf16.msra.mxu0 0
    %3095 = vmatprep.mubr.bf16.mxu0 0
    %3096 = vmatmul.mubr.bf16.gmra.mrb[0].mxu0 %v843
    %v3097 = vpop.f32.mrb[0].mxu0
    %v3098 = vadd.f32 %v2914, %v3097
    %v3099 = vpop.f32.mrb[0].mxu0
    %v3100 = vpop.f32.mrb[0].mxu0
    %v3101 = vadd.f32 %v2917, %v3100
    %v3102 = vpop.f32.mrb[0].mxu0
    %3103 = vmatprep.mubr.bf16.mxu0 0
    %3104 = vmatmul.mubr.bf16.gmra.mrb[0].mxu0 %v846
    %v3105 = vpop.f32.mrb[0].mxu0
    %v3106 = vadd.f32 %v2922, %v3105
    %v3107 = vpop.f32.mrb[0].mxu0
    %v3108 = vpop.f32.mrb[0].mxu0
    %v3109 = vadd.f32 %v2925, %v3108
    %v3110 = vpop.f32.mrb[0].mxu0
    %3111 = vdwg.mxu0
    %v3112 = vld [vmem:[%s69] sm:$0xff]
    %v3113 = vld [vmem:[%s69 + $0x8] sm:$0xff]
    %v3115 = vsel %vm377, %v3059, 0
    %v3118 = vsel %vm377, %v3060, 0
    %v3121 = vsel %vm377, %v3061, 0
    %v3124 = vsel %vm377, %v3062, 0
    %3126 = vmatprep.subr.mxu0 0.0
    %3127 = vmatpush1.msra.mxu0 %v3112
    %3128 = vmatprep.subr.mxu0 0.0
    %3129 = vmatpush1.msra.mxu0 %v3113
    %3130 = vmatprep.subr.mxu0 0.0
    %3131 = vmatpush1.msra.mxu0 0.0
    %3132 = vmatprep.subr.mxu0 0.0
    %3133 = vmatpush1.msra.mxu0 0.0
    %3134 = vmatprep.subr.mxu0 0.0
    %3135 = vmatpush1.msra.mxu0 0.0
    %3136 = vmatprep.subr.mxu0 0.0
    %3137 = vmatpush1.msra.mxu0 0.0
    %3138 = vmatprep.subr.mxu0 0.0
    %3139 = vmatpush1.msra.mxu0 0.0
    %3140 = vmatprep.subr.mxu0 0.0
    %3141 = vmatpush1.msra.mxu0 0.0
    %3142 = vmatprep.subr.mxu0 0.0
    %3143 = vmatpush1.msra.mxu0 0.0
    %3144 = vmatprep.subr.mxu0 0.0
    %3145 = vmatpush1.msra.mxu0 0.0
    %3146 = vmatprep.subr.mxu0 0.0
    %3147 = vmatpush1.msra.mxu0 0.0
    %3148 = vmatprep.subr.mxu0 0.0
    %3149 = vmatpush1.msra.mxu0 0.0
    %3150 = vmatprep.subr.mxu0 0.0
    %3151 = vmatpush1.msra.mxu0 0.0
    %3152 = vmatprep.subr.mxu0 0.0
    %3153 = vmatpush1.msra.mxu0 0.0
    %3154 = vmatprep.subr.mxu0 0.0
    %3155 = vmatpush1.msra.mxu0 0.0
    %3156 = vmatprep.subr.mxu0 0.0
    %3157 = vmatpush1.msra.mxu0 0.0
    %3158 = vmatprep.subr.mxu0 0.0
    %3159 = vmatpush1.msra.mxu0 0.0
    %3160 = vmatprep.subr.mxu0 0.0
    %3161 = vmatpush1.msra.mxu0 0.0
    %3162 = vmatprep.subr.mxu0 0.0
    %3163 = vmatpush1.msra.mxu0 0.0
    %3164 = vmatprep.subr.mxu0 0.0
    %3165 = vmatpush1.msra.mxu0 0.0
    %3166 = vmatprep.subr.mxu0 0.0
    %3167 = vmatpush1.msra.mxu0 0.0
    %3168 = vmatprep.subr.mxu0 0.0
    %3169 = vmatpush1.msra.mxu0 0.0
    %3170 = vmatprep.subr.mxu0 0.0
    %3171 = vmatpush1.msra.mxu0 0.0
    %3172 = vmatprep.subr.mxu0 0.0
    %3173 = vmatpush1.msra.mxu0 0.0
    %3174 = vmatprep.subr.mxu0 0.0
    %3175 = vmatpush1.msra.mxu0 0.0
    %3176 = vmatprep.subr.mxu0 0.0
    %3177 = vmatpush1.msra.mxu0 0.0
    %3178 = vmatprep.subr.mxu0 0.0
    %3179 = vmatpush1.msra.mxu0 0.0
    %3180 = vmatprep.subr.mxu0 0.0
    %3181 = vmatpush1.msra.mxu0 0.0
    %3182 = vmatprep.subr.mxu0 0.0
    %3183 = vmatpush1.msra.mxu0 0.0
    %3184 = vmatprep.subr.mxu0 0.0
    %3185 = vmatpush1.msra.mxu0 0.0
    %3186 = vmatprep.subr.mxu0 0.0
    %3187 = vmatpush1.msra.mxu0 0.0
    %3188 = vmatprep.subr.mxu0 0.0
    %3189 = vmatpush1.msra.mxu0 0.0
    %3190 = vmatprep.mubr.f32.mxu0 0.0
    %3191 = vmatmul.mubr.f32.gmra.mrb[0].mxu0 %v3115
    %v3192 = vpop.f32.mrb[0].mxu0
    %v3193 = vadd.f32 0.0, %v3192
    %v3194 = vpop.f32.mrb[0].mxu0
    %3195 = vmatprep.mubr.f32.mxu0 0.0
    %3196 = vmatmul.mubr.f32.gmra.mrb[0].mxu0 %v3118
    %v3197 = vpop.f32.mrb[0].mxu0
    %v3198 = vadd.f32 0.0, %v3197
    %v3199 = vpop.f32.mrb[0].mxu0
    %3200 = vmatprep.mubr.f32.mxu0 0.0
    %3201 = vmatmul.mubr.f32.gmra.mrb[0].mxu0 %v3121
    %v3202 = vpop.f32.mrb[0].mxu0
    %v3203 = vadd.f32 0.0, %v3202
    %v3204 = vpop.f32.mrb[0].mxu0
    %3205 = vmatprep.mubr.f32.mxu0 0.0
    %3206 = vmatmul.mubr.f32.gmra.mrb[0].mxu0 %v3124
    %v3207 = vpop.f32.mrb[0].mxu0
    %v3208 = vadd.f32 0.0, %v3207
    %v3209 = vpop.f32.mrb[0].mxu0
    %3210 = vdwg.mxu0
    %v3211 = vadd.f32 %v3098, %v3193
    %v3212 = vadd.f32 %v3101, %v3198
    %v3213 = vadd.f32 %v3106, %v3203
    %v3214 = vadd.f32 %v3109, %v3208
    %vm3215 = vcmp.gt.f32.partialorder %v3211, 0.0
    %vm3216 = vcmp.gt.f32.partialorder %v3212, 0.0
    %vm3217 = vcmp.gt.f32.partialorder %v3213, 0.0
    %vm3218 = vcmp.gt.f32.partialorder %v3214, 0.0
    %v3219 = vmul.f32 %v3211, 0.2
    %v3220 = vmul.f32 %v3212, 0.2
    %v3221 = vmul.f32 %v3213, 0.2
    %v3222 = vmul.f32 %v3214, 0.2
    %v3223 = vsel %vm3215, %v3211, %v3219
    %v3224 = vsel %vm3216, %v3212, %v3220
    %v3225 = vsel %vm3217, %v3213, %v3221
    %v3226 = vsel %vm3218, %v3214, %v3222
    %v3227 = vsel %vm1012, %v3223, -inf
    %v3228 = vsel %vm1012, %v3224, -inf
    %v3229 = vsel %vm1012, %v3225, -inf
    %v3230 = vsel %vm1012, %v3226, -inf
    %v3231 = vmax.f32 %v3227, %v3228
    %v3232 = vmax.f32 %v3229, %v3230
    %v3233 = vmax.f32 %v3231, %v3232
    %v3234 = vrot.slane %v3233, 4
    %v3235 = vmax.f32 %v3233, %v3234
    %v3236 = vrot.slane %v3235, 2
    %v3237 = vmax.f32 %v3235, %v3236
    %v3238 = vrot.slane %v3237, 1
    %v3239 = vmax.f32 %v3237, %v3238
    %v3240 = vsub.f32 %v3223, %v3239
    %v3241 = vsub.f32 %v3224, %v3239
    %v3242 = vsub.f32 %v3225, %v3239
    %v3243 = vsub.f32 %v3226, %v3239
    %v3244 = vmul.f32 %v3240, 1.442695
    %v3245 = vpow.pop %v3244
    %v3246 = vmul.f32 %v3241, 1.442695
    %v3247 = vpow.pop %v3246
    %v3248 = vmul.f32 %v3242, 1.442695
    %v3249 = vpow.pop %v3248
    %v3250 = vmul.f32 %v3243, 1.442695
    %v3251 = vpow.pop %v3250
    %v3252 = vld [vmem:[%s71] sm:$0xff]
    %v3253 = vsel %vm460, %v3039, 0
    %v3255 = vsel %vm460, %v3040, 0
    %v3257 = vsel %vm460, %v3041, 0
    %v3259 = vsel %vm460, %v3042, 0
    %3261 = vmatprep.subr.mxu0 0.0
    %3262 = vmatpush1.msra.mxu0 %v3252
    %3263 = vmatprep.subr.mxu0 0.0
    %3264 = vmatpush1.msra.mxu0 0.0
    %3265 = vmatprep.subr.mxu0 0.0
    %3266 = vmatpush1.msra.mxu0 0.0
    %3267 = vmatprep.subr.mxu0 0.0
    %3268 = vmatpush1.msra.mxu0 0.0
    %3269 = vmatprep.subr.mxu0 0.0
    %3270 = vmatpush1.msra.mxu0 0.0
    %3271 = vmatprep.subr.mxu0 0.0
    %3272 = vmatpush1.msra.mxu0 0.0
    %3273 = vmatprep.subr.mxu0 0.0
    %3274 = vmatpush1.msra.mxu0 0.0
    %3275 = vmatprep.subr.mxu0 0.0
    %3276 = vmatpush1.msra.mxu0 0.0
    %3277 = vmatprep.subr.mxu0 0.0
    %3278 = vmatpush1.msra.mxu0 0.0
    %3279 = vmatprep.subr.mxu0 0.0
    %3280 = vmatpush1.msra.mxu0 0.0
    %3281 = vmatprep.subr.mxu0 0.0
    %3282 = vmatpush1.msra.mxu0 0.0
    %3283 = vmatprep.subr.mxu0 0.0
    %3284 = vmatpush1.msra.mxu0 0.0
    %3285 = vmatprep.subr.mxu0 0.0
    %3286 = vmatpush1.msra.mxu0 0.0
    %3287 = vmatprep.subr.mxu0 0.0
    %3288 = vmatpush1.msra.mxu0 0.0
    %3289 = vmatprep.subr.mxu0 0.0
    %3290 = vmatpush1.msra.mxu0 0.0
    %3291 = vmatprep.subr.mxu0 0.0
    %3292 = vmatpush1.msra.mxu0 0.0
    %3293 = vmatprep.subr.mxu0 0.0
    %3294 = vmatpush1.msra.mxu0 0.0
    %3295 = vmatprep.subr.mxu0 0.0
    %3296 = vmatpush1.msra.mxu0 0.0
    %3297 = vmatprep.subr.mxu0 0.0
    %3298 = vmatpush1.msra.mxu0 0.0
    %3299 = vmatprep.subr.mxu0 0.0
    %3300 = vmatpush1.msra.mxu0 0.0
    %3301 = vmatprep.subr.mxu0 0.0
    %3302 = vmatpush1.msra.mxu0 0.0
    %3303 = vmatprep.subr.mxu0 0.0
    %3304 = vmatpush1.msra.mxu0 0.0
    %3305 = vmatprep.subr.mxu0 0.0
    %3306 = vmatpush1.msra.mxu0 0.0
    %3307 = vmatprep.subr.mxu0 0.0
    %3308 = vmatpush1.msra.mxu0 0.0
    %3309 = vmatprep.subr.mxu0 0.0
    %3310 = vmatpush1.msra.mxu0 0.0
    %3311 = vmatprep.subr.mxu0 0.0
    %3312 = vmatpush1.msra.mxu0 0.0
    %3313 = vmatprep.subr.mxu0 0.0
    %3314 = vmatpush1.msra.mxu0 0.0
    %3315 = vmatprep.subr.mxu0 0.0
    %3316 = vmatpush1.msra.mxu0 0.0
    %3317 = vmatprep.subr.mxu0 0.0
    %3318 = vmatpush1.msra.mxu0 0.0
    %3319 = vmatprep.subr.mxu0 0.0
    %3320 = vmatpush1.msra.mxu0 0.0
    %3321 = vmatprep.subr.mxu0 0.0
    %3322 = vmatpush1.msra.mxu0 0.0
    %3323 = vmatprep.subr.mxu0 0.0
    %3324 = vmatpush1.msra.mxu0 0.0
    %3325 = vmatprep.mubr.f32.mxu0 0.0
    %3326 = vmatmul.mubr.f32.gmra.mrb[0].mxu0 %v3253
    %v3327 = vpop.f32.mrb[0].mxu0
    %v3328 = vadd.f32 0.0, %v3327
    %v3329 = vpop.f32.mrb[0].mxu0
    %3330 = vmatprep.mubr.f32.mxu0 0.0
    %3331 = vmatmul.mubr.f32.gmra.mrb[0].mxu0 %v3255
    %v3332 = vpop.f32.mrb[0].mxu0
    %v3333 = vadd.f32 0.0, %v3332
    %v3334 = vpop.f32.mrb[0].mxu0
    %3335 = vmatprep.mubr.f32.mxu0 0.0
    %3336 = vmatmul.mubr.f32.gmra.mrb[0].mxu0 %v3257
    %v3337 = vpop.f32.mrb[0].mxu0
    %v3338 = vadd.f32 0.0, %v3337
    %v3339 = vpop.f32.mrb[0].mxu0
    %3340 = vmatprep.mubr.f32.mxu0 0.0
    %3341 = vmatmul.mubr.f32.gmra.mrb[0].mxu0 %v3259
    %v3342 = vpop.f32.mrb[0].mxu0
    %v3343 = vadd.f32 0.0, %v3342
    %v3344 = vpop.f32.mrb[0].mxu0
    %3345 = vdwg.mxu0
    %3350 = vrot.lane.b32.xlu0 %v3328, 4
    %v3351 = vpop.permute.xlu0 %3350
    %3352 = vrot.lane.b32.xlu0 %v3333, 4
    %v3353 = vpop.permute.xlu0 %3352
    %3354 = vrot.lane.b32.xlu0 %v3338, 4
    %v3355 = vpop.permute.xlu0 %3354
    %3356 = vrot.lane.b32.xlu0 %v3343, 4
    %v3357 = vpop.permute.xlu0 %3356
    %v3362 = vadd.f32 %v2914, %v3351
    %v3363 = vadd.f32 %v2917, %v3353
    %v3364 = vadd.f32 %v2922, %v3355
    %v3365 = vadd.f32 %v2925, %v3357
    %v3366 = vld [vmem:[%s73] sm:$0x1]
    %v3368 = vlaneseq
    %v3369 = vshrl.u32 %v3368, 7
    %v3370 = vsub.s32 0, %v3369
    %v3371 = vrot.slane %v3366, %v3370
    %3372 = vrot.lane.b32.xlu0 %v3371, 4
    %v3373 = vpop.permute.xlu0 %3372
    %v3375 = vadd.f32 %v3362, %v3373
    %v3376 = vadd.f32 %v3363, %v3373
    %v3377 = vadd.f32 %v3364, %v3373
    %v3378 = vadd.f32 %v3365, %v3373
    %3380 = vset.pattern.permute.xlu0 0
    %3381 = vperm.xlu0 %3380, %v3245
    %v3382 = vpop.permute.xlu0 %3381
    %3385 = vset.pattern.permute.xlu0 0
    %3386 = vperm.xlu0 %3385, %v3247
    %v3387 = vpop.permute.xlu0 %3386
    %3390 = vset.pattern.permute.xlu0 0
    %3391 = vperm.xlu0 %3390, %v3249
    %v3392 = vpop.permute.xlu0 %3391
    %3395 = vset.pattern.permute.xlu0 0
    %3396 = vperm.xlu0 %3395, %v3251
    %v3397 = vpop.permute.xlu0 %3396
    %v3399 = vmul.f32 %v3375, %v3382
    %v3400 = vmul.f32 %v3376, %v3387
    %v3401 = vmul.f32 %v3377, %v3392
    %v3402 = vmul.f32 %v3378, %v3397
    %3403 = vset.pattern.permute.xlu0 1
    %3404 = vperm.xlu0 %3403, %v3245
    %v3405 = vpop.permute.xlu0 %3404
    %3407 = vset.pattern.permute.xlu0 1
    %3408 = vperm.xlu0 %3407, %v3247
    %v3409 = vpop.permute.xlu0 %3408
    %3411 = vset.pattern.permute.xlu0 1
    %3412 = vperm.xlu0 %3411, %v3249
    %v3413 = vpop.permute.xlu0 %3412
    %3415 = vset.pattern.permute.xlu0 1
    %3416 = vperm.xlu0 %3415, %v3251
    %v3417 = vpop.permute.xlu0 %3416
    %v3419 = vmul.f32 %v3375, %v3405
    %v3420 = vmul.f32 %v3376, %v3409
    %v3421 = vmul.f32 %v3377, %v3413
    %v3422 = vmul.f32 %v3378, %v3417
    %3423 = vset.pattern.permute.xlu0 2
    %3424 = vperm.xlu0 %3423, %v3245
    %v3425 = vpop.permute.xlu0 %3424
    %3427 = vset.pattern.permute.xlu0 2
    %3428 = vperm.xlu0 %3427, %v3247
    %v3429 = vpop.permute.xlu0 %3428
    %3431 = vset.pattern.permute.xlu0 2
    %3432 = vperm.xlu0 %3431, %v3249
    %v3433 = vpop.permute.xlu0 %3432
    %3435 = vset.pattern.permute.xlu0 2
    %3436 = vperm.xlu0 %3435, %v3251
    %v3437 = vpop.permute.xlu0 %3436
    %v3439 = vmul.f32 %v3375, %v3425
    %v3440 = vmul.f32 %v3376, %v3429
    %v3441 = vmul.f32 %v3377, %v3433
    %v3442 = vmul.f32 %v3378, %v3437
    %3443 = vset.pattern.permute.xlu0 3
    %3444 = vperm.xlu0 %3443, %v3245
    %v3445 = vpop.permute.xlu0 %3444
    %3447 = vset.pattern.permute.xlu0 3
    %3448 = vperm.xlu0 %3447, %v3247
    %v3449 = vpop.permute.xlu0 %3448
    %3451 = vset.pattern.permute.xlu0 3
    %3452 = vperm.xlu0 %3451, %v3249
    %v3453 = vpop.permute.xlu0 %3452
    %3455 = vset.pattern.permute.xlu0 3
    %3456 = vperm.xlu0 %3455, %v3251
    %v3457 = vpop.permute.xlu0 %3456
    %v3459 = vmul.f32 %v3375, %v3445
    %v3460 = vmul.f32 %v3376, %v3449
    %v3461 = vmul.f32 %v3377, %v3453
    %v3462 = vmul.f32 %v3378, %v3457
    %3467 = vrot.lane.b32.xlu0 %v3399, 124
    %v3468 = vpop.permute.xlu0 %3467
    %3469 = vrot.lane.b32.xlu0 %v3400, 124
    %v3470 = vpop.permute.xlu0 %3469
    %3471 = vrot.lane.b32.xlu0 %v3401, 124
    %v3472 = vpop.permute.xlu0 %3471
    %3473 = vrot.lane.b32.xlu0 %v3402, 124
    %v3474 = vpop.permute.xlu0 %3473
    %3483 = vrot.lane.b32.xlu0 %v3419, 4
    %v3484 = vpop.permute.xlu0 %3483
    %3485 = vrot.lane.b32.xlu0 %v3420, 4
    %v3486 = vpop.permute.xlu0 %3485
    %3487 = vrot.lane.b32.xlu0 %v3421, 4
    %v3488 = vpop.permute.xlu0 %3487
    %3489 = vrot.lane.b32.xlu0 %v3422, 4
    %v3490 = vpop.permute.xlu0 %3489
    %3499 = vrot.lane.b32.xlu0 %v3439, 12
    %v3500 = vpop.permute.xlu0 %3499
    %3501 = vrot.lane.b32.xlu0 %v3440, 12
    %v3502 = vpop.permute.xlu0 %3501
    %3503 = vrot.lane.b32.xlu0 %v3441, 12
    %v3504 = vpop.permute.xlu0 %3503
    %3505 = vrot.lane.b32.xlu0 %v3442, 12
    %v3506 = vpop.permute.xlu0 %3505
    %3515 = vrot.lane.b32.xlu0 %v3459, 20
    %v3516 = vpop.permute.xlu0 %3515
    %3517 = vrot.lane.b32.xlu0 %v3460, 20
    %v3518 = vpop.permute.xlu0 %3517
    %3519 = vrot.lane.b32.xlu0 %v3461, 20
    %v3520 = vpop.permute.xlu0 %3519
    %3521 = vrot.lane.b32.xlu0 %v3462, 20
    %v3522 = vpop.permute.xlu0 %3521
    %v3527 = vsel %vm460, %v3468, %v3484
    %v3528 = vsel %vm460, %v3470, %v3486
    %v3529 = vsel %vm460, %v3472, %v3488
    %v3530 = vsel %vm460, %v3474, %v3490
    %v3531 = vsel %vm377, %v3527, %v3500
    %v3532 = vsel %vm377, %v3528, %v3502
    %v3533 = vsel %vm377, %v3529, %v3504
    %v3534 = vsel %vm377, %v3530, %v3506
    %v3535 = vsel %vm1321, %v3531, %v3516
    %v3536 = vsel %vm1321, %v3532, %v3518
    %v3537 = vsel %vm1321, %v3533, %v3520
    %v3538 = vsel %vm1321, %v3534, %v3522
    %v3539 = vpack.c.bf16 %v3247, %v3245
    %v3540 = vpack.c.bf16 %v3251, %v3249
    %3541 = vmatprep.subr.bf16.mxu0 0
    %3542 = vmatpush1.bf16.msra.mxu0 %v3539
    %3543 = vmatprep.subr.bf16.mxu0 0
    %3544 = vmatpush1.bf16.msra.mxu0 %v3540
    %3545 = vmatprep.subr.bf16.mxu0 0
    %3546 = vmatpush1.bf16.msra.mxu0 0
    %3547 = vmatprep.subr.bf16.mxu0 0
    %3548 = vmatpush1.bf16.msra.mxu0 0
    %3549 = vmatprep.subr.bf16.mxu0 0
    %3550 = vmatpush1.bf16.msra.mxu0 0
    %3551 = vmatprep.subr.bf16.mxu0 0
    %3552 = vmatpush1.bf16.msra.mxu0 0
    %3553 = vmatprep.subr.bf16.mxu0 0
    %3554 = vmatpush1.bf16.msra.mxu0 0
    %3555 = vmatprep.subr.bf16.mxu0 0
    %3556 = vmatpush1.bf16.msra.mxu0 0
    %3557 = vmatprep.subr.bf16.mxu0 0
    %3558 = vmatpush1.bf16.msra.mxu0 0
    %3559 = vmatprep.subr.bf16.mxu0 0
    %3560 = vmatpush1.bf16.msra.mxu0 0
    %3561 = vmatprep.subr.bf16.mxu0 0
    %3562 = vmatpush1.bf16.msra.mxu0 0
    %3563 = vmatprep.subr.bf16.mxu0 0
    %3564 = vmatpush1.bf16.msra.mxu0 0
    %3565 = vmatprep.subr.bf16.mxu0 0
    %3566 = vmatpush1.bf16.msra.mxu0 0
    %3567 = vmatprep.subr.bf16.mxu0 0
    %3568 = vmatpush1.bf16.msra.mxu0 0
    %3569 = vmatprep.subr.bf16.mxu0 0
    %3570 = vmatpush1.bf16.msra.mxu0 0
    %3571 = vmatprep.subr.bf16.mxu0 0
    %3572 = vmatpush1.bf16.msra.mxu0 0
    %3573 = vmatprep.mubr.bf16.mxu0 0
    %3574 = vmatmul.mubr.bf16.gmra.mrb[0].mxu0 %v1347
    %v3575 = vpop.f32.mrb[0].mxu0
    %v3576 = vadd.f32 0.0, %v3575
    %v3577 = vpop.f32.mrb[0].mxu0
    %v3578 = vpop.f32.mrb[0].mxu0
    %v3579 = vadd.f32 0.0, %v3578
    %v3580 = vpop.f32.mrb[0].mxu0
    %3581 = vdwg.mxu0
    %v3582 = vpack.c.bf16 %v3536, %v3535
    %v3583 = vpack.c.bf16 %v3538, %v3537
    %3584 = vmatprep.subr.bf16.mxu0 0
    %3585 = vmatpush1.bf16.msra.mxu0 %v3582
    %3586 = vmatprep.subr.bf16.mxu0 0
    %3587 = vmatpush1.bf16.msra.mxu0 %v3583
    %3588 = vmatprep.subr.bf16.mxu0 0
    %3589 = vmatpush1.bf16.msra.mxu0 0
    %3590 = vmatprep.subr.bf16.mxu0 0
    %3591 = vmatpush1.bf16.msra.mxu0 0
    %3592 = vmatprep.subr.bf16.mxu0 0
    %3593 = vmatpush1.bf16.msra.mxu0 0
    %3594 = vmatprep.subr.bf16.mxu0 0
    %3595 = vmatpush1.bf16.msra.mxu0 0
    %3596 = vmatprep.subr.bf16.mxu0 0
    %3597 = vmatpush1.bf16.msra.mxu0 0
    %3598 = vmatprep.subr.bf16.mxu0 0
    %3599 = vmatpush1.bf16.msra.mxu0 0
    %3600 = vmatprep.subr.bf16.mxu0 0
    %3601 = vmatpush1.bf16.msra.mxu0 0
    %3602 = vmatprep.subr.bf16.mxu0 0
    %3603 = vmatpush1.bf16.msra.mxu0 0
    %3604 = vmatprep.subr.bf16.mxu0 0
    %3605 = vmatpush1.bf16.msra.mxu0 0
    %3606 = vmatprep.subr.bf16.mxu0 0
    %3607 = vmatpush1.bf16.msra.mxu0 0
    %3608 = vmatprep.subr.bf16.mxu0 0
    %3609 = vmatpush1.bf16.msra.mxu0 0
    %3610 = vmatprep.subr.bf16.mxu0 0
    %3611 = vmatpush1.bf16.msra.mxu0 0
    %3612 = vmatprep.subr.bf16.mxu0 0
    %3613 = vmatpush1.bf16.msra.mxu0 0
    %3614 = vmatprep.subr.bf16.mxu0 0
    %3615 = vmatpush1.bf16.msra.mxu0 0
    %3616 = vmatprep.mubr.bf16.mxu0 0
    %3617 = vmatmul.mubr.bf16.gmra.mrb[0].mxu0 %v1347
    %v3618 = vpop.f32.mrb[0].mxu0
    %v3619 = vadd.f32 0.0, %v3618
    %v3620 = vpop.f32.mrb[0].mxu0
    %v3621 = vpop.f32.mrb[0].mxu0
    %v3622 = vadd.f32 0.0, %v3621
    %v3623 = vpop.f32.mrb[0].mxu0
    %3624 = vdwg.mxu0
    %v3625 = vmax.f32 %v3576, 1e-20
    %v3626 = vmax.f32 %v3579, 1e-20
    %v3627 = vrcp.pop %v3625
    %v3628 = vrcp.pop %v3626
    %3630 = vset.pattern.permute.xlu0 0
    %3631 = vperm.xlu0 %3630, %v3627
    %v3632 = vpop.permute.xlu0 %3631
    %3635 = vset.pattern.permute.xlu0 0
    %3636 = vperm.xlu0 %3635, %v3628
    %v3637 = vpop.permute.xlu0 %3636
    %v3639 = vmul.f32 %v3619, %v3632
    %v3640 = vmul.f32 %v3622, %v3637
    %v3641 = vadd.f32 %v3639, %v2711
    %v3642 = vadd.f32 %v3640, %v2716
    %3643 = vset.pattern.permute.xlu0 1
    %3644 = vperm.xlu0 %3643, %v3627
    %v3645 = vpop.permute.xlu0 %3644
    %3647 = vset.pattern.permute.xlu0 1
    %3648 = vperm.xlu0 %3647, %v3628
    %v3649 = vpop.permute.xlu0 %3648
    %v3651 = vmul.f32 %v3619, %v3645
    %v3652 = vmul.f32 %v3622, %v3649
    %3653 = vrot.lane.b32.xlu0 %v2711, 8
    %v3654 = vpop.permute.xlu0 %3653
    %3655 = vrot.lane.b32.xlu0 %v2716, 8
    %v3656 = vpop.permute.xlu0 %3655
    %v3659 = vadd.f32 %v3651, %v3654
    %v3660 = vadd.f32 %v3652, %v3656
    %3661 = vset.pattern.permute.xlu0 2
    %3662 = vperm.xlu0 %3661, %v3627
    %v3663 = vpop.permute.xlu0 %3662
    %3665 = vset.pattern.permute.xlu0 2
    %3666 = vperm.xlu0 %3665, %v3628
    %v3667 = vpop.permute.xlu0 %3666
    %v3669 = vmul.f32 %v3619, %v3663
    %v3670 = vmul.f32 %v3622, %v3667
    %3671 = vrot.lane.b32.xlu0 %v2711, 16
    %v3672 = vpop.permute.xlu0 %3671
    %3673 = vrot.lane.b32.xlu0 %v2716, 16
    %v3674 = vpop.permute.xlu0 %3673
    %v3677 = vadd.f32 %v3669, %v3672
    %v3678 = vadd.f32 %v3670, %v3674
    %3679 = vset.pattern.permute.xlu0 3
    %3680 = vperm.xlu0 %3679, %v3627
    %v3681 = vpop.permute.xlu0 %3680
    %3683 = vset.pattern.permute.xlu0 3
    %3684 = vperm.xlu0 %3683, %v3628
    %v3685 = vpop.permute.xlu0 %3684
    %v3687 = vmul.f32 %v3619, %v3681
    %v3688 = vmul.f32 %v3622, %v3685
    %3689 = vrot.lane.b32.xlu0 %v2711, 24
    %v3690 = vpop.permute.xlu0 %3689
    %3691 = vrot.lane.b32.xlu0 %v2716, 24
    %v3692 = vpop.permute.xlu0 %3691
    %v3695 = vadd.f32 %v3687, %v3690
    %v3696 = vadd.f32 %v3688, %v3692
    %v3697 = vsel %vm460, %v3641, %v3659
    %v3698 = vsel %vm460, %v3642, %v3660
    %v3699 = vsel %vm377, %v3697, %v3677
    %v3700 = vsel %vm377, %v3698, %v3678
    %v3701 = vsel %vm1321, %v3699, %v3695
    %v3702 = vsel %vm1321, %v3700, %v3696
    %3703 = vst.msk [vmem:[#allocation2] sm:$0xff] %vm185, %v3701
    %3704 = vst.msk [vmem:[#allocation2 + $0x8] sm:$0xff] %vm185, %v3702
    // Predicated region
    $region158: #{tpu_custom_call.1} parent=1 // pred_check
      _
    $region159: #{tpu_custom_call.1} parent=1 // pred_check_branch
      %3706 = sbr.rel (0) target = $region161
    $region160: #{tpu_custom_call.1} parent=1 // pred_region
      %s3708 = ssub.s32 256, 256
      %3709 = vsyncadd [#allocation3], %s3708
      %s3710 = sshll.u32 [#allocation2], 4
      %s3711 = int_to_ptr.vmem [resolvable:$true] %s3710
      %3716 = dma.vmem_to_hbm [thread:$0]  %s3711, 256, %s79, [#allocation3], 128, 128, 8
    $region161: #{tpu_custom_call.1} parent=1 // pred_fallthru
      _
    // Predicated region
    $region162: #{tpu_custom_call.1} parent=1 // pred_check
      _
    $region163: #{tpu_custom_call.1} parent=1 // pred_check_branch
      %3718 = sbr.rel (0) target = $region165
    $region164: #{tpu_custom_call.1} parent=1 // pred_region
      %3719 = dma.done [#allocation3], 256
    $region165: #{tpu_custom_call.1} parent=1 // pred_fallthru
      _
    %3720 = vsyncpa [#allocation3], 1

</llo_original>
